<compile_context>
chip_gen: v6e
topology: v6e:2x2x1
jax: 0.10.0
libtpu: 0.0.40
codegen_flags: <defaults>
</compile_context>

<pallas_src>
import functools

import jax
import jax.numpy as jnp
from jax.experimental import pallas as pl
from jax.experimental.pallas import tpu as pltpu

_VMEM_LIMIT = 32 * 1024 * 1024          # explicit scoped-VMEM limit (safe on v5e/v6e/v7x)
_STEP_VMEM_BUDGET = 6 * 1024 * 1024     # per-grid-step working-set target (double-buffered)


# ---------------------------------------------------------------------------
# helpers
# ---------------------------------------------------------------------------
def _padded_vmem_bytes(shape, itemsize):
    """Approximate VMEM tile footprint: 2nd-minor dim padded to 8 sublanes,
    minor dim padded to 128 lanes (budget with the *padded* footprint)."""
    shape = tuple(int(d) for d in shape)
    if len(shape) == 1:
        shape = (1,) + shape
    lead = 1
    for d in shape[:-2]:
        lead *= d
    sub = -(-shape[-2] // 8) * 8
    lane = -(-shape[-1] // 128) * 128
    return lead * sub * lane * itemsize


def _pick_th(h, w, k3, cout, *, pool, row_cap=None, budget=_STEP_VMEM_BUDGET):
    """Conv-output rows per grid step: largest divisor of h (even when the 2x2
    pool is fused) whose double-buffered working set fits the VMEM budget."""
    def cands(cap):
        return [d for d in range(h, 0, -1)
                if h % d == 0 and (not pool or d % 2 == 0)
                and (cap is None or d <= cap)]

    divs = cands(row_cap) or cands(None)
    for th in divs:
        in_b = 2 * _padded_vmem_bytes((th + 2, w, k3), 2)               # bf16 taps, x2 buffers
        acc_b = (2 if pool else 1) * _padded_vmem_bytes((th * w, cout), 4)
        out_rows = (th // 2) * (w // 2) if pool else th * w
        out_b = 2 * _padded_vmem_bytes((out_rows, cout), 4)
        wgt_b = 2 * (_padded_vmem_bytes((3 * k3, cout), 2)
                     + _padded_vmem_bytes((1, cout), 4))
        if in_b + acc_b + out_b + wgt_b <= budget:
            return th
    return divs[-1]


# ---------------------------------------------------------------------------
# Pallas kernels
# ---------------------------------------------------------------------------
def _conv3_kernel(t_ref, w_ref, b_ref, o_ref, *, relu):
    """3x3 same-pad conv on one H-tile as 3 MXU matmuls (kj folded into K).

    t_ref: (TH+2, W, 3*Cin)  bf16 taps (taps[r, w, kj*Cin+c] = x_pad[r, w+kj, c])
    w_ref: (3, 3*Cin, Cout)  bf16
    b_ref: (1, Cout)         f32
    o_ref: (TH*W, Cout)      f32
    """
    th = t_ref.shape[0] - 2
    wd = t_ref.shape[1]
    cout = o_ref.shape[-1]
    acc = jnp.broadcast_to(b_ref[...], (th * wd, cout)).astype(jnp.float32)
    for ki in range(3):
        lhs = t_ref[pl.ds(ki, th)].reshape(th * wd, -1)      # leading-axis slice only
        acc = acc + jnp.dot(lhs, w_ref[ki], preferred_element_type=jnp.float32)
    if relu:
        acc = jnp.maximum(acc, 0.0)
    o_ref[...] = acc.astype(o_ref.dtype)


def _conv3_pool_kernel(te_ref, to_ref, w_ref, b_ref, o_ref, *, relu):
    """3x3 conv (+ReLU) with the 2x2/stride-2 max-pool fused into the epilogue.

    te_ref/to_ref: (TH+2, Wo, 3*Cin) bf16 taps for even / odd output columns
    o_ref:         (TH//2, Wo, Cout) f32 pooled output
    """
    th = te_ref.shape[0] - 2
    wo = te_ref.shape[1]
    cout = o_ref.shape[-1]
    bias = jnp.broadcast_to(b_ref[...], (th * wo, cout)).astype(jnp.float32)
    acc_e = bias
    acc_o = bias
    for ki in range(3):
        acc_e = acc_e + jnp.dot(te_ref[pl.ds(ki, th)].reshape(th * wo, -1),
                                w_ref[ki], preferred_element_type=jnp.float32)
        acc_o = acc_o + jnp.dot(to_ref[pl.ds(ki, th)].reshape(th * wo, -1),
                                w_ref[ki], preferred_element_type=jnp.float32)
    wmax = jnp.maximum(acc_e, acc_o)                         # max over the W pair
    if relu:
        wmax = jnp.maximum(wmax, 0.0)                        # relu commutes with max
    hm = wmax.reshape(th // 2, 2 * wo, cout)                 # split leading dim only
    o_ref[...] = jnp.maximum(hm[:, :wo, :], hm[:, wo:, :]).astype(o_ref.dtype)


def _relu_kernel(x_ref, o_ref):
    o_ref[...] = jnp.maximum(x_ref[...], 0.0).astype(o_ref.dtype)


def _maxpool_kernel(x_ref, o_ref):
    # x: (RB, 2, Wo, 2*C) — Wo on sublanes, lane-dense last dim.
    c = o_ref.shape[-1]
    x = x_ref[...]
    hm = jnp.maximum(x[:, 0], x[:, 1])                       # H-pair max (major-dim select)
    o_ref[...] = jnp.maximum(hm[..., :c], hm[..., c:])       # W-pair max: static lane slices


# ---------------------------------------------------------------------------
# layer wrappers
# ---------------------------------------------------------------------------
def conv3x3_fused(x_nhwc, w_oihw, bias, *, relu=False, pool=False, row_cap=None):
    """3x3 same-pad conv with optional fused ReLU and fused 2x2 max-pool."""
    n, h, wd, cin = x_nhwc.shape
    cout = w_oihw.shape[0]
    k3 = 3 * cin

    # bf16 MXU operands (f32 accumulation inside the kernel).
    xb = x_nhwc.astype(jnp.bfloat16)
    xp = jnp.pad(xb, ((0, 0), (1, 1), (1, 1), (0, 0)))               # (n, h+2, wd+2, cin)
    # Fold the kj (column) taps into the channel axis:
    #   taps[n, r, w, kj*cin + c] == xp[n, r, w + kj, c]
    taps = jnp.concatenate([xp[:, :, j:j + wd, :] for j in range(3)], axis=-1)

    wgt = jnp.transpose(w_oihw, (2, 3, 1, 0)).reshape(3, k3, cout).astype(jnp.bfloat16)
    b2 = bias.reshape(1, cout).astype(jnp.float32)

    th = _pick_th(h, wd, k3, cout, pool=pool, row_cap=row_cap)
    nh = h // th
    cparams = pltpu.CompilerParams(dimension_semantics=("parallel", "parallel"),
                                   vmem_limit_bytes=_VMEM_LIMIT)

    if not pool:
        # Overlapping (halo=2) row blocks pre-gathered so the grid uses plain
        # Blocked specs.
        # TODO(synk): switch to a pl.Element offset index_map for the halo to
        # avoid this extra copy at production feature-map sizes.
        blocks = jnp.stack([taps[:, i * th:i * th + th + 2] for i in range(nh)], axis=1)
        out = pl.pallas_call(
            functools.partial(_conv3_kernel, relu=relu),
            out_shape=jax.ShapeDtypeStruct((n, nh, th * wd, cout), jnp.float32),
            grid=(n, nh),
            in_specs=[
                pl.BlockSpec((None, None, th + 2, wd, k3), lambda i, j: (i, j, 0, 0, 0)),
                pl.BlockSpec((3, k3, cout), lambda i, j: (0, 0, 0)),
                pl.BlockSpec((1, cout), lambda i, j: (0, 0)),
            ],
            out_specs=pl.BlockSpec((None, None, th * wd, cout), lambda i, j: (i, j, 0, 0)),
            compiler_params=cparams,
        )(blocks, wgt, b2)
        return out.reshape(n, h, wd, cout)                   # free reshape (contiguous)

    # fused 2x2/stride-2 max-pool epilogue (requires even H, W; caller checks)
    wo, ho = wd // 2, h // 2
    taps_e = taps[:, :, 0::2, :]                             # taps for even output columns
    taps_o = taps[:, :, 1::2, :]                             # taps for odd output columns
    blk_e = jnp.stack([taps_e[:, i * th:i * th + th + 2] for i in range(nh)], axis=1)
    blk_o = jnp.stack([taps_o[:, i * th:i * th + th + 2] for i in range(nh)], axis=1)
    out = pl.pallas_call(
        functools.partial(_conv3_pool_kernel, relu=relu),
        out_shape=jax.ShapeDtypeStruct((n, nh, th // 2, wo, cout), jnp.float32),
        grid=(n, nh),
        in_specs=[
            pl.BlockSpec((None, None, th + 2, wo, k3), lambda i, j: (i, j, 0, 0, 0)),
            pl.BlockSpec((None, None, th + 2, wo, k3), lambda i, j: (i, j, 0, 0, 0)),
            pl.BlockSpec((3, k3, cout), lambda i, j: (0, 0, 0)),
            pl.BlockSpec((1, cout), lambda i, j: (0, 0)),
        ],
        out_specs=pl.BlockSpec((None, None, th // 2, wo, cout),
                               lambda i, j: (i, j, 0, 0, 0)),
        compiler_params=cparams,
    )(blk_e, blk_o, wgt, b2)
    return out.reshape(n, ho, wo, cout)


def relu_nhwc(x):
    """Standalone ReLU (only when a conv's pre-ReLU output is requested):
    lane-dense (rows, 128) slabs, pl.cdiv grid (partial block masked)."""
    shape, dtype = x.shape, x.dtype
    flat = x.reshape(-1)
    t = flat.shape[0]
    lanes = 128
    rows = pl.cdiv(t, lanes)
    pad = rows * lanes - t
    if pad:
        flat = jnp.pad(flat, (0, pad))
    a = flat.reshape(rows, lanes)
    rb = min(rows, 1024)
    out = pl.pallas_call(
        _relu_kernel,
        out_shape=jax.ShapeDtypeStruct((rows, lanes), dtype),
        grid=(pl.cdiv(rows, rb),),
        in_specs=[pl.BlockSpec((rb, lanes), lambda i: (i, 0))],
        out_specs=pl.BlockSpec((rb, lanes), lambda i: (i, 0)),
        compiler_params=pltpu.CompilerParams(dimension_semantics=("parallel",),
                                             vmem_limit_bytes=_VMEM_LIMIT),
    )(a)
    return out.reshape(-1)[:t].reshape(shape)


def maxpool2x2(x_nhwc):
    """Standalone MaxPool2d(2,2): (N*Ho, 2, Wo, 2*C) lane-dense layout."""
    n, h, w, c = x_nhwc.shape
    ho, wo = h // 2, w // 2
    x = x_nhwc[:, :2 * ho, :2 * wo, :]                 # PyTorch floor behavior
    xr = x.reshape(n * ho, 2, wo, 2 * c)               # free reinterpretation
    rows = n * ho
    isz = x_nhwc.dtype.itemsize
    per_row = 2 * (2 * _padded_vmem_bytes((wo, 2 * c), isz)    # input (padded), x2 buffers
                   + _padded_vmem_bytes((wo, c), isz))         # output, x2 buffers
    rb = max(1, min(rows, _STEP_VMEM_BUDGET // max(per_row, 1)))
    out = pl.pallas_call(
        _maxpool_kernel,
        out_shape=jax.ShapeDtypeStruct((rows, wo, c), x_nhwc.dtype),
        grid=(pl.cdiv(rows, rb),),
        in_specs=[pl.BlockSpec((rb, 2, wo, 2 * c), lambda i: (i, 0, 0, 0))],
        out_specs=pl.BlockSpec((rb, wo, c), lambda i: (i, 0, 0)),
        compiler_params=pltpu.CompilerParams(dimension_semantics=("parallel",),
                                             vmem_limit_bytes=_VMEM_LIMIT),
    )(xr)
    return out.reshape(n, ho, wo, c)


# ---------------------------------------------------------------------------
# deterministic parameter init (xavier_normal_ on conv weights, zero bias),
# mirroring `_init_layer` applied to every nn.Conv2d of the base.
# ---------------------------------------------------------------------------
def xavier_normal_conv(key, cout, cin, kh=3, kw=3):
    fan_in, fan_out = cin * kh * kw, cout * kh * kw
    std = (2.0 / (fan_in + fan_out)) ** 0.5
    w = std * jax.random.normal(key, (cout, cin, kh, kw), jnp.float32)
    b = jnp.zeros((cout,), jnp.float32)
    return w, b


# ---------------------------------------------------------------------------
# Features: Pallas/JAX analog of the PyTorch module
# ---------------------------------------------------------------------------
class FeaturesPallas:
    """Runs the `base` sequential layer-by-layer, collecting outputs at
    `out_layers` (get_multiple_outputs semantics) and returning (sources, x).
    conv -> relu (-> pool) chains are fused into a single Pallas kernel unless
    an intermediate output is itself requested."""

    def __init__(self, layers, out_layers, last_feature_layer=None,
                 conv_row_cap=None):
        if last_feature_layer is not None:
            layers = layers[:last_feature_layer + 1]
        self.layers = list(layers)
        self.out_layers = list(out_layers)
        self.num_outputs = len(self.out_layers)
        self.conv_row_cap = conv_row_cap   # optional TH cap (forces H tiling)

    def __call__(self, x_nchw):
        x = jnp.transpose(x_nchw, (0, 2, 3, 1))  # NCHW -> NHWC once at entry
        sources = []
        idx, n_layers = 0, len(self.layers)
        while idx < n_layers:
            kind = self.layers[idx][0]
            consumed = 1
            if kind == "conv":
                _, wgt, b = self.layers[idx]
                nxt = self.layers[idx + 1][0] if idx + 1 < n_layers else None
                nxt2 = self.layers[idx + 2][0] if idx + 2 < n_layers else None
                even_hw = (x.shape[1] % 2 == 0) and (x.shape[2] % 2 == 0)
                fuse_relu = (nxt == "relu") and (idx not in self.out_layers)
                if fuse_relu:
                    fuse_pool = (nxt2 == "pool"
                                 and (idx + 1) not in self.out_layers and even_hw)
                else:
                    fuse_pool = (nxt == "pool"
                                 and idx not in self.out_layers and even_hw)
                x = conv3x3_fused(x, wgt, b, relu=fuse_relu, pool=fuse_pool,
                                  row_cap=self.conv_row_cap)
                consumed = 1 + int(fuse_relu) + int(fuse_pool)
            elif kind == "relu":
                x = relu_nhwc(x)
            elif kind == "pool":
                x = maxpool2x2(x)
            else:
                raise ValueError(kind)
            for j in range(idx, idx + consumed):
                if j in self.out_layers:
                    # NCHW to match the PyTorch module's output convention.
                    sources.append(jnp.transpose(x, (0, 3, 1, 2)))
            idx += consumed
        return sources, jnp.transpose(x, (0, 3, 1, 2))


# ---------------------------------------------------------------------------
# pure-JAX f32 reference (for correctness check)
# ---------------------------------------------------------------------------
def _reference_forward(layers, out_layers, x_nchw):
    x = x_nchw
    sources = []
    for i, layer in enumerate(layers):
        kind = layer[0]
        if kind == "conv":
            _, w, b = layer
            x = jax.lax.conv_general_dilated(
                x, w, window_strides=(1, 1), padding="SAME",
                dimension_numbers=("NCHW", "OIHW", "NCHW"))
            x = x + b[None, :, None, None]
        elif kind == "relu":
            x = jnp.maximum(x, 0.0)
        elif kind == "pool":
            x = jax.lax.reduce_window(x, -jnp.inf, jax.lax.max,
                                      (1, 1, 2, 2), (1, 1, 2, 2), "VALID")
        if i in out_layers:
            sources.append(x)
    return sources, x


if __name__ == "__main__":
    key = jax.random.PRNGKey(0)
    k0, k1, k2, kx = jax.random.split(key, 4)

    # Small synthetic VGG-style base:
    #   0: Conv2d(3,8,3,pad=1)  1: ReLU  2: Conv2d(8,16,3,pad=1)  3: ReLU
    #   4: MaxPool2d(2,2)       5: Conv2d(16,16,3,pad=1)          6: ReLU
    w0, b0 = xavier_normal_conv(k0, 8, 3)
    w1, b1 = xavier_normal_conv(k1, 16, 8)
    w2, b2 = xavier_normal_conv(k2, 16, 16)
    base_layers = [
        ("conv", w0, b0), ("relu",),
        ("conv", w1, b1), ("relu",),
        ("pool",),
        ("conv", w2, b2), ("relu",),
    ]

    x = jax.random.normal(kx, (2, 3, 16, 16), jnp.float32)

    # (out_layers, conv_row_cap) configs exercising: fused conv+relu,
    # fused conv+relu+pool, H-tiled halo path (row_cap=8 -> 2 H blocks),
    # standalone relu, standalone pool, and raw-conv-output capture.
    configs = [([3, 6], None), ([6], 8), ([0, 4], None)]

    for out_layers, row_cap in configs:
        model = FeaturesPallas(base_layers, out_layers=out_layers,
                               conv_row_cap=row_cap)
        forward = jax.jit(lambda inp: model(inp))
        sources, out = forward(x)
        out = jax.block_until_ready(out)
        sources = [jax.block_until_ready(s) for s in sources]

        ref_sources, ref_out = _reference_forward(base_layers, out_layers, x)
        assert len(sources) == model.num_outputs == len(ref_sources)
        assert out.shape == ref_out.shape
        # bf16 MXU operands (f32 accumulation) -> loosened tolerance vs f32 ref.
        assert jnp.allclose(out, ref_out, rtol=5e-2, atol=5e-2), out_layers
        for s, r in zip(sources, ref_sources):
            assert s.shape == r.shape
            assert jnp.allclose(s, r, rtol=5e-2, atol=5e-2), out_layers

    print("KERNEL_OK")
</pallas_src>

<mosaic_0001>
module attributes {stable_mosaic.version = 11 : i64} {
  func.func @_conv3_kernel(%arg0: i32, %arg1: i32, %arg2: memref<1x1x18x16x9xbf16, #tpu.memory_space<vmem>>, %arg3: memref<3x9x8xbf16, #tpu.memory_space<vmem>>, %arg4: memref<1x8xf32, #tpu.memory_space<vmem>>, %arg5: memref<1x1x256x8xf32, #tpu.memory_space<vmem>>) attributes {dimension_semantics = [#tpu.dimension_semantics<parallel>, #tpu.dimension_semantics<parallel>], iteration_bounds = array<i64: 2, 1>, scalar_prefetch = 0 : i64, scratch_operands = 0 : i64, tpu.core_type = #tpu.core_type<tc>, window_params = [{transform_indices = @transform_0, window_bounds = array<i64: 1, 1, 18, 16, 9>}, {pipeline_mode = #tpu.pipeline_mode<synchronous>, transform_indices = @transform_1, window_bounds = array<i64: 3, 9, 8>}, {pipeline_mode = #tpu.pipeline_mode<synchronous>, transform_indices = @transform_2, window_bounds = array<i64: 1, 8>}, {transform_indices = @transform_3, window_bounds = array<i64: 1, 1, 256, 8>}]} {
    %c0 = arith.constant 0 : index
    %c0_0 = arith.constant 0 : index
    %0 = vector.load %arg4[%c0, %c0_0] : memref<1x8xf32, #tpu.memory_space<vmem>>, vector<1x8xf32>
    %1 = vector.shape_cast %0 : vector<1x8xf32> to vector<1x8xf32>
    %2 = vector.broadcast %1 : vector<1x8xf32> to vector<256x8xf32>
    %c0_1 = arith.constant 0 : index
    %c0_2 = arith.constant 0 : index
    %c0_3 = arith.constant 0 : index
    %c0_4 = arith.constant 0 : index
    %c0_5 = arith.constant 0 : index
    %3 = vector.load %arg2[%c0_1, %c0_2, %c0_3, %c0_4, %c0_5] : memref<1x1x18x16x9xbf16, #tpu.memory_space<vmem>>, vector<1x1x16x16x9xbf16>
    %4 = vector.shape_cast %3 : vector<1x1x16x16x9xbf16> to vector<16x16x9xbf16>
    %5 = vector.shape_cast %4 : vector<16x16x9xbf16> to vector<256x9xbf16>
    %c0_6 = arith.constant 0 : index
    %c0_7 = arith.constant 0 : index
    %c0_8 = arith.constant 0 : index
    %6 = vector.load %arg3[%c0_6, %c0_7, %c0_8] : memref<3x9x8xbf16, #tpu.memory_space<vmem>>, vector<1x9x8xbf16>
    %7 = vector.shape_cast %6 : vector<1x9x8xbf16> to vector<9x8xbf16>
    %cst = arith.constant dense<0.000000e+00> : vector<256x8xf32>
    %8 = tpu.matmul %5, %7, %cst {dimension_numbers = #tpu.dot_dimension_numbers<[1], [0], [0], [1], [0, 0, 1, 1], [], []>} : vector<256x9xbf16>, vector<9x8xbf16>, vector<256x8xf32> -> vector<256x8xf32>
    %9 = arith.addf %2, %8 : vector<256x8xf32>
    %c0_9 = arith.constant 0 : index
    %c0_10 = arith.constant 0 : index
    %c1 = arith.constant 1 : index
    %c0_11 = arith.constant 0 : index
    %c0_12 = arith.constant 0 : index
    %10 = vector.load %arg2[%c0_9, %c0_10, %c1, %c0_11, %c0_12] : memref<1x1x18x16x9xbf16, #tpu.memory_space<vmem>>, vector<1x1x16x16x9xbf16>
    %11 = vector.shape_cast %10 : vector<1x1x16x16x9xbf16> to vector<16x16x9xbf16>
    %12 = vector.shape_cast %11 : vector<16x16x9xbf16> to vector<256x9xbf16>
    %c1_13 = arith.constant 1 : index
    %c0_14 = arith.constant 0 : index
    %c0_15 = arith.constant 0 : index
    %13 = vector.load %arg3[%c1_13, %c0_14, %c0_15] : memref<3x9x8xbf16, #tpu.memory_space<vmem>>, vector<1x9x8xbf16>
    %14 = vector.shape_cast %13 : vector<1x9x8xbf16> to vector<9x8xbf16>
    %cst_16 = arith.constant dense<0.000000e+00> : vector<256x8xf32>
    %15 = tpu.matmul %12, %14, %cst_16 {dimension_numbers = #tpu.dot_dimension_numbers<[1], [0], [0], [1], [0, 0, 1, 1], [], []>} : vector<256x9xbf16>, vector<9x8xbf16>, vector<256x8xf32> -> vector<256x8xf32>
    %16 = arith.addf %9, %15 : vector<256x8xf32>
    %c0_17 = arith.constant 0 : index
    %c0_18 = arith.constant 0 : index
    %c2 = arith.constant 2 : index
    %c0_19 = arith.constant 0 : index
    %c0_20 = arith.constant 0 : index
    %17 = vector.load %arg2[%c0_17, %c0_18, %c2, %c0_19, %c0_20] : memref<1x1x18x16x9xbf16, #tpu.memory_space<vmem>>, vector<1x1x16x16x9xbf16>
    %18 = vector.shape_cast %17 : vector<1x1x16x16x9xbf16> to vector<16x16x9xbf16>
    %19 = vector.shape_cast %18 : vector<16x16x9xbf16> to vector<256x9xbf16>
    %c2_21 = arith.constant 2 : index
    %c0_22 = arith.constant 0 : index
    %c0_23 = arith.constant 0 : index
    %20 = vector.load %arg3[%c2_21, %c0_22, %c0_23] : memref<3x9x8xbf16, #tpu.memory_space<vmem>>, vector<1x9x8xbf16>
    %21 = vector.shape_cast %20 : vector<1x9x8xbf16> to vector<9x8xbf16>
    %cst_24 = arith.constant dense<0.000000e+00> : vector<256x8xf32>
    %22 = tpu.matmul %19, %21, %cst_24 {dimension_numbers = #tpu.dot_dimension_numbers<[1], [0], [0], [1], [0, 0, 1, 1], [], []>} : vector<256x9xbf16>, vector<9x8xbf16>, vector<256x8xf32> -> vector<256x8xf32>
    %23 = arith.addf %16, %22 : vector<256x8xf32>
    %cst_25 = arith.constant 0.000000e+00 : f32
    %24 = vector.broadcast %cst_25 : f32 to vector<256x8xf32>
    %25 = arith.maximumf %23, %24 : vector<256x8xf32>
    %c0_26 = arith.constant 0 : index
    %c0_27 = arith.constant 0 : index
    %c0_28 = arith.constant 0 : index
    %c0_29 = arith.constant 0 : index
    %26 = vector.load %arg5[%c0_26, %c0_27, %c0_28, %c0_29] : memref<1x1x256x8xf32, #tpu.memory_space<vmem>>, vector<1x1x256x8xf32>
    %27 = vector.shape_cast %26 : vector<1x1x256x8xf32> to vector<256x8xf32>
    %28 = vector.shape_cast %25 : vector<256x8xf32> to vector<1x1x256x8xf32>
    tpu.vector_store %arg5[%c0_26, %c0_27, %c0_28, %c0_29], %28 {strides = array<i32>} : memref<1x1x256x8xf32, #tpu.memory_space<vmem>>, vector<1x1x256x8xf32>,
    return
  }
  func.func @transform_0(%arg0: i32, %arg1: i32) -> (i32, i32, i32, i32, i32) {
    %c0_i32 = arith.constant 0 : i32
    %c0_i32_0 = arith.constant 0 : i32
    %c0_i32_1 = arith.constant 0 : i32
    %c0_i32_2 = arith.constant 0 : i32
    return %arg0, %arg1, %c0_i32, %c0_i32_0, %c0_i32_1 : i32, i32, i32, i32, i32
  }
  func.func @transform_1(%arg0: i32, %arg1: i32) -> (i32, i32, i32) {
    %c0_i32 = arith.constant 0 : i32
    %c0_i32_0 = arith.constant 0 : i32
    %c0_i32_1 = arith.constant 0 : i32
    %c0_i32_2 = arith.constant 0 : i32
    return %c0_i32, %c0_i32_0, %c0_i32_1 : i32, i32, i32
  }
  func.func @transform_2(%arg0: i32, %arg1: i32) -> (i32, i32) {
    %c0_i32 = arith.constant 0 : i32
    %c0_i32_0 = arith.constant 0 : i32
    %c0_i32_1 = arith.constant 0 : i32
    return %c0_i32, %c0_i32_0 : i32, i32
  }
  func.func @transform_3(%arg0: i32, %arg1: i32) -> (i32, i32, i32, i32) {
    %c0_i32 = arith.constant 0 : i32
    %c0_i32_0 = arith.constant 0 : i32
    %c0_i32_1 = arith.constant 0 : i32
    return %arg0, %arg1, %c0_i32, %c0_i32_0 : i32, i32, i32, i32
  }
}

module attributes {stable_mosaic.version = 11 : i64} {
  func.func @_conv3_kernel(%arg0: i32, %arg1: i32, %arg2: memref<1x1x18x16x24xbf16, #tpu.memory_space<vmem>>, %arg3: memref<3x24x16xbf16, #tpu.memory_space<vmem>>, %arg4: memref<1x16xf32, #tpu.memory_space<vmem>>, %arg5: memref<1x1x256x16xf32, #tpu.memory_space<vmem>>) attributes {dimension_semantics = [#tpu.dimension_semantics<parallel>, #tpu.dimension_semantics<parallel>], iteration_bounds = array<i64: 2, 1>, scalar_prefetch = 0 : i64, scratch_operands = 0 : i64, tpu.core_type = #tpu.core_type<tc>, window_params = [{transform_indices = @transform_0, window_bounds = array<i64: 1, 1, 18, 16, 24>}, {pipeline_mode = #tpu.pipeline_mode<synchronous>, transform_indices = @transform_1, window_bounds = array<i64: 3, 24, 16>}, {pipeline_mode = #tpu.pipeline_mode<synchronous>, transform_indices = @transform_2, window_bounds = array<i64: 1, 16>}, {transform_indices = @transform_3, window_bounds = array<i64: 1, 1, 256, 16>}]} {
    %c0 = arith.constant 0 : index
    %c0_0 = arith.constant 0 : index
    %0 = vector.load %arg4[%c0, %c0_0] : memref<1x16xf32, #tpu.memory_space<vmem>>, vector<1x16xf32>
    %1 = vector.shape_cast %0 : vector<1x16xf32> to vector<1x16xf32>
    %2 = vector.broadcast %1 : vector<1x16xf32> to vector<256x16xf32>
    %c0_1 = arith.constant 0 : index
    %c0_2 = arith.constant 0 : index
    %c0_3 = arith.constant 0 : index
    %c0_4 = arith.constant 0 : index
    %c0_5 = arith.constant 0 : index
    %3 = vector.load %arg2[%c0_1, %c0_2, %c0_3, %c0_4, %c0_5] : memref<1x1x18x16x24xbf16, #tpu.memory_space<vmem>>, vector<1x1x16x16x24xbf16>
    %4 = vector.shape_cast %3 : vector<1x1x16x16x24xbf16> to vector<16x16x24xbf16>
    %5 = vector.shape_cast %4 : vector<16x16x24xbf16> to vector<256x24xbf16>
    %c0_6 = arith.constant 0 : index
    %c0_7 = arith.constant 0 : index
    %c0_8 = arith.constant 0 : index
    %6 = vector.load %arg3[%c0_6, %c0_7, %c0_8] : memref<3x24x16xbf16, #tpu.memory_space<vmem>>, vector<1x24x16xbf16>
    %7 = vector.shape_cast %6 : vector<1x24x16xbf16> to vector<24x16xbf16>
    %cst = arith.constant dense<0.000000e+00> : vector<256x16xf32>
    %8 = tpu.matmul %5, %7, %cst {dimension_numbers = #tpu.dot_dimension_numbers<[1], [0], [0], [1], [0, 0, 1, 1], [], []>} : vector<256x24xbf16>, vector<24x16xbf16>, vector<256x16xf32> -> vector<256x16xf32>
    %9 = arith.addf %2, %8 : vector<256x16xf32>
    %c0_9 = arith.constant 0 : index
    %c0_10 = arith.constant 0 : index
    %c1 = arith.constant 1 : index
    %c0_11 = arith.constant 0 : index
    %c0_12 = arith.constant 0 : index
    %10 = vector.load %arg2[%c0_9, %c0_10, %c1, %c0_11, %c0_12] : memref<1x1x18x16x24xbf16, #tpu.memory_space<vmem>>, vector<1x1x16x16x24xbf16>
    %11 = vector.shape_cast %10 : vector<1x1x16x16x24xbf16> to vector<16x16x24xbf16>
    %12 = vector.shape_cast %11 : vector<16x16x24xbf16> to vector<256x24xbf16>
    %c1_13 = arith.constant 1 : index
    %c0_14 = arith.constant 0 : index
    %c0_15 = arith.constant 0 : index
    %13 = vector.load %arg3[%c1_13, %c0_14, %c0_15] : memref<3x24x16xbf16, #tpu.memory_space<vmem>>, vector<1x24x16xbf16>
    %14 = vector.shape_cast %13 : vector<1x24x16xbf16> to vector<24x16xbf16>
    %cst_16 = arith.constant dense<0.000000e+00> : vector<256x16xf32>
    %15 = tpu.matmul %12, %14, %cst_16 {dimension_numbers = #tpu.dot_dimension_numbers<[1], [0], [0], [1], [0, 0, 1, 1], [], []>} : vector<256x24xbf16>, vector<24x16xbf16>, vector<256x16xf32> -> vector<256x16xf32>
    %16 = arith.addf %9, %15 : vector<256x16xf32>
    %c0_17 = arith.constant 0 : index
    %c0_18 = arith.constant 0 : index
    %c2 = arith.constant 2 : index
    %c0_19 = arith.constant 0 : index
    %c0_20 = arith.constant 0 : index
    %17 = vector.load %arg2[%c0_17, %c0_18, %c2, %c0_19, %c0_20] : memref<1x1x18x16x24xbf16, #tpu.memory_space<vmem>>, vector<1x1x16x16x24xbf16>
    %18 = vector.shape_cast %17 : vector<1x1x16x16x24xbf16> to vector<16x16x24xbf16>
    %19 = vector.shape_cast %18 : vector<16x16x24xbf16> to vector<256x24xbf16>
    %c2_21 = arith.constant 2 : index
    %c0_22 = arith.constant 0 : index
    %c0_23 = arith.constant 0 : index
    %20 = vector.load %arg3[%c2_21, %c0_22, %c0_23] : memref<3x24x16xbf16, #tpu.memory_space<vmem>>, vector<1x24x16xbf16>
    %21 = vector.shape_cast %20 : vector<1x24x16xbf16> to vector<24x16xbf16>
    %cst_24 = arith.constant dense<0.000000e+00> : vector<256x16xf32>
    %22 = tpu.matmul %19, %21, %cst_24 {dimension_numbers = #tpu.dot_dimension_numbers<[1], [0], [0], [1], [0, 0, 1, 1], [], []>} : vector<256x24xbf16>, vector<24x16xbf16>, vector<256x16xf32> -> vector<256x16xf32>
    %23 = arith.addf %16, %22 : vector<256x16xf32>
    %cst_25 = arith.constant 0.000000e+00 : f32
    %24 = vector.broadcast %cst_25 : f32 to vector<256x16xf32>
    %25 = arith.maximumf %23, %24 : vector<256x16xf32>
    %c0_26 = arith.constant 0 : index
    %c0_27 = arith.constant 0 : index
    %c0_28 = arith.constant 0 : index
    %c0_29 = arith.constant 0 : index
    %26 = vector.load %arg5[%c0_26, %c0_27, %c0_28, %c0_29] : memref<1x1x256x16xf32, #tpu.memory_space<vmem>>, vector<1x1x256x16xf32>
    %27 = vector.shape_cast %26 : vector<1x1x256x16xf32> to vector<256x16xf32>
    %28 = vector.shape_cast %25 : vector<256x16xf32> to vector<1x1x256x16xf32>
    tpu.vector_store %arg5[%c0_26, %c0_27, %c0_28, %c0_29], %28 {strides = array<i32>} : memref<1x1x256x16xf32, #tpu.memory_space<vmem>>, vector<1x1x256x16xf32>,
    return
  }
  func.func @transform_0(%arg0: i32, %arg1: i32) -> (i32, i32, i32, i32, i32) {
    %c0_i32 = arith.constant 0 : i32
    %c0_i32_0 = arith.constant 0 : i32
    %c0_i32_1 = arith.constant 0 : i32
    %c0_i32_2 = arith.constant 0 : i32
    return %arg0, %arg1, %c0_i32, %c0_i32_0, %c0_i32_1 : i32, i32, i32, i32, i32
  }
  func.func @transform_1(%arg0: i32, %arg1: i32) -> (i32, i32, i32) {
    %c0_i32 = arith.constant 0 : i32
    %c0_i32_0 = arith.constant 0 : i32
    %c0_i32_1 = arith.constant 0 : i32
    %c0_i32_2 = arith.constant 0 : i32
    return %c0_i32, %c0_i32_0, %c0_i32_1 : i32, i32, i32
  }
  func.func @transform_2(%arg0: i32, %arg1: i32) -> (i32, i32) {
    %c0_i32 = arith.constant 0 : i32
    %c0_i32_0 = arith.constant 0 : i32
    %c0_i32_1 = arith.constant 0 : i32
    return %c0_i32, %c0_i32_0 : i32, i32
  }
  func.func @transform_3(%arg0: i32, %arg1: i32) -> (i32, i32, i32, i32) {
    %c0_i32 = arith.constant 0 : i32
    %c0_i32_0 = arith.constant 0 : i32
    %c0_i32_1 = arith.constant 0 : i32
    return %arg0, %arg1, %c0_i32, %c0_i32_0 : i32, i32, i32, i32
  }
}

module attributes {stable_mosaic.version = 11 : i64} {
  func.func @_maxpool_kernel(%arg0: i32, %arg1: memref<16x2x8x32xf32, #tpu.memory_space<vmem>>, %arg2: memref<16x8x16xf32, #tpu.memory_space<vmem>>) attributes {dimension_semantics = [#tpu.dimension_semantics<parallel>], iteration_bounds = array<i64: 1>, scalar_prefetch = 0 : i64, scratch_operands = 0 : i64, tpu.core_type = #tpu.core_type<tc>, window_params = [{transform_indices = @transform_0, window_bounds = array<i64: 16, 2, 8, 32>}, {transform_indices = @transform_1, window_bounds = array<i64: 16, 8, 16>}]} {
    %c0 = arith.constant 0 : index
    %c0_0 = arith.constant 0 : index
    %c0_1 = arith.constant 0 : index
    %c0_2 = arith.constant 0 : index
    %0 = vector.load %arg1[%c0, %c0_0, %c0_1, %c0_2] : memref<16x2x8x32xf32, #tpu.memory_space<vmem>>, vector<16x2x8x32xf32>
    %1 = vector.extract_strided_slice %0 {offsets = [0, 0, 0, 0], sizes = [16, 1, 8, 32], strides = [1, 1, 1, 1]} : vector<16x2x8x32xf32> to vector<16x1x8x32xf32>
    %2 = vector.shape_cast %1 : vector<16x1x8x32xf32> to vector<16x8x32xf32>
    %3 = vector.extract_strided_slice %0 {offsets = [0, 1, 0, 0], sizes = [16, 1, 8, 32], strides = [1, 1, 1, 1]} : vector<16x2x8x32xf32> to vector<16x1x8x32xf32>
    %4 = vector.shape_cast %3 : vector<16x1x8x32xf32> to vector<16x8x32xf32>
    %5 = arith.maximumf %2, %4 : vector<16x8x32xf32>
    %6 = vector.extract_strided_slice %5 {offsets = [0, 0, 0], sizes = [16, 8, 16], strides = [1, 1, 1]} : vector<16x8x32xf32> to vector<16x8x16xf32>
    %7 = vector.extract_strided_slice %5 {offsets = [0, 0, 16], sizes = [16, 8, 16], strides = [1, 1, 1]} : vector<16x8x32xf32> to vector<16x8x16xf32>
    %8 = arith.maximumf %6, %7 : vector<16x8x16xf32>
    %c0_3 = arith.constant 0 : index
    %c0_4 = arith.constant 0 : index
    %c0_5 = arith.constant 0 : index
    %9 = vector.load %arg2[%c0_3, %c0_4, %c0_5] : memref<16x8x16xf32, #tpu.memory_space<vmem>>, vector<16x8x16xf32>
    tpu.vector_store %arg2[%c0_3, %c0_4, %c0_5], %8 {strides = array<i32>} : memref<16x8x16xf32, #tpu.memory_space<vmem>>, vector<16x8x16xf32>,
    return
  }
  func.func @transform_0(%arg0: i32) -> (i32, i32, i32, i32) {
    %c0_i32 = arith.constant 0 : i32
    %c0_i32_0 = arith.constant 0 : i32
    %c0_i32_1 = arith.constant 0 : i32
    %c0_i32_2 = arith.constant 0 : i32
    return %arg0, %c0_i32, %c0_i32_0, %c0_i32_1 : i32, i32, i32, i32
  }
  func.func @transform_1(%arg0: i32) -> (i32, i32, i32) {
    %c0_i32 = arith.constant 0 : i32
    %c0_i32_0 = arith.constant 0 : i32
    %c0_i32_1 = arith.constant 0 : i32
    return %arg0, %c0_i32, %c0_i32_0 : i32, i32, i32
  }
}

module attributes {stable_mosaic.version = 11 : i64} {
  func.func @_conv3_kernel(%arg0: i32, %arg1: i32, %arg2: memref<1x1x10x8x48xbf16, #tpu.memory_space<vmem>>, %arg3: memref<3x48x16xbf16, #tpu.memory_space<vmem>>, %arg4: memref<1x16xf32, #tpu.memory_space<vmem>>, %arg5: memref<1x1x64x16xf32, #tpu.memory_space<vmem>>) attributes {dimension_semantics = [#tpu.dimension_semantics<parallel>, #tpu.dimension_semantics<parallel>], iteration_bounds = array<i64: 2, 1>, scalar_prefetch = 0 : i64, scratch_operands = 0 : i64, tpu.core_type = #tpu.core_type<tc>, window_params = [{transform_indices = @transform_0, window_bounds = array<i64: 1, 1, 10, 8, 48>}, {pipeline_mode = #tpu.pipeline_mode<synchronous>, transform_indices = @transform_1, window_bounds = array<i64: 3, 48, 16>}, {pipeline_mode = #tpu.pipeline_mode<synchronous>, transform_indices = @transform_2, window_bounds = array<i64: 1, 16>}, {transform_indices = @transform_3, window_bounds = array<i64: 1, 1, 64, 16>}]} {
    %c0 = arith.constant 0 : index
    %c0_0 = arith.constant 0 : index
    %0 = vector.load %arg4[%c0, %c0_0] : memref<1x16xf32, #tpu.memory_space<vmem>>, vector<1x16xf32>
    %1 = vector.shape_cast %0 : vector<1x16xf32> to vector<1x16xf32>
    %2 = vector.broadcast %1 : vector<1x16xf32> to vector<64x16xf32>
    %c0_1 = arith.constant 0 : index
    %c0_2 = arith.constant 0 : index
    %c0_3 = arith.constant 0 : index
    %c0_4 = arith.constant 0 : index
    %c0_5 = arith.constant 0 : index
    %3 = vector.load %arg2[%c0_1, %c0_2, %c0_3, %c0_4, %c0_5] : memref<1x1x10x8x48xbf16, #tpu.memory_space<vmem>>, vector<1x1x8x8x48xbf16>
    %4 = vector.shape_cast %3 : vector<1x1x8x8x48xbf16> to vector<8x8x48xbf16>
    %5 = vector.shape_cast %4 : vector<8x8x48xbf16> to vector<64x48xbf16>
    %c0_6 = arith.constant 0 : index
    %c0_7 = arith.constant 0 : index
    %c0_8 = arith.constant 0 : index
    %6 = vector.load %arg3[%c0_6, %c0_7, %c0_8] : memref<3x48x16xbf16, #tpu.memory_space<vmem>>, vector<1x48x16xbf16>
    %7 = vector.shape_cast %6 : vector<1x48x16xbf16> to vector<48x16xbf16>
    %cst = arith.constant dense<0.000000e+00> : vector<64x16xf32>
    %8 = tpu.matmul %5, %7, %cst {dimension_numbers = #tpu.dot_dimension_numbers<[1], [0], [0], [1], [0, 0, 1, 1], [], []>} : vector<64x48xbf16>, vector<48x16xbf16>, vector<64x16xf32> -> vector<64x16xf32>
    %9 = arith.addf %2, %8 : vector<64x16xf32>
    %c0_9 = arith.constant 0 : index
    %c0_10 = arith.constant 0 : index
    %c1 = arith.constant 1 : index
    %c0_11 = arith.constant 0 : index
    %c0_12 = arith.constant 0 : index
    %10 = vector.load %arg2[%c0_9, %c0_10, %c1, %c0_11, %c0_12] : memref<1x1x10x8x48xbf16, #tpu.memory_space<vmem>>, vector<1x1x8x8x48xbf16>
    %11 = vector.shape_cast %10 : vector<1x1x8x8x48xbf16> to vector<8x8x48xbf16>
    %12 = vector.shape_cast %11 : vector<8x8x48xbf16> to vector<64x48xbf16>
    %c1_13 = arith.constant 1 : index
    %c0_14 = arith.constant 0 : index
    %c0_15 = arith.constant 0 : index
    %13 = vector.load %arg3[%c1_13, %c0_14, %c0_15] : memref<3x48x16xbf16, #tpu.memory_space<vmem>>, vector<1x48x16xbf16>
    %14 = vector.shape_cast %13 : vector<1x48x16xbf16> to vector<48x16xbf16>
    %cst_16 = arith.constant dense<0.000000e+00> : vector<64x16xf32>
    %15 = tpu.matmul %12, %14, %cst_16 {dimension_numbers = #tpu.dot_dimension_numbers<[1], [0], [0], [1], [0, 0, 1, 1], [], []>} : vector<64x48xbf16>, vector<48x16xbf16>, vector<64x16xf32> -> vector<64x16xf32>
    %16 = arith.addf %9, %15 : vector<64x16xf32>
    %c0_17 = arith.constant 0 : index
    %c0_18 = arith.constant 0 : index
    %c2 = arith.constant 2 : index
    %c0_19 = arith.constant 0 : index
    %c0_20 = arith.constant 0 : index
    %17 = vector.load %arg2[%c0_17, %c0_18, %c2, %c0_19, %c0_20] : memref<1x1x10x8x48xbf16, #tpu.memory_space<vmem>>, vector<1x1x8x8x48xbf16>
    %18 = vector.shape_cast %17 : vector<1x1x8x8x48xbf16> to vector<8x8x48xbf16>
    %19 = vector.shape_cast %18 : vector<8x8x48xbf16> to vector<64x48xbf16>
    %c2_21 = arith.constant 2 : index
    %c0_22 = arith.constant 0 : index
    %c0_23 = arith.constant 0 : index
    %20 = vector.load %arg3[%c2_21, %c0_22, %c0_23] : memref<3x48x16xbf16, #tpu.memory_space<vmem>>, vector<1x48x16xbf16>
    %21 = vector.shape_cast %20 : vector<1x48x16xbf16> to vector<48x16xbf16>
    %cst_24 = arith.constant dense<0.000000e+00> : vector<64x16xf32>
    %22 = tpu.matmul %19, %21, %cst_24 {dimension_numbers = #tpu.dot_dimension_numbers<[1], [0], [0], [1], [0, 0, 1, 1], [], []>} : vector<64x48xbf16>, vector<48x16xbf16>, vector<64x16xf32> -> vector<64x16xf32>
    %23 = arith.addf %16, %22 : vector<64x16xf32>
    %cst_25 = arith.constant 0.000000e+00 : f32
    %24 = vector.broadcast %cst_25 : f32 to vector<64x16xf32>
    %25 = arith.maximumf %23, %24 : vector<64x16xf32>
    %c0_26 = arith.constant 0 : index
    %c0_27 = arith.constant 0 : index
    %c0_28 = arith.constant 0 : index
    %c0_29 = arith.constant 0 : index
    %26 = vector.load %arg5[%c0_26, %c0_27, %c0_28, %c0_29] : memref<1x1x64x16xf32, #tpu.memory_space<vmem>>, vector<1x1x64x16xf32>
    %27 = vector.shape_cast %26 : vector<1x1x64x16xf32> to vector<64x16xf32>
    %28 = vector.shape_cast %25 : vector<64x16xf32> to vector<1x1x64x16xf32>
    tpu.vector_store %arg5[%c0_26, %c0_27, %c0_28, %c0_29], %28 {strides = array<i32>} : memref<1x1x64x16xf32, #tpu.memory_space<vmem>>, vector<1x1x64x16xf32>,
    return
  }
  func.func @transform_0(%arg0: i32, %arg1: i32) -> (i32, i32, i32, i32, i32) {
    %c0_i32 = arith.constant 0 : i32
    %c0_i32_0 = arith.constant 0 : i32
    %c0_i32_1 = arith.constant 0 : i32
    %c0_i32_2 = arith.constant 0 : i32
    return %arg0, %arg1, %c0_i32, %c0_i32_0, %c0_i32_1 : i32, i32, i32, i32, i32
  }
  func.func @transform_1(%arg0: i32, %arg1: i32) -> (i32, i32, i32) {
    %c0_i32 = arith.constant 0 : i32
    %c0_i32_0 = arith.constant 0 : i32
    %c0_i32_1 = arith.constant 0 : i32
    %c0_i32_2 = arith.constant 0 : i32
    return %c0_i32, %c0_i32_0, %c0_i32_1 : i32, i32, i32
  }
  func.func @transform_2(%arg0: i32, %arg1: i32) -> (i32, i32) {
    %c0_i32 = arith.constant 0 : i32
    %c0_i32_0 = arith.constant 0 : i32
    %c0_i32_1 = arith.constant 0 : i32
    return %c0_i32, %c0_i32_0 : i32, i32
  }
  func.func @transform_3(%arg0: i32, %arg1: i32) -> (i32, i32, i32, i32) {
    %c0_i32 = arith.constant 0 : i32
    %c0_i32_0 = arith.constant 0 : i32
    %c0_i32_1 = arith.constant 0 : i32
    return %arg0, %arg1, %c0_i32, %c0_i32_0 : i32, i32, i32, i32
  }
}

</mosaic_0001>

<llo_original>
// kernel: _lambda_.4
$region0: #{_lambda_.4}
  #allocation0 [shape = 'u32[]', space=smem, size = 0x4, offset = 0x4, fixed_abs, tag = 'smem constant byte address 0x4 - core index']
  #allocation1 [shape = 'u32[144,128]{1,0:T(1,128)}', space=vmem, size = 0x12000, scoped, tag = 'internal scratch']
  %s0 = inlined_call_operand.vmem [shape: bf16[2,1,18,16,9], index: 0, kind: input, shape index: {}]
  %s1 = inlined_call_operand.vmem [shape: bf16[3,9,8], index: 1, kind: input, shape index: {}]
  %s2 = inlined_call_operand.vmem [shape: f32[1,8], index: 2, kind: input, shape index: {}]
  %s3 = inlined_call_operand.vmem [shape: f32[2,1,256,8], index: 3, kind: output, shape index: {}]
  %s4 = sld [smem:[#allocation0]]
  $region45: #{_lambda_.4} parent=0
    _
  %s6 = ssub.s32 1, %s4
  %s7 = scalar_select 0, %s6, %s4
  loop: start=0, step=1, limit=4
  $region2: #{_lambda_.4} parent=0 // loop_pre_header
    _
  $region3: #{_lambda_.4} parent=0 // loop_header
    %s9 = sphi 0, %s13
    %p10 = scmp.ge.s32.totalorder %s9, 4
    %s16 = sphi 0, %s28
    %s17 = sphi 0, %s24
    %s18 = sphi 0, %s16
    %s19 = sphi 0, %s17
    %s20 = sphi 0, %s18
    %s21 = sphi 0, %s19
    %s33 = sphi 0, %s35
    %s36 = sphi 0, %s33
    %s37 = sphi 0, %s36
    %s53 = sphi 0, %s37
    %s57 = sphi 0, %s57
    %s59 = sphi 0, %s57
    %s60 = sphi 0, %s59
    %s74 = sphi 0, %s60
    %s78 = sphi 0, %s78
    %s80 = sphi 0, %s78
    %s81 = sphi 0, %s80
    %s95 = sphi 0, %s81
    %s103 = sphi 0, %s105
    %s106 = sphi 0, %s103
    %s107 = sphi 0, %s106
    %s123 = sphi 0, %s107
  $region4: #{_lambda_.4} parent=0 // loop_header_branch
    %12 = sbr.rel (%p10) target = $region8
  $region5: #{_lambda_.4} parent=0 // loop_body
    %s14 = ssub.s32 %s9, 1
    %s15 = ssub.s32 %s9, 2
    %s22 = sadd.s32 1, %s17
    %p23 = scmp.ge.s32.totalorder %s22, 1
    %s24 = scalar_select %p23, 0, %s22
    %s25 = sadd.s32 1, %s16
    %s26 = scalar_select %p23, %s25, %s16
    %p27 = scmp.ge.s32.totalorder %s26, 2
    %s28 = scalar_select %p27, 0, %s26
    %s29 = ssub.s32 %s16, %s28
    %s30 = ssub.s32 %s17, %s24
    %s31 = sor.u32 %s29, %s30
    %p32 = scmp.eq.s32.totalorder %s31, 0
    %s34 = sadd.s32 %s33, 1
    %s35 = scalar_select %p32, %s33, %s34
    %p38 = pneg %p32
    %p39 = scmp.eq.s32.totalorder %s9, 1
    %p40 = por %p38, %p39
    %p41 = scmp.ne.s32.totalorder %s33, %s36
    %p42 = scmp.eq.s32.totalorder %s9, 0
    %p43 = por %p41, %p42
    %p44 = scmp.ne.s32.totalorder %s33, %s36
    %p45 = scmp.eq.s32.totalorder %s14, 1
    %p46 = por %p44, %p45
    %p47 = scmp.ne.s32.totalorder %s36, %s37
    %p48 = scmp.eq.s32.totalorder %s14, 0
    %p49 = por %p47, %p48
    %p50 = scmp.ne.s32.totalorder %s36, %s37
    %p51 = scmp.eq.s32.totalorder %s15, 1
    %p52 = por %p50, %p51
    %p54 = scmp.ne.s32.totalorder %s37, %s53
    %p55 = scmp.eq.s32.totalorder %s15, 0
    %p56 = por %p54, %p55
    %s58 = sadd.s32 %s57, 1
    %p61 = scmp.eq.s32.totalorder %s9, 1
    %p62 = scmp.ne.s32.totalorder %s57, %s59
    %p63 = scmp.eq.s32.totalorder %s9, 0
    %p64 = por %p62, %p63
    %p65 = scmp.ne.s32.totalorder %s57, %s59
    %p66 = scmp.eq.s32.totalorder %s14, 1
    %p67 = por %p65, %p66
    %p68 = scmp.ne.s32.totalorder %s59, %s60
    %p69 = scmp.eq.s32.totalorder %s14, 0
    %p70 = por %p68, %p69
    %p71 = scmp.ne.s32.totalorder %s59, %s60
    %p72 = scmp.eq.s32.totalorder %s15, 1
    %p73 = por %p71, %p72
    %p75 = scmp.ne.s32.totalorder %s60, %s74
    %p76 = scmp.eq.s32.totalorder %s15, 0
    %p77 = por %p75, %p76
    %s79 = sadd.s32 %s78, 1
    %p82 = scmp.eq.s32.totalorder %s9, 1
    %p83 = scmp.ne.s32.totalorder %s78, %s80
    %p84 = scmp.eq.s32.totalorder %s9, 0
    %p85 = por %p83, %p84
    %p86 = scmp.ne.s32.totalorder %s78, %s80
    %p87 = scmp.eq.s32.totalorder %s14, 1
    %p88 = por %p86, %p87
    %p89 = scmp.ne.s32.totalorder %s80, %s81
    %p90 = scmp.eq.s32.totalorder %s14, 0
    %p91 = por %p89, %p90
    %p92 = scmp.ne.s32.totalorder %s80, %s81
    %p93 = scmp.eq.s32.totalorder %s15, 1
    %p94 = por %p92, %p93
    %p96 = scmp.ne.s32.totalorder %s81, %s95
    %p97 = scmp.eq.s32.totalorder %s15, 0
    %p98 = por %p96, %p97
    %s99 = ssub.s32 %s16, %s28
    %s100 = ssub.s32 %s17, %s24
    %s101 = sor.u32 %s99, %s100
    %p102 = scmp.eq.s32.totalorder %s101, 0
    %s104 = sadd.s32 %s103, 1
    %s105 = scalar_select %p102, %s103, %s104
    %p108 = pneg %p102
    %p109 = scmp.eq.s32.totalorder %s9, 1
    %p110 = por %p108, %p109
    %p111 = scmp.ne.s32.totalorder %s103, %s106
    %p112 = scmp.eq.s32.totalorder %s9, 0
    %p113 = por %p111, %p112
    %p114 = scmp.ne.s32.totalorder %s103, %s106
    %p115 = scmp.eq.s32.totalorder %s14, 1
    %p116 = por %p114, %p115
    %p117 = scmp.ne.s32.totalorder %s106, %s107
    %p118 = scmp.eq.s32.totalorder %s14, 0
    %p119 = por %p117, %p118
    %p120 = scmp.ne.s32.totalorder %s106, %s107
    %p121 = scmp.eq.s32.totalorder %s15, 1
    %p122 = por %p120, %p121
    %p124 = scmp.ne.s32.totalorder %s107, %s123
    %p125 = scmp.eq.s32.totalorder %s15, 0
    %p126 = por %p124, %p125
    %p127 = scmp.le.s32.totalorder 1, %s9
    %p128 = scmp.lt.s32.totalorder %s9, 3
    %p129 = pnand %p127, %p128
    %p130 = pneg %p129
    // Predicated region
    $region9: #{_lambda_.4} parent=5 // pred_check
      _
    $region10: #{_lambda_.4} parent=5 // pred_check_branch
      %132 = sbr.rel (%p129) target = $region12
    $region11: #{_lambda_.4} parent=5 // pred_region
      %s133 = ssub.s32 %s9, 1
      // Predicated region
      $region13: #{_lambda_.4} parent=11 // pred_check
        %p134 = pneg %p70
      $region14: #{_lambda_.4} parent=11 // pred_check_branch
        %136 = sbr.rel (%p134) target = $region16
      $region15: #{_lambda_.4} parent=11 // pred_region
        _
      $region16: #{_lambda_.4} parent=11 // pred_fallthru
        _
      // Predicated region
      $region17: #{_lambda_.4} parent=11 // pred_check
        %p137 = pneg %p91
      $region18: #{_lambda_.4} parent=11 // pred_check_branch
        %139 = sbr.rel (%p137) target = $region20
      $region19: #{_lambda_.4} parent=11 // pred_region
        _
      $region20: #{_lambda_.4} parent=11 // pred_fallthru
        _
    $region12: #{_lambda_.4} parent=5 // pred_fallthru
      _
    %p140 = scmp.lt.s32.totalorder %s9, 2
    // Predicated region
    $region21: #{_lambda_.4} parent=5 // pred_check
      %p141 = pneg %p140
    $region22: #{_lambda_.4} parent=5 // pred_check_branch
      %143 = sbr.rel (%p141) target = $region24
    $region23: #{_lambda_.4} parent=5 // pred_region
      // Predicated region
      $region25: #{_lambda_.4} parent=23 // pred_check
        %p144 = pneg %p43
      $region26: #{_lambda_.4} parent=23 // pred_check_branch
        %146 = sbr.rel (%p144) target = $region28
      $region27: #{_lambda_.4} parent=23 // pred_region
        %p147 = scmp.lt.s32.totalorder %s16, 1
        %s148 = scalar_select %p147, %s16, 1
        %p149 = scmp.lt.s32.totalorder %s17, 0
        %s150 = scalar_select %p149, %s17, 0
        %s151 = smul.addr %s150, 36
        %s152 = smul.addr %s148, 36
        %s153 = sadd.s32 %s151, %s152
        %s154 = smul.addr %s153, 4
        %s155 = scalar_lea.vmem %s0, %s154
      $region28: #{_lambda_.4} parent=23 // pred_fallthru
        _
    $region24: #{_lambda_.4} parent=5 // pred_fallthru
      _
    %p156 = scmp.le.s32.totalorder 1, %s9
    %p157 = scmp.lt.s32.totalorder %s9, 3
    %p158 = pnand %p156, %p157
    %p159 = pneg %p158
    // Predicated region
    $region29: #{_lambda_.4} parent=5 // pred_check
      _
    $region30: #{_lambda_.4} parent=5 // pred_check_branch
      %161 = sbr.rel (%p158) target = $region32
    $region31: #{_lambda_.4} parent=5 // pred_region
      %s162 = ssub.s32 %s9, 1
      %p163 = scmp.lt.s32.totalorder %s18, 1
      %s164 = scalar_select %p163, %s18, 1
      %p165 = scmp.lt.s32.totalorder %s19, 0
      %s166 = scalar_select %p165, %s19, 0
      %s167 = smul.addr %s166, 36
      %s168 = smul.addr %s164, 36
      %s169 = sadd.s32 %s167, %s168
      %s170 = smul.addr %s169, 4
      %s171 = scalar_lea.vmem %s0, %s170
      %p172 = pneg %p49
      %p173 = pneg %p46
      %p174 = pneg %p70
      %p175 = pneg %p67
      %p176 = pneg %p91
      %p177 = pneg %p88
      %p178 = pneg %p119
      %p179 = pneg %p116
      %p180 = scmp.lt.s32.totalorder %s18, 1
      %s181 = scalar_select %p180, %s18, 1
      %p182 = scmp.lt.s32.totalorder %s19, 0
      %s183 = scalar_select %p182, %s19, 0
      %s184 = smul.addr %s183, 32
      %s185 = smul.addr %s181, 32
      %s186 = sadd.s32 %s184, %s185
      %s187 = smul.addr %s186, 8
      %s188 = scalar_lea.vmem %s3, %s187
      %p189 = scmp.lt.s32.totalorder %s18, 1
      %s190 = scalar_select %p189, %s18, 1
      %p191 = scmp.lt.s32.totalorder %s19, 0
      %s192 = scalar_select %p191, %s19, 0
      %s193 = smul.addr %s192, 36
      %s194 = smul.addr %s190, 36
      %s195 = sadd.s32 %s193, %s194
      %s196 = smul.addr %s195, 4
      %s197 = scalar_lea.vmem %s0, %s196
      %p198 = scmp.lt.s32.totalorder %s18, 1
      %s199 = scalar_select %p198, %s18, 1
      %p200 = scmp.lt.s32.totalorder %s19, 0
      %s201 = scalar_select %p200, %s19, 0
      %s202 = smul.addr %s201, 32
      %s203 = smul.addr %s199, 32
      %s204 = sadd.s32 %s202, %s203
      %s205 = smul.addr %s204, 8
      %s206 = scalar_lea.vmem %s3, %s205
      %v208 = vld [vmem:[%s2] sm:$0x1]
      %v210 = vlaneseq
      %v211 = vshrl.u32 %v210, 7
      %v212 = vsub.s32 0, %v211
      %v213 = vrot.slane %v208, %v212
      %v215 = vld [vmem:[%s197] sm:$0xf]
      %v216 = vld [vmem:[%s197 + $0x4] sm:$0xf]
      %v217 = vld [vmem:[%s197 + $0x8] sm:$0xf]
      %v218 = vld [vmem:[%s197 + $0xc] sm:$0xf]
      %v219 = vld [vmem:[%s197 + $0x10] sm:$0xf]
      %v220 = vld [vmem:[%s197 + $0x14] sm:$0xf]
      %v221 = vld [vmem:[%s197 + $0x18] sm:$0xf]
      %v222 = vld [vmem:[%s197 + $0x1c] sm:$0xf]
      %v223 = vld [vmem:[%s197 + $0x20] sm:$0xf]
      %v224 = vld [vmem:[%s197 + $0x24] sm:$0xf]
      %v225 = vld [vmem:[%s197 + $0x28] sm:$0xf]
      %v226 = vld [vmem:[%s197 + $0x2c] sm:$0xf]
      %v227 = vld [vmem:[%s197 + $0x30] sm:$0xf]
      %v228 = vld [vmem:[%s197 + $0x34] sm:$0xf]
      %v229 = vld [vmem:[%s197 + $0x38] sm:$0xf]
      %v230 = vld [vmem:[%s197 + $0x3c] sm:$0xf]
      %v231 = vld [vmem:[%s197 + $0x40] sm:$0xf]
      %v232 = vld [vmem:[%s197 + $0x44] sm:$0xf]
      %v233 = vld [vmem:[%s197 + $0x48] sm:$0xf]
      %v234 = vld [vmem:[%s197 + $0x4c] sm:$0xf]
      %v235 = vld [vmem:[%s197 + $0x50] sm:$0xf]
      %v236 = vld [vmem:[%s197 + $0x54] sm:$0xf]
      %v237 = vld [vmem:[%s197 + $0x58] sm:$0xf]
      %v238 = vld [vmem:[%s197 + $0x5c] sm:$0xf]
      %v239 = vld [vmem:[%s197 + $0x60] sm:$0xf]
      %v240 = vld [vmem:[%s197 + $0x64] sm:$0xf]
      %v241 = vld [vmem:[%s197 + $0x68] sm:$0xf]
      %v242 = vld [vmem:[%s197 + $0x6c] sm:$0xf]
      %v243 = vld [vmem:[%s197 + $0x70] sm:$0xf]
      %v244 = vld [vmem:[%s197 + $0x74] sm:$0xf]
      %v245 = vld [vmem:[%s197 + $0x78] sm:$0xf]
      %v246 = vld [vmem:[%s197 + $0x7c] sm:$0xf]
      %v247 = vld [vmem:[%s1] sm:$0xf]
      %v248 = vld [vmem:[%s1 + $0x4] sm:$0x1]
      %v281 = vunpack.c.l.b16 %v215
      %v282 = vunpack.c.l.b16 %v216
      %v283 = vunpack.c.l.b16 %v217
      %v284 = vunpack.c.l.b16 %v218
      %v285 = vunpack.c.l.b16 %v219
      %v286 = vunpack.c.l.b16 %v220
      %v287 = vunpack.c.l.b16 %v221
      %v288 = vunpack.c.l.b16 %v222
      %v289 = vunpack.c.l.b16 %v223
      %v290 = vunpack.c.l.b16 %v224
      %v291 = vunpack.c.l.b16 %v225
      %v292 = vunpack.c.l.b16 %v226
      %v293 = vunpack.c.l.b16 %v227
      %v294 = vunpack.c.l.b16 %v228
      %v295 = vunpack.c.l.b16 %v229
      %v296 = vunpack.c.l.b16 %v230
      %v297 = vunpack.c.l.b16 %v231
      %v298 = vunpack.c.l.b16 %v232
      %v299 = vunpack.c.l.b16 %v233
      %v300 = vunpack.c.l.b16 %v234
      %v301 = vunpack.c.l.b16 %v235
      %v302 = vunpack.c.l.b16 %v236
      %v303 = vunpack.c.l.b16 %v237
      %v304 = vunpack.c.l.b16 %v238
      %v305 = vunpack.c.l.b16 %v239
      %v306 = vunpack.c.l.b16 %v240
      %v307 = vunpack.c.l.b16 %v241
      %v308 = vunpack.c.l.b16 %v242
      %v309 = vunpack.c.l.b16 %v243
      %v310 = vunpack.c.l.b16 %v244
      %v311 = vunpack.c.l.b16 %v245
      %v312 = vunpack.c.l.b16 %v246
      %v313 = vpack.c.b16 %v282, %v281
      %v314 = vpack.c.b16 %v284, %v283
      %v315 = vpack.c.b16 %v286, %v285
      %v316 = vpack.c.b16 %v288, %v287
      %v317 = vpack.c.b16 %v290, %v289
      %v318 = vpack.c.b16 %v292, %v291
      %v319 = vpack.c.b16 %v294, %v293
      %v320 = vpack.c.b16 %v296, %v295
      %v321 = vpack.c.b16 %v298, %v297
      %v322 = vpack.c.b16 %v300, %v299
      %v323 = vpack.c.b16 %v302, %v301
      %v324 = vpack.c.b16 %v304, %v303
      %v325 = vpack.c.b16 %v306, %v305
      %v326 = vpack.c.b16 %v308, %v307
      %v327 = vpack.c.b16 %v310, %v309
      %v328 = vpack.c.b16 %v312, %v311
      %v331 = vunpack.c.l.b16 %v247
      %v332 = vunpack.c.l.b16 %v248
      %v333 = vpack.c.b16 %v332, %v331
      %vm334 = vcmask 72704
      %v336 = vsel %vm334, %v313, 0
      %v339 = vsel %vm334, %v314, 0
      %v342 = vsel %vm334, %v315, 0
      %v345 = vsel %vm334, %v316, 0
      %v348 = vsel %vm334, %v317, 0
      %v351 = vsel %vm334, %v318, 0
      %v354 = vsel %vm334, %v319, 0
      %v357 = vsel %vm334, %v320, 0
      %v360 = vsel %vm334, %v321, 0
      %v363 = vsel %vm334, %v322, 0
      %v366 = vsel %vm334, %v323, 0
      %v369 = vsel %vm334, %v324, 0
      %v372 = vsel %vm334, %v325, 0
      %v375 = vsel %vm334, %v326, 0
      %v378 = vsel %vm334, %v327, 0
      %v381 = vsel %vm334, %v328, 0
      %vm383 = vcmask 1043456
      %vm384 = vcmask 1044480
      %v385 = vsel %vm383, 4294967295, 65535
      %v386 = vsel %vm384, %v385, 0
      %v388 = vand.u32 %v333, %v386
      %390 = vmatprep.subr.bf16.mxu0 0
      %391 = vmatpush1.bf16.msra.mxu0 0
      %392 = vmatprep.subr.bf16.mxu0 0
      %393 = vmatpush1.bf16.msra.mxu0 0
      %394 = vmatprep.subr.bf16.mxu0 0
      %395 = vmatpush1.bf16.msra.mxu0 0
      %396 = vmatprep.subr.bf16.mxu0 0
      %397 = vmatpush1.bf16.msra.mxu0 0
      %398 = vmatprep.subr.bf16.mxu0 0
      %399 = vmatpush1.bf16.msra.mxu0 0
      %400 = vmatprep.subr.bf16.mxu0 0
      %401 = vmatpush1.bf16.msra.mxu0 0
      %402 = vmatprep.subr.bf16.mxu0 0
      %403 = vmatpush1.bf16.msra.mxu0 0
      %404 = vmatprep.subr.bf16.mxu0 0
      %405 = vmatpush1.bf16.msra.mxu0 %v388
      %406 = vmatprep.subr.bf16.mxu0 0
      %407 = vmatpush2.bf16.msra.mxu0 0
      %408 = vmatprep.subr.bf16.mxu0 0
      %409 = vmatpush2.bf16.msra.mxu0 0
      %410 = vmatprep.subr.bf16.mxu0 0
      %411 = vmatpush2.bf16.msra.mxu0 0
      %412 = vmatprep.subr.bf16.mxu0 0
      %413 = vmatpush2.bf16.msra.mxu0 0
      %414 = vmatprep.subr.bf16.mxu0 0
      %415 = vmatpush2.bf16.msra.mxu0 0
      %416 = vmatprep.subr.bf16.mxu0 0
      %417 = vmatpush2.bf16.msra.mxu0 0
      %418 = vmatprep.subr.bf16.mxu0 0
      %419 = vmatpush2.bf16.msra.mxu0 0
      %420 = vmatprep.subr.bf16.mxu0 0
      %421 = vmatpush2.bf16.msra.mxu0 0
      %422 = vmatprep.mubr.bf16.mxu0 0
      %423 = vmatmul.mubr.bf16.gmra.mxu0 %v336
      %v424 = vpop.f32.mrf.mxu0
      %v425 = vadd.f32 0.0, %v424
      %v426 = vpop.f32.mrf.mxu0
      %v427 = vpop.f32.mrf.mxu0
      %v428 = vadd.f32 0.0, %v427
      %v429 = vpop.f32.mrf.mxu0
      %430 = vmatprep.mubr.bf16.mxu0 0
      %431 = vmatmul.mubr.bf16.gmra.mxu0 %v339
      %v432 = vpop.f32.mrf.mxu0
      %v433 = vadd.f32 0.0, %v432
      %v434 = vpop.f32.mrf.mxu0
      %v435 = vpop.f32.mrf.mxu0
      %v436 = vadd.f32 0.0, %v435
      %v437 = vpop.f32.mrf.mxu0
      %438 = vmatprep.mubr.bf16.mxu0 0
      %439 = vmatmul.mubr.bf16.gmra.mxu0 %v342
      %v440 = vpop.f32.mrf.mxu0
      %v441 = vadd.f32 0.0, %v440
      %v442 = vpop.f32.mrf.mxu0
      %v443 = vpop.f32.mrf.mxu0
      %v444 = vadd.f32 0.0, %v443
      %v445 = vpop.f32.mrf.mxu0
      %446 = vmatprep.mubr.bf16.mxu0 0
      %447 = vmatmul.mubr.bf16.gmra.mxu0 %v345
      %v448 = vpop.f32.mrf.mxu0
      %v449 = vadd.f32 0.0, %v448
      %v450 = vpop.f32.mrf.mxu0
      %v451 = vpop.f32.mrf.mxu0
      %v452 = vadd.f32 0.0, %v451
      %v453 = vpop.f32.mrf.mxu0
      %454 = vmatprep.mubr.bf16.mxu0 0
      %455 = vmatmul.mubr.bf16.gmra.mxu0 %v348
      %v456 = vpop.f32.mrf.mxu0
      %v457 = vadd.f32 0.0, %v456
      %v458 = vpop.f32.mrf.mxu0
      %v459 = vpop.f32.mrf.mxu0
      %v460 = vadd.f32 0.0, %v459
      %v461 = vpop.f32.mrf.mxu0
      %462 = vmatprep.mubr.bf16.mxu0 0
      %463 = vmatmul.mubr.bf16.gmra.mxu0 %v351
      %v464 = vpop.f32.mrf.mxu0
      %v465 = vadd.f32 0.0, %v464
      %v466 = vpop.f32.mrf.mxu0
      %v467 = vpop.f32.mrf.mxu0
      %v468 = vadd.f32 0.0, %v467
      %v469 = vpop.f32.mrf.mxu0
      %470 = vmatprep.mubr.bf16.mxu0 0
      %471 = vmatmul.mubr.bf16.gmra.mxu0 %v354
      %v472 = vpop.f32.mrf.mxu0
      %v473 = vadd.f32 0.0, %v472
      %v474 = vpop.f32.mrf.mxu0
      %v475 = vpop.f32.mrf.mxu0
      %v476 = vadd.f32 0.0, %v475
      %v477 = vpop.f32.mrf.mxu0
      %478 = vmatprep.mubr.bf16.mxu0 0
      %479 = vmatmul.mubr.bf16.gmra.mxu0 %v357
      %v480 = vpop.f32.mrf.mxu0
      %v481 = vadd.f32 0.0, %v480
      %v482 = vpop.f32.mrf.mxu0
      %v483 = vpop.f32.mrf.mxu0
      %v484 = vadd.f32 0.0, %v483
      %v485 = vpop.f32.mrf.mxu0
      %486 = vmatprep.mubr.bf16.mxu0 0
      %487 = vmatmul.mubr.bf16.gmra.mxu0 %v360
      %v488 = vpop.f32.mrf.mxu0
      %v489 = vadd.f32 0.0, %v488
      %v490 = vpop.f32.mrf.mxu0
      %v491 = vpop.f32.mrf.mxu0
      %v492 = vadd.f32 0.0, %v491
      %v493 = vpop.f32.mrf.mxu0
      %494 = vmatprep.mubr.bf16.mxu0 0
      %495 = vmatmul.mubr.bf16.gmra.mxu0 %v363
      %v496 = vpop.f32.mrf.mxu0
      %v497 = vadd.f32 0.0, %v496
      %v498 = vpop.f32.mrf.mxu0
      %v499 = vpop.f32.mrf.mxu0
      %v500 = vadd.f32 0.0, %v499
      %v501 = vpop.f32.mrf.mxu0
      %502 = vmatprep.mubr.bf16.mxu0 0
      %503 = vmatmul.mubr.bf16.gmra.mxu0 %v366
      %v504 = vpop.f32.mrf.mxu0
      %v505 = vadd.f32 0.0, %v504
      %v506 = vpop.f32.mrf.mxu0
      %v507 = vpop.f32.mrf.mxu0
      %v508 = vadd.f32 0.0, %v507
      %v509 = vpop.f32.mrf.mxu0
      %510 = vmatprep.mubr.bf16.mxu0 0
      %511 = vmatmul.mubr.bf16.gmra.mxu0 %v369
      %v512 = vpop.f32.mrf.mxu0
      %v513 = vadd.f32 0.0, %v512
      %v514 = vpop.f32.mrf.mxu0
      %v515 = vpop.f32.mrf.mxu0
      %v516 = vadd.f32 0.0, %v515
      %v517 = vpop.f32.mrf.mxu0
      %518 = vmatprep.mubr.bf16.mxu0 0
      %519 = vmatmul.mubr.bf16.gmra.mxu0 %v372
      %v520 = vpop.f32.mrf.mxu0
      %v521 = vadd.f32 0.0, %v520
      %v522 = vpop.f32.mrf.mxu0
      %v523 = vpop.f32.mrf.mxu0
      %v524 = vadd.f32 0.0, %v523
      %v525 = vpop.f32.mrf.mxu0
      %526 = vmatprep.mubr.bf16.mxu0 0
      %527 = vmatmul.mubr.bf16.gmra.mxu0 %v375
      %v528 = vpop.f32.mrf.mxu0
      %v529 = vadd.f32 0.0, %v528
      %v530 = vpop.f32.mrf.mxu0
      %v531 = vpop.f32.mrf.mxu0
      %v532 = vadd.f32 0.0, %v531
      %v533 = vpop.f32.mrf.mxu0
      %534 = vmatprep.mubr.bf16.mxu0 0
      %535 = vmatmul.mubr.bf16.gmra.mxu0 %v378
      %v536 = vpop.f32.mrf.mxu0
      %v537 = vadd.f32 0.0, %v536
      %v538 = vpop.f32.mrf.mxu0
      %v539 = vpop.f32.mrf.mxu0
      %v540 = vadd.f32 0.0, %v539
      %v541 = vpop.f32.mrf.mxu0
      %542 = vmatprep.mubr.bf16.mxu0 0
      %543 = vmatmul.mubr.bf16.gmra.mxu0 %v381
      %v544 = vpop.f32.mrf.mxu0
      %v545 = vadd.f32 0.0, %v544
      %v546 = vpop.f32.mrf.mxu0
      %v547 = vpop.f32.mrf.mxu0
      %v548 = vadd.f32 0.0, %v547
      %v549 = vpop.f32.mrf.mxu0
      %550 = vdwg.mxu0
      %v551 = vadd.f32 %v213, %v425
      %v552 = vadd.f32 %v213, %v428
      %v553 = vadd.f32 %v213, %v433
      %v554 = vadd.f32 %v213, %v436
      %v555 = vadd.f32 %v213, %v441
      %v556 = vadd.f32 %v213, %v444
      %v557 = vadd.f32 %v213, %v449
      %v558 = vadd.f32 %v213, %v452
      %v559 = vadd.f32 %v213, %v457
      %v560 = vadd.f32 %v213, %v460
      %v561 = vadd.f32 %v213, %v465
      %v562 = vadd.f32 %v213, %v468
      %v563 = vadd.f32 %v213, %v473
      %v564 = vadd.f32 %v213, %v476
      %v565 = vadd.f32 %v213, %v481
      %v566 = vadd.f32 %v213, %v484
      %v567 = vadd.f32 %v213, %v489
      %v568 = vadd.f32 %v213, %v492
      %v569 = vadd.f32 %v213, %v497
      %v570 = vadd.f32 %v213, %v500
      %v571 = vadd.f32 %v213, %v505
      %v572 = vadd.f32 %v213, %v508
      %v573 = vadd.f32 %v213, %v513
      %v574 = vadd.f32 %v213, %v516
      %v575 = vadd.f32 %v213, %v521
      %v576 = vadd.f32 %v213, %v524
      %v577 = vadd.f32 %v213, %v529
      %v578 = vadd.f32 %v213, %v532
      %v579 = vadd.f32 %v213, %v537
      %v580 = vadd.f32 %v213, %v540
      %v581 = vadd.f32 %v213, %v545
      %v582 = vadd.f32 %v213, %v548
      %s583 = scalar_lea.vmem %s197, 8
      %v584 = vld [vmem:[%s583] sm:$0xf]
      %v585 = vld [vmem:[%s583 + $0x4] sm:$0xf]
      %v586 = vld [vmem:[%s583 + $0x8] sm:$0xf]
      %v587 = vld [vmem:[%s583 + $0xc] sm:$0xf]
      %v588 = vld [vmem:[%s583 + $0x10] sm:$0xf]
      %v589 = vld [vmem:[%s583 + $0x14] sm:$0xf]
      %v590 = vld [vmem:[%s583 + $0x18] sm:$0xf]
      %v591 = vld [vmem:[%s583 + $0x1c] sm:$0xf]
      %v592 = vld [vmem:[%s583 + $0x20] sm:$0xf]
      %v593 = vld [vmem:[%s583 + $0x24] sm:$0xf]
      %v594 = vld [vmem:[%s583 + $0x28] sm:$0xf]
      %v595 = vld [vmem:[%s583 + $0x2c] sm:$0xf]
      %v596 = vld [vmem:[%s583 + $0x30] sm:$0xf]
      %v597 = vld [vmem:[%s583 + $0x34] sm:$0xf]
      %v598 = vld [vmem:[%s583 + $0x38] sm:$0xf]
      %v599 = vld [vmem:[%s583 + $0x3c] sm:$0xf]
      %v600 = vld [vmem:[%s583 + $0x40] sm:$0xf]
      %v601 = vld [vmem:[%s583 + $0x44] sm:$0xf]
      %v602 = vld [vmem:[%s583 + $0x48] sm:$0xf]
      %v603 = vld [vmem:[%s583 + $0x4c] sm:$0xf]
      %v604 = vld [vmem:[%s583 + $0x50] sm:$0xf]
      %v605 = vld [vmem:[%s583 + $0x54] sm:$0xf]
      %v606 = vld [vmem:[%s583 + $0x58] sm:$0xf]
      %v607 = vld [vmem:[%s583 + $0x5c] sm:$0xf]
      %v608 = vld [vmem:[%s583 + $0x60] sm:$0xf]
      %v609 = vld [vmem:[%s583 + $0x64] sm:$0xf]
      %v610 = vld [vmem:[%s583 + $0x68] sm:$0xf]
      %v611 = vld [vmem:[%s583 + $0x6c] sm:$0xf]
      %v612 = vld [vmem:[%s583 + $0x70] sm:$0xf]
      %v613 = vld [vmem:[%s583 + $0x74] sm:$0xf]
      %v614 = vld [vmem:[%s583 + $0x78] sm:$0xf]
      %v615 = vld [vmem:[%s583 + $0x7c] sm:$0xf]
      %s616 = scalar_lea.vmem %s1, 8
      %v617 = vld [vmem:[%s616] sm:$0xf]
      %v618 = vld [vmem:[%s616 + $0x4] sm:$0x1]
      %v651 = vunpack.c.l.b16 %v584
      %v652 = vunpack.c.l.b16 %v585
      %v653 = vunpack.c.l.b16 %v586
      %v654 = vunpack.c.l.b16 %v587
      %v655 = vunpack.c.l.b16 %v588
      %v656 = vunpack.c.l.b16 %v589
      %v657 = vunpack.c.l.b16 %v590
      %v658 = vunpack.c.l.b16 %v591
      %v659 = vunpack.c.l.b16 %v592
      %v660 = vunpack.c.l.b16 %v593
      %v661 = vunpack.c.l.b16 %v594
      %v662 = vunpack.c.l.b16 %v595
      %v663 = vunpack.c.l.b16 %v596
      %v664 = vunpack.c.l.b16 %v597
      %v665 = vunpack.c.l.b16 %v598
      %v666 = vunpack.c.l.b16 %v599
      %v667 = vunpack.c.l.b16 %v600
      %v668 = vunpack.c.l.b16 %v601
      %v669 = vunpack.c.l.b16 %v602
      %v670 = vunpack.c.l.b16 %v603
      %v671 = vunpack.c.l.b16 %v604
      %v672 = vunpack.c.l.b16 %v605
      %v673 = vunpack.c.l.b16 %v606
      %v674 = vunpack.c.l.b16 %v607
      %v675 = vunpack.c.l.b16 %v608
      %v676 = vunpack.c.l.b16 %v609
      %v677 = vunpack.c.l.b16 %v610
      %v678 = vunpack.c.l.b16 %v611
      %v679 = vunpack.c.l.b16 %v612
      %v680 = vunpack.c.l.b16 %v613
      %v681 = vunpack.c.l.b16 %v614
      %v682 = vunpack.c.l.b16 %v615
      %v683 = vpack.c.b16 %v652, %v651
      %v684 = vpack.c.b16 %v654, %v653
      %v685 = vpack.c.b16 %v656, %v655
      %v686 = vpack.c.b16 %v658, %v657
      %v687 = vpack.c.b16 %v660, %v659
      %v688 = vpack.c.b16 %v662, %v661
      %v689 = vpack.c.b16 %v664, %v663
      %v690 = vpack.c.b16 %v666, %v665
      %v691 = vpack.c.b16 %v668, %v667
      %v692 = vpack.c.b16 %v670, %v669
      %v693 = vpack.c.b16 %v672, %v671
      %v694 = vpack.c.b16 %v674, %v673
      %v695 = vpack.c.b16 %v676, %v675
      %v696 = vpack.c.b16 %v678, %v677
      %v697 = vpack.c.b16 %v680, %v679
      %v698 = vpack.c.b16 %v682, %v681
      %v701 = vunpack.c.l.b16 %v617
      %v702 = vunpack.c.l.b16 %v618
      %v703 = vpack.c.b16 %v702, %v701
      %v705 = vsel %vm334, %v683, 0
      %v708 = vsel %vm334, %v684, 0
      %v711 = vsel %vm334, %v685, 0
      %v714 = vsel %vm334, %v686, 0
      %v717 = vsel %vm334, %v687, 0
      %v720 = vsel %vm334, %v688, 0
      %v723 = vsel %vm334, %v689, 0
      %v726 = vsel %vm334, %v690, 0
      %v729 = vsel %vm334, %v691, 0
      %v732 = vsel %vm334, %v692, 0
      %v735 = vsel %vm334, %v693, 0
      %v738 = vsel %vm334, %v694, 0
      %v741 = vsel %vm334, %v695, 0
      %v744 = vsel %vm334, %v696, 0
      %v747 = vsel %vm334, %v697, 0
      %v750 = vsel %vm334, %v698, 0
      %v753 = vand.u32 %v703, %v386
      %755 = vmatprep.subr.bf16.mxu0 0
      %756 = vmatpush1.bf16.msra.mxu0 0
      %757 = vmatprep.subr.bf16.mxu0 0
      %758 = vmatpush1.bf16.msra.mxu0 0
      %759 = vmatprep.subr.bf16.mxu0 0
      %760 = vmatpush1.bf16.msra.mxu0 0
      %761 = vmatprep.subr.bf16.mxu0 0
      %762 = vmatpush1.bf16.msra.mxu0 0
      %763 = vmatprep.subr.bf16.mxu0 0
      %764 = vmatpush1.bf16.msra.mxu0 0
      %765 = vmatprep.subr.bf16.mxu0 0
      %766 = vmatpush1.bf16.msra.mxu0 0
      %767 = vmatprep.subr.bf16.mxu0 0
      %768 = vmatpush1.bf16.msra.mxu0 0
      %769 = vmatprep.subr.bf16.mxu0 0
      %770 = vmatpush1.bf16.msra.mxu0 %v753
      %771 = vmatprep.subr.bf16.mxu0 0
      %772 = vmatpush2.bf16.msra.mxu0 0
      %773 = vmatprep.subr.bf16.mxu0 0
      %774 = vmatpush2.bf16.msra.mxu0 0
      %775 = vmatprep.subr.bf16.mxu0 0
      %776 = vmatpush2.bf16.msra.mxu0 0
      %777 = vmatprep.subr.bf16.mxu0 0
      %778 = vmatpush2.bf16.msra.mxu0 0
      %779 = vmatprep.subr.bf16.mxu0 0
      %780 = vmatpush2.bf16.msra.mxu0 0
      %781 = vmatprep.subr.bf16.mxu0 0
      %782 = vmatpush2.bf16.msra.mxu0 0
      %783 = vmatprep.subr.bf16.mxu0 0
      %784 = vmatpush2.bf16.msra.mxu0 0
      %785 = vmatprep.subr.bf16.mxu0 0
      %786 = vmatpush2.bf16.msra.mxu0 0
      %787 = vmatprep.mubr.bf16.mxu0 0
      %788 = vmatmul.mubr.bf16.gmra.mxu0 %v705
      %v789 = vpop.f32.mrf.mxu0
      %v790 = vadd.f32 0.0, %v789
      %v791 = vpop.f32.mrf.mxu0
      %v792 = vpop.f32.mrf.mxu0
      %v793 = vadd.f32 0.0, %v792
      %v794 = vpop.f32.mrf.mxu0
      %795 = vmatprep.mubr.bf16.mxu0 0
      %796 = vmatmul.mubr.bf16.gmra.mxu0 %v708
      %v797 = vpop.f32.mrf.mxu0
      %v798 = vadd.f32 0.0, %v797
      %v799 = vpop.f32.mrf.mxu0
      %v800 = vpop.f32.mrf.mxu0
      %v801 = vadd.f32 0.0, %v800
      %v802 = vpop.f32.mrf.mxu0
      %803 = vmatprep.mubr.bf16.mxu0 0
      %804 = vmatmul.mubr.bf16.gmra.mxu0 %v711
      %v805 = vpop.f32.mrf.mxu0
      %v806 = vadd.f32 0.0, %v805
      %v807 = vpop.f32.mrf.mxu0
      %v808 = vpop.f32.mrf.mxu0
      %v809 = vadd.f32 0.0, %v808
      %v810 = vpop.f32.mrf.mxu0
      %811 = vmatprep.mubr.bf16.mxu0 0
      %812 = vmatmul.mubr.bf16.gmra.mxu0 %v714
      %v813 = vpop.f32.mrf.mxu0
      %v814 = vadd.f32 0.0, %v813
      %v815 = vpop.f32.mrf.mxu0
      %v816 = vpop.f32.mrf.mxu0
      %v817 = vadd.f32 0.0, %v816
      %v818 = vpop.f32.mrf.mxu0
      %819 = vmatprep.mubr.bf16.mxu0 0
      %820 = vmatmul.mubr.bf16.gmra.mxu0 %v717
      %v821 = vpop.f32.mrf.mxu0
      %v822 = vadd.f32 0.0, %v821
      %v823 = vpop.f32.mrf.mxu0
      %v824 = vpop.f32.mrf.mxu0
      %v825 = vadd.f32 0.0, %v824
      %v826 = vpop.f32.mrf.mxu0
      %827 = vmatprep.mubr.bf16.mxu0 0
      %828 = vmatmul.mubr.bf16.gmra.mxu0 %v720
      %v829 = vpop.f32.mrf.mxu0
      %v830 = vadd.f32 0.0, %v829
      %v831 = vpop.f32.mrf.mxu0
      %v832 = vpop.f32.mrf.mxu0
      %v833 = vadd.f32 0.0, %v832
      %v834 = vpop.f32.mrf.mxu0
      %835 = vmatprep.mubr.bf16.mxu0 0
      %836 = vmatmul.mubr.bf16.gmra.mxu0 %v723
      %v837 = vpop.f32.mrf.mxu0
      %v838 = vadd.f32 0.0, %v837
      %v839 = vpop.f32.mrf.mxu0
      %v840 = vpop.f32.mrf.mxu0
      %v841 = vadd.f32 0.0, %v840
      %v842 = vpop.f32.mrf.mxu0
      %843 = vmatprep.mubr.bf16.mxu0 0
      %844 = vmatmul.mubr.bf16.gmra.mxu0 %v726
      %v845 = vpop.f32.mrf.mxu0
      %v846 = vadd.f32 0.0, %v845
      %v847 = vpop.f32.mrf.mxu0
      %v848 = vpop.f32.mrf.mxu0
      %v849 = vadd.f32 0.0, %v848
      %v850 = vpop.f32.mrf.mxu0
      %851 = vmatprep.mubr.bf16.mxu0 0
      %852 = vmatmul.mubr.bf16.gmra.mxu0 %v729
      %v853 = vpop.f32.mrf.mxu0
      %v854 = vadd.f32 0.0, %v853
      %v855 = vpop.f32.mrf.mxu0
      %v856 = vpop.f32.mrf.mxu0
      %v857 = vadd.f32 0.0, %v856
      %v858 = vpop.f32.mrf.mxu0
      %859 = vmatprep.mubr.bf16.mxu0 0
      %860 = vmatmul.mubr.bf16.gmra.mxu0 %v732
      %v861 = vpop.f32.mrf.mxu0
      %v862 = vadd.f32 0.0, %v861
      %v863 = vpop.f32.mrf.mxu0
      %v864 = vpop.f32.mrf.mxu0
      %v865 = vadd.f32 0.0, %v864
      %v866 = vpop.f32.mrf.mxu0
      %867 = vmatprep.mubr.bf16.mxu0 0
      %868 = vmatmul.mubr.bf16.gmra.mxu0 %v735
      %v869 = vpop.f32.mrf.mxu0
      %v870 = vadd.f32 0.0, %v869
      %v871 = vpop.f32.mrf.mxu0
      %v872 = vpop.f32.mrf.mxu0
      %v873 = vadd.f32 0.0, %v872
      %v874 = vpop.f32.mrf.mxu0
      %875 = vmatprep.mubr.bf16.mxu0 0
      %876 = vmatmul.mubr.bf16.gmra.mxu0 %v738
      %v877 = vpop.f32.mrf.mxu0
      %v878 = vadd.f32 0.0, %v877
      %v879 = vpop.f32.mrf.mxu0
      %v880 = vpop.f32.mrf.mxu0
      %v881 = vadd.f32 0.0, %v880
      %v882 = vpop.f32.mrf.mxu0
      %883 = vmatprep.mubr.bf16.mxu0 0
      %884 = vmatmul.mubr.bf16.gmra.mxu0 %v741
      %v885 = vpop.f32.mrf.mxu0
      %v886 = vadd.f32 0.0, %v885
      %v887 = vpop.f32.mrf.mxu0
      %v888 = vpop.f32.mrf.mxu0
      %v889 = vadd.f32 0.0, %v888
      %v890 = vpop.f32.mrf.mxu0
      %891 = vmatprep.mubr.bf16.mxu0 0
      %892 = vmatmul.mubr.bf16.gmra.mxu0 %v744
      %v893 = vpop.f32.mrf.mxu0
      %v894 = vadd.f32 0.0, %v893
      %v895 = vpop.f32.mrf.mxu0
      %v896 = vpop.f32.mrf.mxu0
      %v897 = vadd.f32 0.0, %v896
      %v898 = vpop.f32.mrf.mxu0
      %899 = vmatprep.mubr.bf16.mxu0 0
      %900 = vmatmul.mubr.bf16.gmra.mxu0 %v747
      %v901 = vpop.f32.mrf.mxu0
      %v902 = vadd.f32 0.0, %v901
      %v903 = vpop.f32.mrf.mxu0
      %v904 = vpop.f32.mrf.mxu0
      %v905 = vadd.f32 0.0, %v904
      %v906 = vpop.f32.mrf.mxu0
      %907 = vmatprep.mubr.bf16.mxu0 0
      %908 = vmatmul.mubr.bf16.gmra.mxu0 %v750
      %v909 = vpop.f32.mrf.mxu0
      %v910 = vadd.f32 0.0, %v909
      %v911 = vpop.f32.mrf.mxu0
      %v912 = vpop.f32.mrf.mxu0
      %v913 = vadd.f32 0.0, %v912
      %v914 = vpop.f32.mrf.mxu0
      %915 = vdwg.mxu0
      %v916 = vadd.f32 %v551, %v790
      %v917 = vadd.f32 %v552, %v793
      %v918 = vadd.f32 %v553, %v798
      %v919 = vadd.f32 %v554, %v801
      %v920 = vadd.f32 %v555, %v806
      %v921 = vadd.f32 %v556, %v809
      %v922 = vadd.f32 %v557, %v814
      %v923 = vadd.f32 %v558, %v817
      %v924 = vadd.f32 %v559, %v822
      %v925 = vadd.f32 %v560, %v825
      %v926 = vadd.f32 %v561, %v830
      %v927 = vadd.f32 %v562, %v833
      %v928 = vadd.f32 %v563, %v838
      %v929 = vadd.f32 %v564, %v841
      %v930 = vadd.f32 %v565, %v846
      %v931 = vadd.f32 %v566, %v849
      %v932 = vadd.f32 %v567, %v854
      %v933 = vadd.f32 %v568, %v857
      %v934 = vadd.f32 %v569, %v862
      %v935 = vadd.f32 %v570, %v865
      %v936 = vadd.f32 %v571, %v870
      %v937 = vadd.f32 %v572, %v873
      %v938 = vadd.f32 %v573, %v878
      %v939 = vadd.f32 %v574, %v881
      %v940 = vadd.f32 %v575, %v886
      %v941 = vadd.f32 %v576, %v889
      %v942 = vadd.f32 %v577, %v894
      %v943 = vadd.f32 %v578, %v897
      %v944 = vadd.f32 %v579, %v902
      %v945 = vadd.f32 %v580, %v905
      %v946 = vadd.f32 %v581, %v910
      %v947 = vadd.f32 %v582, %v913
      %s948 = scalar_lea.vmem %s197, 16
      %v949 = vld [vmem:[%s948] sm:$0xf]
      %v950 = vld [vmem:[%s948 + $0x4] sm:$0xf]
      %v951 = vld [vmem:[%s948 + $0x8] sm:$0xf]
      %v952 = vld [vmem:[%s948 + $0xc] sm:$0xf]
      %v953 = vld [vmem:[%s948 + $0x10] sm:$0xf]
      %v954 = vld [vmem:[%s948 + $0x14] sm:$0xf]
      %v955 = vld [vmem:[%s948 + $0x18] sm:$0xf]
      %v956 = vld [vmem:[%s948 + $0x1c] sm:$0xf]
      %v957 = vld [vmem:[%s948 + $0x20] sm:$0xf]
      %v958 = vld [vmem:[%s948 + $0x24] sm:$0xf]
      %v959 = vld [vmem:[%s948 + $0x28] sm:$0xf]
      %v960 = vld [vmem:[%s948 + $0x2c] sm:$0xf]
      %v961 = vld [vmem:[%s948 + $0x30] sm:$0xf]
      %v962 = vld [vmem:[%s948 + $0x34] sm:$0xf]
      %v963 = vld [vmem:[%s948 + $0x38] sm:$0xf]
      %v964 = vld [vmem:[%s948 + $0x3c] sm:$0xf]
      %v965 = vld [vmem:[%s948 + $0x40] sm:$0xf]
      %v966 = vld [vmem:[%s948 + $0x44] sm:$0xf]
      %v967 = vld [vmem:[%s948 + $0x48] sm:$0xf]
      %v968 = vld [vmem:[%s948 + $0x4c] sm:$0xf]
      %v969 = vld [vmem:[%s948 + $0x50] sm:$0xf]
      %v970 = vld [vmem:[%s948 + $0x54] sm:$0xf]
      %v971 = vld [vmem:[%s948 + $0x58] sm:$0xf]
      %v972 = vld [vmem:[%s948 + $0x5c] sm:$0xf]
      %v973 = vld [vmem:[%s948 + $0x60] sm:$0xf]
      %v974 = vld [vmem:[%s948 + $0x64] sm:$0xf]
      %v975 = vld [vmem:[%s948 + $0x68] sm:$0xf]
      %v976 = vld [vmem:[%s948 + $0x6c] sm:$0xf]
      %v977 = vld [vmem:[%s948 + $0x70] sm:$0xf]
      %v978 = vld [vmem:[%s948 + $0x74] sm:$0xf]
      %v979 = vld [vmem:[%s948 + $0x78] sm:$0xf]
      %v980 = vld [vmem:[%s948 + $0x7c] sm:$0xf]
      %s981 = scalar_lea.vmem %s1, 16
      %v982 = vld [vmem:[%s981] sm:$0xf]
      %v983 = vld [vmem:[%s981 + $0x4] sm:$0x1]
      %v1016 = vunpack.c.l.b16 %v949
      %v1017 = vunpack.c.l.b16 %v950
      %v1018 = vunpack.c.l.b16 %v951
      %v1019 = vunpack.c.l.b16 %v952
      %v1020 = vunpack.c.l.b16 %v953
      %v1021 = vunpack.c.l.b16 %v954
      %v1022 = vunpack.c.l.b16 %v955
      %v1023 = vunpack.c.l.b16 %v956
      %v1024 = vunpack.c.l.b16 %v957
      %v1025 = vunpack.c.l.b16 %v958
      %v1026 = vunpack.c.l.b16 %v959
      %v1027 = vunpack.c.l.b16 %v960
      %v1028 = vunpack.c.l.b16 %v961
      %v1029 = vunpack.c.l.b16 %v962
      %v1030 = vunpack.c.l.b16 %v963
      %v1031 = vunpack.c.l.b16 %v964
      %v1032 = vunpack.c.l.b16 %v965
      %v1033 = vunpack.c.l.b16 %v966
      %v1034 = vunpack.c.l.b16 %v967
      %v1035 = vunpack.c.l.b16 %v968
      %v1036 = vunpack.c.l.b16 %v969
      %v1037 = vunpack.c.l.b16 %v970
      %v1038 = vunpack.c.l.b16 %v971
      %v1039 = vunpack.c.l.b16 %v972
      %v1040 = vunpack.c.l.b16 %v973
      %v1041 = vunpack.c.l.b16 %v974
      %v1042 = vunpack.c.l.b16 %v975
      %v1043 = vunpack.c.l.b16 %v976
      %v1044 = vunpack.c.l.b16 %v977
      %v1045 = vunpack.c.l.b16 %v978
      %v1046 = vunpack.c.l.b16 %v979
      %v1047 = vunpack.c.l.b16 %v980
      %v1048 = vpack.c.b16 %v1017, %v1016
      %v1049 = vpack.c.b16 %v1019, %v1018
      %v1050 = vpack.c.b16 %v1021, %v1020
      %v1051 = vpack.c.b16 %v1023, %v1022
      %v1052 = vpack.c.b16 %v1025, %v1024
      %v1053 = vpack.c.b16 %v1027, %v1026
      %v1054 = vpack.c.b16 %v1029, %v1028
      %v1055 = vpack.c.b16 %v1031, %v1030
      %v1056 = vpack.c.b16 %v1033, %v1032
      %v1057 = vpack.c.b16 %v1035, %v1034
      %v1058 = vpack.c.b16 %v1037, %v1036
      %v1059 = vpack.c.b16 %v1039, %v1038
      %v1060 = vpack.c.b16 %v1041, %v1040
      %v1061 = vpack.c.b16 %v1043, %v1042
      %v1062 = vpack.c.b16 %v1045, %v1044
      %v1063 = vpack.c.b16 %v1047, %v1046
      %v1066 = vunpack.c.l.b16 %v982
      %v1067 = vunpack.c.l.b16 %v983
      %v1068 = vpack.c.b16 %v1067, %v1066
      %v1070 = vsel %vm334, %v1048, 0
      %v1073 = vsel %vm334, %v1049, 0
      %v1076 = vsel %vm334, %v1050, 0
      %v1079 = vsel %vm334, %v1051, 0
      %v1082 = vsel %vm334, %v1052, 0
      %v1085 = vsel %vm334, %v1053, 0
      %v1088 = vsel %vm334, %v1054, 0
      %v1091 = vsel %vm334, %v1055, 0
      %v1094 = vsel %vm334, %v1056, 0
      %v1097 = vsel %vm334, %v1057, 0
      %v1100 = vsel %vm334, %v1058, 0
      %v1103 = vsel %vm334, %v1059, 0
      %v1106 = vsel %vm334, %v1060, 0
      %v1109 = vsel %vm334, %v1061, 0
      %v1112 = vsel %vm334, %v1062, 0
      %v1115 = vsel %vm334, %v1063, 0
      %v1118 = vand.u32 %v1068, %v386
      %1120 = vmatprep.subr.bf16.mxu0 0
      %1121 = vmatpush1.bf16.msra.mxu0 0
      %1122 = vmatprep.subr.bf16.mxu0 0
      %1123 = vmatpush1.bf16.msra.mxu0 0
      %1124 = vmatprep.subr.bf16.mxu0 0
      %1125 = vmatpush1.bf16.msra.mxu0 0
      %1126 = vmatprep.subr.bf16.mxu0 0
      %1127 = vmatpush1.bf16.msra.mxu0 0
      %1128 = vmatprep.subr.bf16.mxu0 0
      %1129 = vmatpush1.bf16.msra.mxu0 0
      %1130 = vmatprep.subr.bf16.mxu0 0
      %1131 = vmatpush1.bf16.msra.mxu0 0
      %1132 = vmatprep.subr.bf16.mxu0 0
      %1133 = vmatpush1.bf16.msra.mxu0 0
      %1134 = vmatprep.subr.bf16.mxu0 0
      %1135 = vmatpush1.bf16.msra.mxu0 %v1118
      %1136 = vmatprep.subr.bf16.mxu0 0
      %1137 = vmatpush2.bf16.msra.mxu0 0
      %1138 = vmatprep.subr.bf16.mxu0 0
      %1139 = vmatpush2.bf16.msra.mxu0 0
      %1140 = vmatprep.subr.bf16.mxu0 0
      %1141 = vmatpush2.bf16.msra.mxu0 0
      %1142 = vmatprep.subr.bf16.mxu0 0
      %1143 = vmatpush2.bf16.msra.mxu0 0
      %1144 = vmatprep.subr.bf16.mxu0 0
      %1145 = vmatpush2.bf16.msra.mxu0 0
      %1146 = vmatprep.subr.bf16.mxu0 0
      %1147 = vmatpush2.bf16.msra.mxu0 0
      %1148 = vmatprep.subr.bf16.mxu0 0
      %1149 = vmatpush2.bf16.msra.mxu0 0
      %1150 = vmatprep.subr.bf16.mxu0 0
      %1151 = vmatpush2.bf16.msra.mxu0 0
      %1152 = vmatprep.mubr.bf16.mxu0 0
      %1153 = vmatmul.mubr.bf16.gmra.mxu0 %v1070
      %v1154 = vpop.f32.mrf.mxu0
      %v1155 = vadd.f32 0.0, %v1154
      %v1156 = vpop.f32.mrf.mxu0
      %v1157 = vpop.f32.mrf.mxu0
      %v1158 = vadd.f32 0.0, %v1157
      %v1159 = vpop.f32.mrf.mxu0
      %1160 = vmatprep.mubr.bf16.mxu0 0
      %1161 = vmatmul.mubr.bf16.gmra.mxu0 %v1073
      %v1162 = vpop.f32.mrf.mxu0
      %v1163 = vadd.f32 0.0, %v1162
      %v1164 = vpop.f32.mrf.mxu0
      %v1165 = vpop.f32.mrf.mxu0
      %v1166 = vadd.f32 0.0, %v1165
      %v1167 = vpop.f32.mrf.mxu0
      %1168 = vmatprep.mubr.bf16.mxu0 0
      %1169 = vmatmul.mubr.bf16.gmra.mxu0 %v1076
      %v1170 = vpop.f32.mrf.mxu0
      %v1171 = vadd.f32 0.0, %v1170
      %v1172 = vpop.f32.mrf.mxu0
      %v1173 = vpop.f32.mrf.mxu0
      %v1174 = vadd.f32 0.0, %v1173
      %v1175 = vpop.f32.mrf.mxu0
      %1176 = vmatprep.mubr.bf16.mxu0 0
      %1177 = vmatmul.mubr.bf16.gmra.mxu0 %v1079
      %v1178 = vpop.f32.mrf.mxu0
      %v1179 = vadd.f32 0.0, %v1178
      %v1180 = vpop.f32.mrf.mxu0
      %v1181 = vpop.f32.mrf.mxu0
      %v1182 = vadd.f32 0.0, %v1181
      %v1183 = vpop.f32.mrf.mxu0
      %1184 = vmatprep.mubr.bf16.mxu0 0
      %1185 = vmatmul.mubr.bf16.gmra.mxu0 %v1082
      %v1186 = vpop.f32.mrf.mxu0
      %v1187 = vadd.f32 0.0, %v1186
      %v1188 = vpop.f32.mrf.mxu0
      %v1189 = vpop.f32.mrf.mxu0
      %v1190 = vadd.f32 0.0, %v1189
      %v1191 = vpop.f32.mrf.mxu0
      %1192 = vmatprep.mubr.bf16.mxu0 0
      %1193 = vmatmul.mubr.bf16.gmra.mxu0 %v1085
      %v1194 = vpop.f32.mrf.mxu0
      %v1195 = vadd.f32 0.0, %v1194
      %v1196 = vpop.f32.mrf.mxu0
      %v1197 = vpop.f32.mrf.mxu0
      %v1198 = vadd.f32 0.0, %v1197
      %v1199 = vpop.f32.mrf.mxu0
      %1200 = vmatprep.mubr.bf16.mxu0 0
      %1201 = vmatmul.mubr.bf16.gmra.mxu0 %v1088
      %v1202 = vpop.f32.mrf.mxu0
      %v1203 = vadd.f32 0.0, %v1202
      %v1204 = vpop.f32.mrf.mxu0
      %v1205 = vpop.f32.mrf.mxu0
      %v1206 = vadd.f32 0.0, %v1205
      %v1207 = vpop.f32.mrf.mxu0
      %1208 = vmatprep.mubr.bf16.mxu0 0
      %1209 = vmatmul.mubr.bf16.gmra.mxu0 %v1091
      %v1210 = vpop.f32.mrf.mxu0
      %v1211 = vadd.f32 0.0, %v1210
      %v1212 = vpop.f32.mrf.mxu0
      %v1213 = vpop.f32.mrf.mxu0
      %v1214 = vadd.f32 0.0, %v1213
      %v1215 = vpop.f32.mrf.mxu0
      %1216 = vmatprep.mubr.bf16.mxu0 0
      %1217 = vmatmul.mubr.bf16.gmra.mxu0 %v1094
      %v1218 = vpop.f32.mrf.mxu0
      %v1219 = vadd.f32 0.0, %v1218
      %v1220 = vpop.f32.mrf.mxu0
      %v1221 = vpop.f32.mrf.mxu0
      %v1222 = vadd.f32 0.0, %v1221
      %v1223 = vpop.f32.mrf.mxu0
      %1224 = vmatprep.mubr.bf16.mxu0 0
      %1225 = vmatmul.mubr.bf16.gmra.mxu0 %v1097
      %v1226 = vpop.f32.mrf.mxu0
      %v1227 = vadd.f32 0.0, %v1226
      %v1228 = vpop.f32.mrf.mxu0
      %v1229 = vpop.f32.mrf.mxu0
      %v1230 = vadd.f32 0.0, %v1229
      %v1231 = vpop.f32.mrf.mxu0
      %1232 = vmatprep.mubr.bf16.mxu0 0
      %1233 = vmatmul.mubr.bf16.gmra.mxu0 %v1100
      %v1234 = vpop.f32.mrf.mxu0
      %v1235 = vadd.f32 0.0, %v1234
      %v1236 = vpop.f32.mrf.mxu0
      %v1237 = vpop.f32.mrf.mxu0
      %v1238 = vadd.f32 0.0, %v1237
      %v1239 = vpop.f32.mrf.mxu0
      %1240 = vmatprep.mubr.bf16.mxu0 0
      %1241 = vmatmul.mubr.bf16.gmra.mxu0 %v1103
      %v1242 = vpop.f32.mrf.mxu0
      %v1243 = vadd.f32 0.0, %v1242
      %v1244 = vpop.f32.mrf.mxu0
      %v1245 = vpop.f32.mrf.mxu0
      %v1246 = vadd.f32 0.0, %v1245
      %v1247 = vpop.f32.mrf.mxu0
      %1248 = vmatprep.mubr.bf16.mxu0 0
      %1249 = vmatmul.mubr.bf16.gmra.mxu0 %v1106
      %v1250 = vpop.f32.mrf.mxu0
      %v1251 = vadd.f32 0.0, %v1250
      %v1252 = vpop.f32.mrf.mxu0
      %v1253 = vpop.f32.mrf.mxu0
      %v1254 = vadd.f32 0.0, %v1253
      %v1255 = vpop.f32.mrf.mxu0
      %1256 = vmatprep.mubr.bf16.mxu0 0
      %1257 = vmatmul.mubr.bf16.gmra.mxu0 %v1109
      %v1258 = vpop.f32.mrf.mxu0
      %v1259 = vadd.f32 0.0, %v1258
      %v1260 = vpop.f32.mrf.mxu0
      %v1261 = vpop.f32.mrf.mxu0
      %v1262 = vadd.f32 0.0, %v1261
      %v1263 = vpop.f32.mrf.mxu0
      %1264 = vmatprep.mubr.bf16.mxu0 0
      %1265 = vmatmul.mubr.bf16.gmra.mxu0 %v1112
      %v1266 = vpop.f32.mrf.mxu0
      %v1267 = vadd.f32 0.0, %v1266
      %v1268 = vpop.f32.mrf.mxu0
      %v1269 = vpop.f32.mrf.mxu0
      %v1270 = vadd.f32 0.0, %v1269
      %v1271 = vpop.f32.mrf.mxu0
      %1272 = vmatprep.mubr.bf16.mxu0 0
      %1273 = vmatmul.mubr.bf16.gmra.mxu0 %v1115
      %v1274 = vpop.f32.mrf.mxu0
      %v1275 = vadd.f32 0.0, %v1274
      %v1276 = vpop.f32.mrf.mxu0
      %v1277 = vpop.f32.mrf.mxu0
      %v1278 = vadd.f32 0.0, %v1277
      %v1279 = vpop.f32.mrf.mxu0
      %1280 = vdwg.mxu0
      %v1281 = vadd.f32 %v916, %v1155
      %v1282 = vadd.f32 %v917, %v1158
      %v1283 = vadd.f32 %v918, %v1163
      %v1284 = vadd.f32 %v919, %v1166
      %v1285 = vadd.f32 %v920, %v1171
      %v1286 = vadd.f32 %v921, %v1174
      %v1287 = vadd.f32 %v922, %v1179
      %v1288 = vadd.f32 %v923, %v1182
      %v1289 = vadd.f32 %v924, %v1187
      %v1290 = vadd.f32 %v925, %v1190
      %v1291 = vadd.f32 %v926, %v1195
      %v1292 = vadd.f32 %v927, %v1198
      %v1293 = vadd.f32 %v928, %v1203
      %v1294 = vadd.f32 %v929, %v1206
      %v1295 = vadd.f32 %v930, %v1211
      %v1296 = vadd.f32 %v931, %v1214
      %v1297 = vadd.f32 %v932, %v1219
      %v1298 = vadd.f32 %v933, %v1222
      %v1299 = vadd.f32 %v934, %v1227
      %v1300 = vadd.f32 %v935, %v1230
      %v1301 = vadd.f32 %v936, %v1235
      %v1302 = vadd.f32 %v937, %v1238
      %v1303 = vadd.f32 %v938, %v1243
      %v1304 = vadd.f32 %v939, %v1246
      %v1305 = vadd.f32 %v940, %v1251
      %v1306 = vadd.f32 %v941, %v1254
      %v1307 = vadd.f32 %v942, %v1259
      %v1308 = vadd.f32 %v943, %v1262
      %v1309 = vadd.f32 %v944, %v1267
      %v1310 = vadd.f32 %v945, %v1270
      %v1311 = vadd.f32 %v946, %v1275
      %v1312 = vadd.f32 %v947, %v1278
      %v1313 = vmax.f32 %v1281, 0.0
      %v1314 = vmax.f32 %v1282, 0.0
      %v1315 = vmax.f32 %v1283, 0.0
      %v1316 = vmax.f32 %v1284, 0.0
      %v1317 = vmax.f32 %v1285, 0.0
      %v1318 = vmax.f32 %v1286, 0.0
      %v1319 = vmax.f32 %v1287, 0.0
      %v1320 = vmax.f32 %v1288, 0.0
      %v1321 = vmax.f32 %v1289, 0.0
      %v1322 = vmax.f32 %v1290, 0.0
      %v1323 = vmax.f32 %v1291, 0.0
      %v1324 = vmax.f32 %v1292, 0.0
      %v1325 = vmax.f32 %v1293, 0.0
      %v1326 = vmax.f32 %v1294, 0.0
      %v1327 = vmax.f32 %v1295, 0.0
      %v1328 = vmax.f32 %v1296, 0.0
      %v1329 = vmax.f32 %v1297, 0.0
      %v1330 = vmax.f32 %v1298, 0.0
      %v1331 = vmax.f32 %v1299, 0.0
      %v1332 = vmax.f32 %v1300, 0.0
      %v1333 = vmax.f32 %v1301, 0.0
      %v1334 = vmax.f32 %v1302, 0.0
      %v1335 = vmax.f32 %v1303, 0.0
      %v1336 = vmax.f32 %v1304, 0.0
      %v1337 = vmax.f32 %v1305, 0.0
      %v1338 = vmax.f32 %v1306, 0.0
      %v1339 = vmax.f32 %v1307, 0.0
      %v1340 = vmax.f32 %v1308, 0.0
      %v1341 = vmax.f32 %v1309, 0.0
      %v1342 = vmax.f32 %v1310, 0.0
      %v1343 = vmax.f32 %v1311, 0.0
      %v1344 = vmax.f32 %v1312, 0.0
      %vm1345 = vcmask 64512
      %1346 = vst.msk [vmem:[%s206] sm:$0xff] %vm1345, %v1313
      %1347 = vst.msk [vmem:[%s206 + $0x8] sm:$0xff] %vm1345, %v1314
      %1348 = vst.msk [vmem:[%s206 + $0x10] sm:$0xff] %vm1345, %v1315
      %1349 = vst.msk [vmem:[%s206 + $0x18] sm:$0xff] %vm1345, %v1316
      %1350 = vst.msk [vmem:[%s206 + $0x20] sm:$0xff] %vm1345, %v1317
      %1351 = vst.msk [vmem:[%s206 + $0x28] sm:$0xff] %vm1345, %v1318
      %1352 = vst.msk [vmem:[%s206 + $0x30] sm:$0xff] %vm1345, %v1319
      %1353 = vst.msk [vmem:[%s206 + $0x38] sm:$0xff] %vm1345, %v1320
      %1354 = vst.msk [vmem:[%s206 + $0x40] sm:$0xff] %vm1345, %v1321
      %1355 = vst.msk [vmem:[%s206 + $0x48] sm:$0xff] %vm1345, %v1322
      %1356 = vst.msk [vmem:[%s206 + $0x50] sm:$0xff] %vm1345, %v1323
      %1357 = vst.msk [vmem:[%s206 + $0x58] sm:$0xff] %vm1345, %v1324
      %1358 = vst.msk [vmem:[%s206 + $0x60] sm:$0xff] %vm1345, %v1325
      %1359 = vst.msk [vmem:[%s206 + $0x68] sm:$0xff] %vm1345, %v1326
      %1360 = vst.msk [vmem:[%s206 + $0x70] sm:$0xff] %vm1345, %v1327
      %1361 = vst.msk [vmem:[%s206 + $0x78] sm:$0xff] %vm1345, %v1328
      %1362 = vst.msk [vmem:[%s206 + $0x80] sm:$0xff] %vm1345, %v1329
      %1363 = vst.msk [vmem:[%s206 + $0x88] sm:$0xff] %vm1345, %v1330
      %1364 = vst.msk [vmem:[%s206 + $0x90] sm:$0xff] %vm1345, %v1331
      %1365 = vst.msk [vmem:[%s206 + $0x98] sm:$0xff] %vm1345, %v1332
      %1366 = vst.msk [vmem:[%s206 + $0xa0] sm:$0xff] %vm1345, %v1333
      %1367 = vst.msk [vmem:[%s206 + $0xa8] sm:$0xff] %vm1345, %v1334
      %1368 = vst.msk [vmem:[%s206 + $0xb0] sm:$0xff] %vm1345, %v1335
      %1369 = vst.msk [vmem:[%s206 + $0xb8] sm:$0xff] %vm1345, %v1336
      %1370 = vst.msk [vmem:[%s206 + $0xc0] sm:$0xff] %vm1345, %v1337
      %1371 = vst.msk [vmem:[%s206 + $0xc8] sm:$0xff] %vm1345, %v1338
      %1372 = vst.msk [vmem:[%s206 + $0xd0] sm:$0xff] %vm1345, %v1339
      %1373 = vst.msk [vmem:[%s206 + $0xd8] sm:$0xff] %vm1345, %v1340
      %1374 = vst.msk [vmem:[%s206 + $0xe0] sm:$0xff] %vm1345, %v1341
      %1375 = vst.msk [vmem:[%s206 + $0xe8] sm:$0xff] %vm1345, %v1342
      %1376 = vst.msk [vmem:[%s206 + $0xf0] sm:$0xff] %vm1345, %v1343
      %1377 = vst.msk [vmem:[%s206 + $0xf8] sm:$0xff] %vm1345, %v1344
      %p1378 = scmp.lt.s32.totalorder %s18, 1
      %s1379 = scalar_select %p1378, %s18, 1
      %p1380 = scmp.lt.s32.totalorder %s19, 0
      %s1381 = scalar_select %p1380, %s19, 0
      %s1382 = smul.addr %s1381, 32
      %s1383 = smul.addr %s1379, 32
      %s1384 = sadd.s32 %s1382, %s1383
      %s1385 = smul.addr %s1384, 8
      %s1386 = scalar_lea.vmem %s3, %s1385
      // Predicated region
      $region33: #{_lambda_.4} parent=31 // pred_check
        %p1387 = pneg %p116
      $region34: #{_lambda_.4} parent=31 // pred_check_branch
        %1389 = sbr.rel (%p1387) target = $region36
      $region35: #{_lambda_.4} parent=31 // pred_region
        _
      $region36: #{_lambda_.4} parent=31 // pred_fallthru
        _
    $region32: #{_lambda_.4} parent=5 // pred_fallthru
      _
    %p1390 = scmp.le.s32.totalorder 2, %s9
    // Predicated region
    $region37: #{_lambda_.4} parent=5 // pred_check
      %p1391 = pneg %p1390
    $region38: #{_lambda_.4} parent=5 // pred_check_branch
      %1393 = sbr.rel (%p1391) target = $region40
    $region39: #{_lambda_.4} parent=5 // pred_region
      %s1394 = ssub.s32 %s9, 2
      // Predicated region
      $region41: #{_lambda_.4} parent=39 // pred_check
        %p1395 = pneg %p122
      $region42: #{_lambda_.4} parent=39 // pred_check_branch
        %1397 = sbr.rel (%p1395) target = $region44
      $region43: #{_lambda_.4} parent=39 // pred_region
        %p1398 = scmp.lt.s32.totalorder %s20, 1
        %s1399 = scalar_select %p1398, %s20, 1
        %p1400 = scmp.lt.s32.totalorder %s21, 0
        %s1401 = scalar_select %p1400, %s21, 0
        %s1402 = smul.addr %s1401, 32
        %s1403 = smul.addr %s1399, 32
        %s1404 = sadd.s32 %s1402, %s1403
        %s1405 = smul.addr %s1404, 8
        %s1406 = scalar_lea.vmem %s3, %s1405
      $region44: #{_lambda_.4} parent=39 // pred_fallthru
        _
    $region40: #{_lambda_.4} parent=5 // pred_fallthru
      _
  $region6: #{_lambda_.4} parent=0 // loop_footer
    %s13 = sadd.s32 1, %s9
  $region7: #{_lambda_.4} parent=0 // loop_footer_branch
    %8 = sbr.rel target = $region3
  $region8: #{_lambda_.4} parent=0 // loop_exit
    _

// kernel: _lambda_.5
$region0: #{_lambda_.5}
  #allocation0 [shape = 'u32[]', space=smem, size = 0x4, offset = 0x4, fixed_abs, tag = 'smem constant byte address 0x4 - core index']
  #allocation1 [shape = 'u32[144,128]{1,0:T(1,128)}', space=vmem, size = 0x12000, scoped, tag = 'internal scratch']
  %s0 = inlined_call_operand.vmem [shape: bf16[2,1,18,16,24], index: 0, kind: input, shape index: {}]
  %s1 = inlined_call_operand.vmem [shape: bf16[3,24,16], index: 1, kind: input, shape index: {}]
  %s2 = inlined_call_operand.vmem [shape: f32[1,16], index: 2, kind: input, shape index: {}]
  %s3 = inlined_call_operand.vmem [shape: f32[2,1,256,16], index: 3, kind: output, shape index: {}]
  %s4 = sld [smem:[#allocation0]]
  $region45: #{_lambda_.5} parent=0
    _
  %s6 = ssub.s32 1, %s4
  %s7 = scalar_select 0, %s6, %s4
  loop: start=0, step=1, limit=4
  $region2: #{_lambda_.5} parent=0 // loop_pre_header
    _
  $region3: #{_lambda_.5} parent=0 // loop_header
    %s9 = sphi 0, %s13
    %p10 = scmp.ge.s32.totalorder %s9, 4
    %s16 = sphi 0, %s28
    %s17 = sphi 0, %s24
    %s18 = sphi 0, %s16
    %s19 = sphi 0, %s17
    %s20 = sphi 0, %s18
    %s21 = sphi 0, %s19
    %s33 = sphi 0, %s35
    %s36 = sphi 0, %s33
    %s37 = sphi 0, %s36
    %s53 = sphi 0, %s37
    %s57 = sphi 0, %s57
    %s59 = sphi 0, %s57
    %s60 = sphi 0, %s59
    %s74 = sphi 0, %s60
    %s78 = sphi 0, %s78
    %s80 = sphi 0, %s78
    %s81 = sphi 0, %s80
    %s95 = sphi 0, %s81
    %s103 = sphi 0, %s105
    %s106 = sphi 0, %s103
    %s107 = sphi 0, %s106
    %s123 = sphi 0, %s107
  $region4: #{_lambda_.5} parent=0 // loop_header_branch
    %12 = sbr.rel (%p10) target = $region8
  $region5: #{_lambda_.5} parent=0 // loop_body
    %s14 = ssub.s32 %s9, 1
    %s15 = ssub.s32 %s9, 2
    %s22 = sadd.s32 1, %s17
    %p23 = scmp.ge.s32.totalorder %s22, 1
    %s24 = scalar_select %p23, 0, %s22
    %s25 = sadd.s32 1, %s16
    %s26 = scalar_select %p23, %s25, %s16
    %p27 = scmp.ge.s32.totalorder %s26, 2
    %s28 = scalar_select %p27, 0, %s26
    %s29 = ssub.s32 %s16, %s28
    %s30 = ssub.s32 %s17, %s24
    %s31 = sor.u32 %s29, %s30
    %p32 = scmp.eq.s32.totalorder %s31, 0
    %s34 = sadd.s32 %s33, 1
    %s35 = scalar_select %p32, %s33, %s34
    %p38 = pneg %p32
    %p39 = scmp.eq.s32.totalorder %s9, 1
    %p40 = por %p38, %p39
    %p41 = scmp.ne.s32.totalorder %s33, %s36
    %p42 = scmp.eq.s32.totalorder %s9, 0
    %p43 = por %p41, %p42
    %p44 = scmp.ne.s32.totalorder %s33, %s36
    %p45 = scmp.eq.s32.totalorder %s14, 1
    %p46 = por %p44, %p45
    %p47 = scmp.ne.s32.totalorder %s36, %s37
    %p48 = scmp.eq.s32.totalorder %s14, 0
    %p49 = por %p47, %p48
    %p50 = scmp.ne.s32.totalorder %s36, %s37
    %p51 = scmp.eq.s32.totalorder %s15, 1
    %p52 = por %p50, %p51
    %p54 = scmp.ne.s32.totalorder %s37, %s53
    %p55 = scmp.eq.s32.totalorder %s15, 0
    %p56 = por %p54, %p55
    %s58 = sadd.s32 %s57, 1
    %p61 = scmp.eq.s32.totalorder %s9, 1
    %p62 = scmp.ne.s32.totalorder %s57, %s59
    %p63 = scmp.eq.s32.totalorder %s9, 0
    %p64 = por %p62, %p63
    %p65 = scmp.ne.s32.totalorder %s57, %s59
    %p66 = scmp.eq.s32.totalorder %s14, 1
    %p67 = por %p65, %p66
    %p68 = scmp.ne.s32.totalorder %s59, %s60
    %p69 = scmp.eq.s32.totalorder %s14, 0
    %p70 = por %p68, %p69
    %p71 = scmp.ne.s32.totalorder %s59, %s60
    %p72 = scmp.eq.s32.totalorder %s15, 1
    %p73 = por %p71, %p72
    %p75 = scmp.ne.s32.totalorder %s60, %s74
    %p76 = scmp.eq.s32.totalorder %s15, 0
    %p77 = por %p75, %p76
    %s79 = sadd.s32 %s78, 1
    %p82 = scmp.eq.s32.totalorder %s9, 1
    %p83 = scmp.ne.s32.totalorder %s78, %s80
    %p84 = scmp.eq.s32.totalorder %s9, 0
    %p85 = por %p83, %p84
    %p86 = scmp.ne.s32.totalorder %s78, %s80
    %p87 = scmp.eq.s32.totalorder %s14, 1
    %p88 = por %p86, %p87
    %p89 = scmp.ne.s32.totalorder %s80, %s81
    %p90 = scmp.eq.s32.totalorder %s14, 0
    %p91 = por %p89, %p90
    %p92 = scmp.ne.s32.totalorder %s80, %s81
    %p93 = scmp.eq.s32.totalorder %s15, 1
    %p94 = por %p92, %p93
    %p96 = scmp.ne.s32.totalorder %s81, %s95
    %p97 = scmp.eq.s32.totalorder %s15, 0
    %p98 = por %p96, %p97
    %s99 = ssub.s32 %s16, %s28
    %s100 = ssub.s32 %s17, %s24
    %s101 = sor.u32 %s99, %s100
    %p102 = scmp.eq.s32.totalorder %s101, 0
    %s104 = sadd.s32 %s103, 1
    %s105 = scalar_select %p102, %s103, %s104
    %p108 = pneg %p102
    %p109 = scmp.eq.s32.totalorder %s9, 1
    %p110 = por %p108, %p109
    %p111 = scmp.ne.s32.totalorder %s103, %s106
    %p112 = scmp.eq.s32.totalorder %s9, 0
    %p113 = por %p111, %p112
    %p114 = scmp.ne.s32.totalorder %s103, %s106
    %p115 = scmp.eq.s32.totalorder %s14, 1
    %p116 = por %p114, %p115
    %p117 = scmp.ne.s32.totalorder %s106, %s107
    %p118 = scmp.eq.s32.totalorder %s14, 0
    %p119 = por %p117, %p118
    %p120 = scmp.ne.s32.totalorder %s106, %s107
    %p121 = scmp.eq.s32.totalorder %s15, 1
    %p122 = por %p120, %p121
    %p124 = scmp.ne.s32.totalorder %s107, %s123
    %p125 = scmp.eq.s32.totalorder %s15, 0
    %p126 = por %p124, %p125
    %p127 = scmp.le.s32.totalorder 1, %s9
    %p128 = scmp.lt.s32.totalorder %s9, 3
    %p129 = pnand %p127, %p128
    %p130 = pneg %p129
    // Predicated region
    $region9: #{_lambda_.5} parent=5 // pred_check
      _
    $region10: #{_lambda_.5} parent=5 // pred_check_branch
      %132 = sbr.rel (%p129) target = $region12
    $region11: #{_lambda_.5} parent=5 // pred_region
      %s133 = ssub.s32 %s9, 1
      // Predicated region
      $region13: #{_lambda_.5} parent=11 // pred_check
        %p134 = pneg %p70
      $region14: #{_lambda_.5} parent=11 // pred_check_branch
        %136 = sbr.rel (%p134) target = $region16
      $region15: #{_lambda_.5} parent=11 // pred_region
        _
      $region16: #{_lambda_.5} parent=11 // pred_fallthru
        _
      // Predicated region
      $region17: #{_lambda_.5} parent=11 // pred_check
        %p137 = pneg %p91
      $region18: #{_lambda_.5} parent=11 // pred_check_branch
        %139 = sbr.rel (%p137) target = $region20
      $region19: #{_lambda_.5} parent=11 // pred_region
        _
      $region20: #{_lambda_.5} parent=11 // pred_fallthru
        _
    $region12: #{_lambda_.5} parent=5 // pred_fallthru
      _
    %p140 = scmp.lt.s32.totalorder %s9, 2
    // Predicated region
    $region21: #{_lambda_.5} parent=5 // pred_check
      %p141 = pneg %p140
    $region22: #{_lambda_.5} parent=5 // pred_check_branch
      %143 = sbr.rel (%p141) target = $region24
    $region23: #{_lambda_.5} parent=5 // pred_region
      // Predicated region
      $region25: #{_lambda_.5} parent=23 // pred_check
        %p144 = pneg %p43
      $region26: #{_lambda_.5} parent=23 // pred_check_branch
        %146 = sbr.rel (%p144) target = $region28
      $region27: #{_lambda_.5} parent=23 // pred_region
        %p147 = scmp.lt.s32.totalorder %s16, 1
        %s148 = scalar_select %p147, %s16, 1
        %p149 = scmp.lt.s32.totalorder %s17, 0
        %s150 = scalar_select %p149, %s17, 0
        %s151 = smul.addr %s150, 36
        %s152 = smul.addr %s148, 36
        %s153 = sadd.s32 %s151, %s152
        %s154 = smul.addr %s153, 4
        %s155 = scalar_lea.vmem %s0, %s154
      $region28: #{_lambda_.5} parent=23 // pred_fallthru
        _
    $region24: #{_lambda_.5} parent=5 // pred_fallthru
      _
    %p156 = scmp.le.s32.totalorder 1, %s9
    %p157 = scmp.lt.s32.totalorder %s9, 3
    %p158 = pnand %p156, %p157
    %p159 = pneg %p158
    // Predicated region
    $region29: #{_lambda_.5} parent=5 // pred_check
      _
    $region30: #{_lambda_.5} parent=5 // pred_check_branch
      %161 = sbr.rel (%p158) target = $region32
    $region31: #{_lambda_.5} parent=5 // pred_region
      %s162 = ssub.s32 %s9, 1
      %p163 = scmp.lt.s32.totalorder %s18, 1
      %s164 = scalar_select %p163, %s18, 1
      %p165 = scmp.lt.s32.totalorder %s19, 0
      %s166 = scalar_select %p165, %s19, 0
      %s167 = smul.addr %s166, 36
      %s168 = smul.addr %s164, 36
      %s169 = sadd.s32 %s167, %s168
      %s170 = smul.addr %s169, 4
      %s171 = scalar_lea.vmem %s0, %s170
      %p172 = pneg %p49
      %p173 = pneg %p46
      %p174 = pneg %p70
      %p175 = pneg %p67
      %p176 = pneg %p91
      %p177 = pneg %p88
      %p178 = pneg %p119
      %p179 = pneg %p116
      %p180 = scmp.lt.s32.totalorder %s18, 1
      %s181 = scalar_select %p180, %s18, 1
      %p182 = scmp.lt.s32.totalorder %s19, 0
      %s183 = scalar_select %p182, %s19, 0
      %s184 = smul.addr %s183, 32
      %s185 = smul.addr %s181, 32
      %s186 = sadd.s32 %s184, %s185
      %s187 = smul.addr %s186, 8
      %s188 = scalar_lea.vmem %s3, %s187
      %p189 = scmp.lt.s32.totalorder %s18, 1
      %s190 = scalar_select %p189, %s18, 1
      %p191 = scmp.lt.s32.totalorder %s19, 0
      %s192 = scalar_select %p191, %s19, 0
      %s193 = smul.addr %s192, 36
      %s194 = smul.addr %s190, 36
      %s195 = sadd.s32 %s193, %s194
      %s196 = smul.addr %s195, 4
      %s197 = scalar_lea.vmem %s0, %s196
      %p198 = scmp.lt.s32.totalorder %s18, 1
      %s199 = scalar_select %p198, %s18, 1
      %p200 = scmp.lt.s32.totalorder %s19, 0
      %s201 = scalar_select %p200, %s19, 0
      %s202 = smul.addr %s201, 32
      %s203 = smul.addr %s199, 32
      %s204 = sadd.s32 %s202, %s203
      %s205 = smul.addr %s204, 8
      %s206 = scalar_lea.vmem %s3, %s205
      %v208 = vld [vmem:[%s2] sm:$0x1]
      %v210 = vlaneseq
      %v211 = vshrl.u32 %v210, 7
      %v212 = vsub.s32 0, %v211
      %v213 = vrot.slane %v208, %v212
      %v215 = vld [vmem:[%s197] sm:$0xf]
      %v216 = vld [vmem:[%s197 + $0x4] sm:$0xf]
      %v217 = vld [vmem:[%s197 + $0x8] sm:$0xf]
      %v218 = vld [vmem:[%s197 + $0xc] sm:$0xf]
      %v219 = vld [vmem:[%s197 + $0x10] sm:$0xf]
      %v220 = vld [vmem:[%s197 + $0x14] sm:$0xf]
      %v221 = vld [vmem:[%s197 + $0x18] sm:$0xf]
      %v222 = vld [vmem:[%s197 + $0x1c] sm:$0xf]
      %v223 = vld [vmem:[%s197 + $0x20] sm:$0xf]
      %v224 = vld [vmem:[%s197 + $0x24] sm:$0xf]
      %v225 = vld [vmem:[%s197 + $0x28] sm:$0xf]
      %v226 = vld [vmem:[%s197 + $0x2c] sm:$0xf]
      %v227 = vld [vmem:[%s197 + $0x30] sm:$0xf]
      %v228 = vld [vmem:[%s197 + $0x34] sm:$0xf]
      %v229 = vld [vmem:[%s197 + $0x38] sm:$0xf]
      %v230 = vld [vmem:[%s197 + $0x3c] sm:$0xf]
      %v231 = vld [vmem:[%s197 + $0x40] sm:$0xf]
      %v232 = vld [vmem:[%s197 + $0x44] sm:$0xf]
      %v233 = vld [vmem:[%s197 + $0x48] sm:$0xf]
      %v234 = vld [vmem:[%s197 + $0x4c] sm:$0xf]
      %v235 = vld [vmem:[%s197 + $0x50] sm:$0xf]
      %v236 = vld [vmem:[%s197 + $0x54] sm:$0xf]
      %v237 = vld [vmem:[%s197 + $0x58] sm:$0xf]
      %v238 = vld [vmem:[%s197 + $0x5c] sm:$0xf]
      %v239 = vld [vmem:[%s197 + $0x60] sm:$0xf]
      %v240 = vld [vmem:[%s197 + $0x64] sm:$0xf]
      %v241 = vld [vmem:[%s197 + $0x68] sm:$0xf]
      %v242 = vld [vmem:[%s197 + $0x6c] sm:$0xf]
      %v243 = vld [vmem:[%s197 + $0x70] sm:$0xf]
      %v244 = vld [vmem:[%s197 + $0x74] sm:$0xf]
      %v245 = vld [vmem:[%s197 + $0x78] sm:$0xf]
      %v246 = vld [vmem:[%s197 + $0x7c] sm:$0xf]
      %v247 = vld [vmem:[%s1] sm:$0xf]
      %v248 = vld [vmem:[%s1 + $0x4] sm:$0xf]
      %v249 = vld [vmem:[%s1 + $0x8] sm:$0xf]
      %v282 = vunpack.c.l.b16 %v215
      %v283 = vunpack.c.l.b16 %v216
      %v284 = vunpack.c.l.b16 %v217
      %v285 = vunpack.c.l.b16 %v218
      %v286 = vunpack.c.l.b16 %v219
      %v287 = vunpack.c.l.b16 %v220
      %v288 = vunpack.c.l.b16 %v221
      %v289 = vunpack.c.l.b16 %v222
      %v290 = vunpack.c.l.b16 %v223
      %v291 = vunpack.c.l.b16 %v224
      %v292 = vunpack.c.l.b16 %v225
      %v293 = vunpack.c.l.b16 %v226
      %v294 = vunpack.c.l.b16 %v227
      %v295 = vunpack.c.l.b16 %v228
      %v296 = vunpack.c.l.b16 %v229
      %v297 = vunpack.c.l.b16 %v230
      %v298 = vunpack.c.l.b16 %v231
      %v299 = vunpack.c.l.b16 %v232
      %v300 = vunpack.c.l.b16 %v233
      %v301 = vunpack.c.l.b16 %v234
      %v302 = vunpack.c.l.b16 %v235
      %v303 = vunpack.c.l.b16 %v236
      %v304 = vunpack.c.l.b16 %v237
      %v305 = vunpack.c.l.b16 %v238
      %v306 = vunpack.c.l.b16 %v239
      %v307 = vunpack.c.l.b16 %v240
      %v308 = vunpack.c.l.b16 %v241
      %v309 = vunpack.c.l.b16 %v242
      %v310 = vunpack.c.l.b16 %v243
      %v311 = vunpack.c.l.b16 %v244
      %v312 = vunpack.c.l.b16 %v245
      %v313 = vunpack.c.l.b16 %v246
      %v314 = vpack.c.b16 %v283, %v282
      %v315 = vpack.c.b16 %v285, %v284
      %v316 = vpack.c.b16 %v287, %v286
      %v317 = vpack.c.b16 %v289, %v288
      %v318 = vpack.c.b16 %v291, %v290
      %v319 = vpack.c.b16 %v293, %v292
      %v320 = vpack.c.b16 %v295, %v294
      %v321 = vpack.c.b16 %v297, %v296
      %v322 = vpack.c.b16 %v299, %v298
      %v323 = vpack.c.b16 %v301, %v300
      %v324 = vpack.c.b16 %v303, %v302
      %v325 = vpack.c.b16 %v305, %v304
      %v326 = vpack.c.b16 %v307, %v306
      %v327 = vpack.c.b16 %v309, %v308
      %v328 = vpack.c.b16 %v311, %v310
      %v329 = vpack.c.b16 %v313, %v312
      %v333 = vunpack.c.l.b16 %v247
      %v334 = vunpack.c.l.b16 %v248
      %v335 = vunpack.c.l.b16 %v249
      %v336 = vpack.c.b16 %v334, %v333
      %v337 = vpack.c.b16 %v335, %v335
      %vm339 = vcmask 195584
      %v341 = vsel %vm339, %v314, 0
      %v344 = vsel %vm339, %v315, 0
      %v347 = vsel %vm339, %v316, 0
      %v350 = vsel %vm339, %v317, 0
      %v353 = vsel %vm339, %v318, 0
      %v356 = vsel %vm339, %v319, 0
      %v359 = vsel %vm339, %v320, 0
      %v362 = vsel %vm339, %v321, 0
      %v365 = vsel %vm339, %v322, 0
      %v368 = vsel %vm339, %v323, 0
      %v371 = vsel %vm339, %v324, 0
      %v374 = vsel %vm339, %v325, 0
      %v377 = vsel %vm339, %v326, 0
      %v380 = vsel %vm339, %v327, 0
      %v383 = vsel %vm339, %v328, 0
      %v386 = vsel %vm339, %v329, 0
      %vm388 = vcmask 1043456
      %v390 = vsel %vm388, %v337, 0
      %392 = vmatprep.subr.bf16.mxu0 0
      %393 = vmatpush1.bf16.msra.mxu0 0
      %394 = vmatprep.subr.bf16.mxu0 0
      %395 = vmatpush1.bf16.msra.mxu0 0
      %396 = vmatprep.subr.bf16.mxu0 0
      %397 = vmatpush1.bf16.msra.mxu0 0
      %398 = vmatprep.subr.bf16.mxu0 0
      %399 = vmatpush1.bf16.msra.mxu0 0
      %400 = vmatprep.subr.bf16.mxu0 0
      %401 = vmatpush1.bf16.msra.mxu0 0
      %402 = vmatprep.subr.bf16.mxu0 0
      %403 = vmatpush1.bf16.msra.mxu0 0
      %404 = vmatprep.subr.bf16.mxu0 0
      %405 = vmatpush1.bf16.msra.mxu0 %v390
      %406 = vmatprep.subr.bf16.mxu0 0
      %407 = vmatpush1.bf16.msra.mxu0 %v336
      %408 = vmatprep.subr.bf16.mxu0 0
      %409 = vmatpush2.bf16.msra.mxu0 0
      %410 = vmatprep.subr.bf16.mxu0 0
      %411 = vmatpush2.bf16.msra.mxu0 0
      %412 = vmatprep.subr.bf16.mxu0 0
      %413 = vmatpush2.bf16.msra.mxu0 0
      %414 = vmatprep.subr.bf16.mxu0 0
      %415 = vmatpush2.bf16.msra.mxu0 0
      %416 = vmatprep.subr.bf16.mxu0 0
      %417 = vmatpush2.bf16.msra.mxu0 0
      %418 = vmatprep.subr.bf16.mxu0 0
      %419 = vmatpush2.bf16.msra.mxu0 0
      %420 = vmatprep.subr.bf16.mxu0 0
      %421 = vmatpush2.bf16.msra.mxu0 0
      %422 = vmatprep.subr.bf16.mxu0 0
      %423 = vmatpush2.bf16.msra.mxu0 0
      %424 = vmatprep.mubr.bf16.mxu0 0
      %425 = vmatmul.mubr.bf16.gmra.mxu0 %v341
      %v426 = vpop.f32.mrf.mxu0
      %v427 = vadd.f32 0.0, %v426
      %v428 = vpop.f32.mrf.mxu0
      %v429 = vpop.f32.mrf.mxu0
      %v430 = vadd.f32 0.0, %v429
      %v431 = vpop.f32.mrf.mxu0
      %432 = vmatprep.mubr.bf16.mxu0 0
      %433 = vmatmul.mubr.bf16.gmra.mxu0 %v344
      %v434 = vpop.f32.mrf.mxu0
      %v435 = vadd.f32 0.0, %v434
      %v436 = vpop.f32.mrf.mxu0
      %v437 = vpop.f32.mrf.mxu0
      %v438 = vadd.f32 0.0, %v437
      %v439 = vpop.f32.mrf.mxu0
      %440 = vmatprep.mubr.bf16.mxu0 0
      %441 = vmatmul.mubr.bf16.gmra.mxu0 %v347
      %v442 = vpop.f32.mrf.mxu0
      %v443 = vadd.f32 0.0, %v442
      %v444 = vpop.f32.mrf.mxu0
      %v445 = vpop.f32.mrf.mxu0
      %v446 = vadd.f32 0.0, %v445
      %v447 = vpop.f32.mrf.mxu0
      %448 = vmatprep.mubr.bf16.mxu0 0
      %449 = vmatmul.mubr.bf16.gmra.mxu0 %v350
      %v450 = vpop.f32.mrf.mxu0
      %v451 = vadd.f32 0.0, %v450
      %v452 = vpop.f32.mrf.mxu0
      %v453 = vpop.f32.mrf.mxu0
      %v454 = vadd.f32 0.0, %v453
      %v455 = vpop.f32.mrf.mxu0
      %456 = vmatprep.mubr.bf16.mxu0 0
      %457 = vmatmul.mubr.bf16.gmra.mxu0 %v353
      %v458 = vpop.f32.mrf.mxu0
      %v459 = vadd.f32 0.0, %v458
      %v460 = vpop.f32.mrf.mxu0
      %v461 = vpop.f32.mrf.mxu0
      %v462 = vadd.f32 0.0, %v461
      %v463 = vpop.f32.mrf.mxu0
      %464 = vmatprep.mubr.bf16.mxu0 0
      %465 = vmatmul.mubr.bf16.gmra.mxu0 %v356
      %v466 = vpop.f32.mrf.mxu0
      %v467 = vadd.f32 0.0, %v466
      %v468 = vpop.f32.mrf.mxu0
      %v469 = vpop.f32.mrf.mxu0
      %v470 = vadd.f32 0.0, %v469
      %v471 = vpop.f32.mrf.mxu0
      %472 = vmatprep.mubr.bf16.mxu0 0
      %473 = vmatmul.mubr.bf16.gmra.mxu0 %v359
      %v474 = vpop.f32.mrf.mxu0
      %v475 = vadd.f32 0.0, %v474
      %v476 = vpop.f32.mrf.mxu0
      %v477 = vpop.f32.mrf.mxu0
      %v478 = vadd.f32 0.0, %v477
      %v479 = vpop.f32.mrf.mxu0
      %480 = vmatprep.mubr.bf16.mxu0 0
      %481 = vmatmul.mubr.bf16.gmra.mxu0 %v362
      %v482 = vpop.f32.mrf.mxu0
      %v483 = vadd.f32 0.0, %v482
      %v484 = vpop.f32.mrf.mxu0
      %v485 = vpop.f32.mrf.mxu0
      %v486 = vadd.f32 0.0, %v485
      %v487 = vpop.f32.mrf.mxu0
      %488 = vmatprep.mubr.bf16.mxu0 0
      %489 = vmatmul.mubr.bf16.gmra.mxu0 %v365
      %v490 = vpop.f32.mrf.mxu0
      %v491 = vadd.f32 0.0, %v490
      %v492 = vpop.f32.mrf.mxu0
      %v493 = vpop.f32.mrf.mxu0
      %v494 = vadd.f32 0.0, %v493
      %v495 = vpop.f32.mrf.mxu0
      %496 = vmatprep.mubr.bf16.mxu0 0
      %497 = vmatmul.mubr.bf16.gmra.mxu0 %v368
      %v498 = vpop.f32.mrf.mxu0
      %v499 = vadd.f32 0.0, %v498
      %v500 = vpop.f32.mrf.mxu0
      %v501 = vpop.f32.mrf.mxu0
      %v502 = vadd.f32 0.0, %v501
      %v503 = vpop.f32.mrf.mxu0
      %504 = vmatprep.mubr.bf16.mxu0 0
      %505 = vmatmul.mubr.bf16.gmra.mxu0 %v371
      %v506 = vpop.f32.mrf.mxu0
      %v507 = vadd.f32 0.0, %v506
      %v508 = vpop.f32.mrf.mxu0
      %v509 = vpop.f32.mrf.mxu0
      %v510 = vadd.f32 0.0, %v509
      %v511 = vpop.f32.mrf.mxu0
      %512 = vmatprep.mubr.bf16.mxu0 0
      %513 = vmatmul.mubr.bf16.gmra.mxu0 %v374
      %v514 = vpop.f32.mrf.mxu0
      %v515 = vadd.f32 0.0, %v514
      %v516 = vpop.f32.mrf.mxu0
      %v517 = vpop.f32.mrf.mxu0
      %v518 = vadd.f32 0.0, %v517
      %v519 = vpop.f32.mrf.mxu0
      %520 = vmatprep.mubr.bf16.mxu0 0
      %521 = vmatmul.mubr.bf16.gmra.mxu0 %v377
      %v522 = vpop.f32.mrf.mxu0
      %v523 = vadd.f32 0.0, %v522
      %v524 = vpop.f32.mrf.mxu0
      %v525 = vpop.f32.mrf.mxu0
      %v526 = vadd.f32 0.0, %v525
      %v527 = vpop.f32.mrf.mxu0
      %528 = vmatprep.mubr.bf16.mxu0 0
      %529 = vmatmul.mubr.bf16.gmra.mxu0 %v380
      %v530 = vpop.f32.mrf.mxu0
      %v531 = vadd.f32 0.0, %v530
      %v532 = vpop.f32.mrf.mxu0
      %v533 = vpop.f32.mrf.mxu0
      %v534 = vadd.f32 0.0, %v533
      %v535 = vpop.f32.mrf.mxu0
      %536 = vmatprep.mubr.bf16.mxu0 0
      %537 = vmatmul.mubr.bf16.gmra.mxu0 %v383
      %v538 = vpop.f32.mrf.mxu0
      %v539 = vadd.f32 0.0, %v538
      %v540 = vpop.f32.mrf.mxu0
      %v541 = vpop.f32.mrf.mxu0
      %v542 = vadd.f32 0.0, %v541
      %v543 = vpop.f32.mrf.mxu0
      %544 = vmatprep.mubr.bf16.mxu0 0
      %545 = vmatmul.mubr.bf16.gmra.mxu0 %v386
      %v546 = vpop.f32.mrf.mxu0
      %v547 = vadd.f32 0.0, %v546
      %v548 = vpop.f32.mrf.mxu0
      %v549 = vpop.f32.mrf.mxu0
      %v550 = vadd.f32 0.0, %v549
      %v551 = vpop.f32.mrf.mxu0
      %552 = vdwg.mxu0
      %v553 = vadd.f32 %v213, %v427
      %v554 = vadd.f32 %v213, %v430
      %v555 = vadd.f32 %v213, %v435
      %v556 = vadd.f32 %v213, %v438
      %v557 = vadd.f32 %v213, %v443
      %v558 = vadd.f32 %v213, %v446
      %v559 = vadd.f32 %v213, %v451
      %v560 = vadd.f32 %v213, %v454
      %v561 = vadd.f32 %v213, %v459
      %v562 = vadd.f32 %v213, %v462
      %v563 = vadd.f32 %v213, %v467
      %v564 = vadd.f32 %v213, %v470
      %v565 = vadd.f32 %v213, %v475
      %v566 = vadd.f32 %v213, %v478
      %v567 = vadd.f32 %v213, %v483
      %v568 = vadd.f32 %v213, %v486
      %v569 = vadd.f32 %v213, %v491
      %v570 = vadd.f32 %v213, %v494
      %v571 = vadd.f32 %v213, %v499
      %v572 = vadd.f32 %v213, %v502
      %v573 = vadd.f32 %v213, %v507
      %v574 = vadd.f32 %v213, %v510
      %v575 = vadd.f32 %v213, %v515
      %v576 = vadd.f32 %v213, %v518
      %v577 = vadd.f32 %v213, %v523
      %v578 = vadd.f32 %v213, %v526
      %v579 = vadd.f32 %v213, %v531
      %v580 = vadd.f32 %v213, %v534
      %v581 = vadd.f32 %v213, %v539
      %v582 = vadd.f32 %v213, %v542
      %v583 = vadd.f32 %v213, %v547
      %v584 = vadd.f32 %v213, %v550
      %s585 = scalar_lea.vmem %s197, 8
      %v586 = vld [vmem:[%s585] sm:$0xf]
      %v587 = vld [vmem:[%s585 + $0x4] sm:$0xf]
      %v588 = vld [vmem:[%s585 + $0x8] sm:$0xf]
      %v589 = vld [vmem:[%s585 + $0xc] sm:$0xf]
      %v590 = vld [vmem:[%s585 + $0x10] sm:$0xf]
      %v591 = vld [vmem:[%s585 + $0x14] sm:$0xf]
      %v592 = vld [vmem:[%s585 + $0x18] sm:$0xf]
      %v593 = vld [vmem:[%s585 + $0x1c] sm:$0xf]
      %v594 = vld [vmem:[%s585 + $0x20] sm:$0xf]
      %v595 = vld [vmem:[%s585 + $0x24] sm:$0xf]
      %v596 = vld [vmem:[%s585 + $0x28] sm:$0xf]
      %v597 = vld [vmem:[%s585 + $0x2c] sm:$0xf]
      %v598 = vld [vmem:[%s585 + $0x30] sm:$0xf]
      %v599 = vld [vmem:[%s585 + $0x34] sm:$0xf]
      %v600 = vld [vmem:[%s585 + $0x38] sm:$0xf]
      %v601 = vld [vmem:[%s585 + $0x3c] sm:$0xf]
      %v602 = vld [vmem:[%s585 + $0x40] sm:$0xf]
      %v603 = vld [vmem:[%s585 + $0x44] sm:$0xf]
      %v604 = vld [vmem:[%s585 + $0x48] sm:$0xf]
      %v605 = vld [vmem:[%s585 + $0x4c] sm:$0xf]
      %v606 = vld [vmem:[%s585 + $0x50] sm:$0xf]
      %v607 = vld [vmem:[%s585 + $0x54] sm:$0xf]
      %v608 = vld [vmem:[%s585 + $0x58] sm:$0xf]
      %v609 = vld [vmem:[%s585 + $0x5c] sm:$0xf]
      %v610 = vld [vmem:[%s585 + $0x60] sm:$0xf]
      %v611 = vld [vmem:[%s585 + $0x64] sm:$0xf]
      %v612 = vld [vmem:[%s585 + $0x68] sm:$0xf]
      %v613 = vld [vmem:[%s585 + $0x6c] sm:$0xf]
      %v614 = vld [vmem:[%s585 + $0x70] sm:$0xf]
      %v615 = vld [vmem:[%s585 + $0x74] sm:$0xf]
      %v616 = vld [vmem:[%s585 + $0x78] sm:$0xf]
      %v617 = vld [vmem:[%s585 + $0x7c] sm:$0xf]
      %s618 = scalar_lea.vmem %s1, 12
      %v619 = vld [vmem:[%s618] sm:$0xf]
      %v620 = vld [vmem:[%s618 + $0x4] sm:$0xf]
      %v621 = vld [vmem:[%s618 + $0x8] sm:$0xf]
      %v654 = vunpack.c.l.b16 %v586
      %v655 = vunpack.c.l.b16 %v587
      %v656 = vunpack.c.l.b16 %v588
      %v657 = vunpack.c.l.b16 %v589
      %v658 = vunpack.c.l.b16 %v590
      %v659 = vunpack.c.l.b16 %v591
      %v660 = vunpack.c.l.b16 %v592
      %v661 = vunpack.c.l.b16 %v593
      %v662 = vunpack.c.l.b16 %v594
      %v663 = vunpack.c.l.b16 %v595
      %v664 = vunpack.c.l.b16 %v596
      %v665 = vunpack.c.l.b16 %v597
      %v666 = vunpack.c.l.b16 %v598
      %v667 = vunpack.c.l.b16 %v599
      %v668 = vunpack.c.l.b16 %v600
      %v669 = vunpack.c.l.b16 %v601
      %v670 = vunpack.c.l.b16 %v602
      %v671 = vunpack.c.l.b16 %v603
      %v672 = vunpack.c.l.b16 %v604
      %v673 = vunpack.c.l.b16 %v605
      %v674 = vunpack.c.l.b16 %v606
      %v675 = vunpack.c.l.b16 %v607
      %v676 = vunpack.c.l.b16 %v608
      %v677 = vunpack.c.l.b16 %v609
      %v678 = vunpack.c.l.b16 %v610
      %v679 = vunpack.c.l.b16 %v611
      %v680 = vunpack.c.l.b16 %v612
      %v681 = vunpack.c.l.b16 %v613
      %v682 = vunpack.c.l.b16 %v614
      %v683 = vunpack.c.l.b16 %v615
      %v684 = vunpack.c.l.b16 %v616
      %v685 = vunpack.c.l.b16 %v617
      %v686 = vpack.c.b16 %v655, %v654
      %v687 = vpack.c.b16 %v657, %v656
      %v688 = vpack.c.b16 %v659, %v658
      %v689 = vpack.c.b16 %v661, %v660
      %v690 = vpack.c.b16 %v663, %v662
      %v691 = vpack.c.b16 %v665, %v664
      %v692 = vpack.c.b16 %v667, %v666
      %v693 = vpack.c.b16 %v669, %v668
      %v694 = vpack.c.b16 %v671, %v670
      %v695 = vpack.c.b16 %v673, %v672
      %v696 = vpack.c.b16 %v675, %v674
      %v697 = vpack.c.b16 %v677, %v676
      %v698 = vpack.c.b16 %v679, %v678
      %v699 = vpack.c.b16 %v681, %v680
      %v700 = vpack.c.b16 %v683, %v682
      %v701 = vpack.c.b16 %v685, %v684
      %v705 = vunpack.c.l.b16 %v619
      %v706 = vunpack.c.l.b16 %v620
      %v707 = vunpack.c.l.b16 %v621
      %v708 = vpack.c.b16 %v706, %v705
      %v709 = vpack.c.b16 %v707, %v707
      %v712 = vsel %vm339, %v686, 0
      %v715 = vsel %vm339, %v687, 0
      %v718 = vsel %vm339, %v688, 0
      %v721 = vsel %vm339, %v689, 0
      %v724 = vsel %vm339, %v690, 0
      %v727 = vsel %vm339, %v691, 0
      %v730 = vsel %vm339, %v692, 0
      %v733 = vsel %vm339, %v693, 0
      %v736 = vsel %vm339, %v694, 0
      %v739 = vsel %vm339, %v695, 0
      %v742 = vsel %vm339, %v696, 0
      %v745 = vsel %vm339, %v697, 0
      %v748 = vsel %vm339, %v698, 0
      %v751 = vsel %vm339, %v699, 0
      %v754 = vsel %vm339, %v700, 0
      %v757 = vsel %vm339, %v701, 0
      %v760 = vsel %vm388, %v709, 0
      %762 = vmatprep.subr.bf16.mxu0 0
      %763 = vmatpush1.bf16.msra.mxu0 0
      %764 = vmatprep.subr.bf16.mxu0 0
      %765 = vmatpush1.bf16.msra.mxu0 0
      %766 = vmatprep.subr.bf16.mxu0 0
      %767 = vmatpush1.bf16.msra.mxu0 0
      %768 = vmatprep.subr.bf16.mxu0 0
      %769 = vmatpush1.bf16.msra.mxu0 0
      %770 = vmatprep.subr.bf16.mxu0 0
      %771 = vmatpush1.bf16.msra.mxu0 0
      %772 = vmatprep.subr.bf16.mxu0 0
      %773 = vmatpush1.bf16.msra.mxu0 0
      %774 = vmatprep.subr.bf16.mxu0 0
      %775 = vmatpush1.bf16.msra.mxu0 %v760
      %776 = vmatprep.subr.bf16.mxu0 0
      %777 = vmatpush1.bf16.msra.mxu0 %v708
      %778 = vmatprep.subr.bf16.mxu0 0
      %779 = vmatpush2.bf16.msra.mxu0 0
      %780 = vmatprep.subr.bf16.mxu0 0
      %781 = vmatpush2.bf16.msra.mxu0 0
      %782 = vmatprep.subr.bf16.mxu0 0
      %783 = vmatpush2.bf16.msra.mxu0 0
      %784 = vmatprep.subr.bf16.mxu0 0
      %785 = vmatpush2.bf16.msra.mxu0 0
      %786 = vmatprep.subr.bf16.mxu0 0
      %787 = vmatpush2.bf16.msra.mxu0 0
      %788 = vmatprep.subr.bf16.mxu0 0
      %789 = vmatpush2.bf16.msra.mxu0 0
      %790 = vmatprep.subr.bf16.mxu0 0
      %791 = vmatpush2.bf16.msra.mxu0 0
      %792 = vmatprep.subr.bf16.mxu0 0
      %793 = vmatpush2.bf16.msra.mxu0 0
      %794 = vmatprep.mubr.bf16.mxu0 0
      %795 = vmatmul.mubr.bf16.gmra.mxu0 %v712
      %v796 = vpop.f32.mrf.mxu0
      %v797 = vadd.f32 0.0, %v796
      %v798 = vpop.f32.mrf.mxu0
      %v799 = vpop.f32.mrf.mxu0
      %v800 = vadd.f32 0.0, %v799
      %v801 = vpop.f32.mrf.mxu0
      %802 = vmatprep.mubr.bf16.mxu0 0
      %803 = vmatmul.mubr.bf16.gmra.mxu0 %v715
      %v804 = vpop.f32.mrf.mxu0
      %v805 = vadd.f32 0.0, %v804
      %v806 = vpop.f32.mrf.mxu0
      %v807 = vpop.f32.mrf.mxu0
      %v808 = vadd.f32 0.0, %v807
      %v809 = vpop.f32.mrf.mxu0
      %810 = vmatprep.mubr.bf16.mxu0 0
      %811 = vmatmul.mubr.bf16.gmra.mxu0 %v718
      %v812 = vpop.f32.mrf.mxu0
      %v813 = vadd.f32 0.0, %v812
      %v814 = vpop.f32.mrf.mxu0
      %v815 = vpop.f32.mrf.mxu0
      %v816 = vadd.f32 0.0, %v815
      %v817 = vpop.f32.mrf.mxu0
      %818 = vmatprep.mubr.bf16.mxu0 0
      %819 = vmatmul.mubr.bf16.gmra.mxu0 %v721
      %v820 = vpop.f32.mrf.mxu0
      %v821 = vadd.f32 0.0, %v820
      %v822 = vpop.f32.mrf.mxu0
      %v823 = vpop.f32.mrf.mxu0
      %v824 = vadd.f32 0.0, %v823
      %v825 = vpop.f32.mrf.mxu0
      %826 = vmatprep.mubr.bf16.mxu0 0
      %827 = vmatmul.mubr.bf16.gmra.mxu0 %v724
      %v828 = vpop.f32.mrf.mxu0
      %v829 = vadd.f32 0.0, %v828
      %v830 = vpop.f32.mrf.mxu0
      %v831 = vpop.f32.mrf.mxu0
      %v832 = vadd.f32 0.0, %v831
      %v833 = vpop.f32.mrf.mxu0
      %834 = vmatprep.mubr.bf16.mxu0 0
      %835 = vmatmul.mubr.bf16.gmra.mxu0 %v727
      %v836 = vpop.f32.mrf.mxu0
      %v837 = vadd.f32 0.0, %v836
      %v838 = vpop.f32.mrf.mxu0
      %v839 = vpop.f32.mrf.mxu0
      %v840 = vadd.f32 0.0, %v839
      %v841 = vpop.f32.mrf.mxu0
      %842 = vmatprep.mubr.bf16.mxu0 0
      %843 = vmatmul.mubr.bf16.gmra.mxu0 %v730
      %v844 = vpop.f32.mrf.mxu0
      %v845 = vadd.f32 0.0, %v844
      %v846 = vpop.f32.mrf.mxu0
      %v847 = vpop.f32.mrf.mxu0
      %v848 = vadd.f32 0.0, %v847
      %v849 = vpop.f32.mrf.mxu0
      %850 = vmatprep.mubr.bf16.mxu0 0
      %851 = vmatmul.mubr.bf16.gmra.mxu0 %v733
      %v852 = vpop.f32.mrf.mxu0
      %v853 = vadd.f32 0.0, %v852
      %v854 = vpop.f32.mrf.mxu0
      %v855 = vpop.f32.mrf.mxu0
      %v856 = vadd.f32 0.0, %v855
      %v857 = vpop.f32.mrf.mxu0
      %858 = vmatprep.mubr.bf16.mxu0 0
      %859 = vmatmul.mubr.bf16.gmra.mxu0 %v736
      %v860 = vpop.f32.mrf.mxu0
      %v861 = vadd.f32 0.0, %v860
      %v862 = vpop.f32.mrf.mxu0
      %v863 = vpop.f32.mrf.mxu0
      %v864 = vadd.f32 0.0, %v863
      %v865 = vpop.f32.mrf.mxu0
      %866 = vmatprep.mubr.bf16.mxu0 0
      %867 = vmatmul.mubr.bf16.gmra.mxu0 %v739
      %v868 = vpop.f32.mrf.mxu0
      %v869 = vadd.f32 0.0, %v868
      %v870 = vpop.f32.mrf.mxu0
      %v871 = vpop.f32.mrf.mxu0
      %v872 = vadd.f32 0.0, %v871
      %v873 = vpop.f32.mrf.mxu0
      %874 = vmatprep.mubr.bf16.mxu0 0
      %875 = vmatmul.mubr.bf16.gmra.mxu0 %v742
      %v876 = vpop.f32.mrf.mxu0
      %v877 = vadd.f32 0.0, %v876
      %v878 = vpop.f32.mrf.mxu0
      %v879 = vpop.f32.mrf.mxu0
      %v880 = vadd.f32 0.0, %v879
      %v881 = vpop.f32.mrf.mxu0
      %882 = vmatprep.mubr.bf16.mxu0 0
      %883 = vmatmul.mubr.bf16.gmra.mxu0 %v745
      %v884 = vpop.f32.mrf.mxu0
      %v885 = vadd.f32 0.0, %v884
      %v886 = vpop.f32.mrf.mxu0
      %v887 = vpop.f32.mrf.mxu0
      %v888 = vadd.f32 0.0, %v887
      %v889 = vpop.f32.mrf.mxu0
      %890 = vmatprep.mubr.bf16.mxu0 0
      %891 = vmatmul.mubr.bf16.gmra.mxu0 %v748
      %v892 = vpop.f32.mrf.mxu0
      %v893 = vadd.f32 0.0, %v892
      %v894 = vpop.f32.mrf.mxu0
      %v895 = vpop.f32.mrf.mxu0
      %v896 = vadd.f32 0.0, %v895
      %v897 = vpop.f32.mrf.mxu0
      %898 = vmatprep.mubr.bf16.mxu0 0
      %899 = vmatmul.mubr.bf16.gmra.mxu0 %v751
      %v900 = vpop.f32.mrf.mxu0
      %v901 = vadd.f32 0.0, %v900
      %v902 = vpop.f32.mrf.mxu0
      %v903 = vpop.f32.mrf.mxu0
      %v904 = vadd.f32 0.0, %v903
      %v905 = vpop.f32.mrf.mxu0
      %906 = vmatprep.mubr.bf16.mxu0 0
      %907 = vmatmul.mubr.bf16.gmra.mxu0 %v754
      %v908 = vpop.f32.mrf.mxu0
      %v909 = vadd.f32 0.0, %v908
      %v910 = vpop.f32.mrf.mxu0
      %v911 = vpop.f32.mrf.mxu0
      %v912 = vadd.f32 0.0, %v911
      %v913 = vpop.f32.mrf.mxu0
      %914 = vmatprep.mubr.bf16.mxu0 0
      %915 = vmatmul.mubr.bf16.gmra.mxu0 %v757
      %v916 = vpop.f32.mrf.mxu0
      %v917 = vadd.f32 0.0, %v916
      %v918 = vpop.f32.mrf.mxu0
      %v919 = vpop.f32.mrf.mxu0
      %v920 = vadd.f32 0.0, %v919
      %v921 = vpop.f32.mrf.mxu0
      %922 = vdwg.mxu0
      %v923 = vadd.f32 %v553, %v797
      %v924 = vadd.f32 %v554, %v800
      %v925 = vadd.f32 %v555, %v805
      %v926 = vadd.f32 %v556, %v808
      %v927 = vadd.f32 %v557, %v813
      %v928 = vadd.f32 %v558, %v816
      %v929 = vadd.f32 %v559, %v821
      %v930 = vadd.f32 %v560, %v824
      %v931 = vadd.f32 %v561, %v829
      %v932 = vadd.f32 %v562, %v832
      %v933 = vadd.f32 %v563, %v837
      %v934 = vadd.f32 %v564, %v840
      %v935 = vadd.f32 %v565, %v845
      %v936 = vadd.f32 %v566, %v848
      %v937 = vadd.f32 %v567, %v853
      %v938 = vadd.f32 %v568, %v856
      %v939 = vadd.f32 %v569, %v861
      %v940 = vadd.f32 %v570, %v864
      %v941 = vadd.f32 %v571, %v869
      %v942 = vadd.f32 %v572, %v872
      %v943 = vadd.f32 %v573, %v877
      %v944 = vadd.f32 %v574, %v880
      %v945 = vadd.f32 %v575, %v885
      %v946 = vadd.f32 %v576, %v888
      %v947 = vadd.f32 %v577, %v893
      %v948 = vadd.f32 %v578, %v896
      %v949 = vadd.f32 %v579, %v901
      %v950 = vadd.f32 %v580, %v904
      %v951 = vadd.f32 %v581, %v909
      %v952 = vadd.f32 %v582, %v912
      %v953 = vadd.f32 %v583, %v917
      %v954 = vadd.f32 %v584, %v920
      %s955 = scalar_lea.vmem %s197, 16
      %v956 = vld [vmem:[%s955] sm:$0xf]
      %v957 = vld [vmem:[%s955 + $0x4] sm:$0xf]
      %v958 = vld [vmem:[%s955 + $0x8] sm:$0xf]
      %v959 = vld [vmem:[%s955 + $0xc] sm:$0xf]
      %v960 = vld [vmem:[%s955 + $0x10] sm:$0xf]
      %v961 = vld [vmem:[%s955 + $0x14] sm:$0xf]
      %v962 = vld [vmem:[%s955 + $0x18] sm:$0xf]
      %v963 = vld [vmem:[%s955 + $0x1c] sm:$0xf]
      %v964 = vld [vmem:[%s955 + $0x20] sm:$0xf]
      %v965 = vld [vmem:[%s955 + $0x24] sm:$0xf]
      %v966 = vld [vmem:[%s955 + $0x28] sm:$0xf]
      %v967 = vld [vmem:[%s955 + $0x2c] sm:$0xf]
      %v968 = vld [vmem:[%s955 + $0x30] sm:$0xf]
      %v969 = vld [vmem:[%s955 + $0x34] sm:$0xf]
      %v970 = vld [vmem:[%s955 + $0x38] sm:$0xf]
      %v971 = vld [vmem:[%s955 + $0x3c] sm:$0xf]
      %v972 = vld [vmem:[%s955 + $0x40] sm:$0xf]
      %v973 = vld [vmem:[%s955 + $0x44] sm:$0xf]
      %v974 = vld [vmem:[%s955 + $0x48] sm:$0xf]
      %v975 = vld [vmem:[%s955 + $0x4c] sm:$0xf]
      %v976 = vld [vmem:[%s955 + $0x50] sm:$0xf]
      %v977 = vld [vmem:[%s955 + $0x54] sm:$0xf]
      %v978 = vld [vmem:[%s955 + $0x58] sm:$0xf]
      %v979 = vld [vmem:[%s955 + $0x5c] sm:$0xf]
      %v980 = vld [vmem:[%s955 + $0x60] sm:$0xf]
      %v981 = vld [vmem:[%s955 + $0x64] sm:$0xf]
      %v982 = vld [vmem:[%s955 + $0x68] sm:$0xf]
      %v983 = vld [vmem:[%s955 + $0x6c] sm:$0xf]
      %v984 = vld [vmem:[%s955 + $0x70] sm:$0xf]
      %v985 = vld [vmem:[%s955 + $0x74] sm:$0xf]
      %v986 = vld [vmem:[%s955 + $0x78] sm:$0xf]
      %v987 = vld [vmem:[%s955 + $0x7c] sm:$0xf]
      %s988 = scalar_lea.vmem %s1, 24
      %v989 = vld [vmem:[%s988] sm:$0xf]
      %v990 = vld [vmem:[%s988 + $0x4] sm:$0xf]
      %v991 = vld [vmem:[%s988 + $0x8] sm:$0xf]
      %v1024 = vunpack.c.l.b16 %v956
      %v1025 = vunpack.c.l.b16 %v957
      %v1026 = vunpack.c.l.b16 %v958
      %v1027 = vunpack.c.l.b16 %v959
      %v1028 = vunpack.c.l.b16 %v960
      %v1029 = vunpack.c.l.b16 %v961
      %v1030 = vunpack.c.l.b16 %v962
      %v1031 = vunpack.c.l.b16 %v963
      %v1032 = vunpack.c.l.b16 %v964
      %v1033 = vunpack.c.l.b16 %v965
      %v1034 = vunpack.c.l.b16 %v966
      %v1035 = vunpack.c.l.b16 %v967
      %v1036 = vunpack.c.l.b16 %v968
      %v1037 = vunpack.c.l.b16 %v969
      %v1038 = vunpack.c.l.b16 %v970
      %v1039 = vunpack.c.l.b16 %v971
      %v1040 = vunpack.c.l.b16 %v972
      %v1041 = vunpack.c.l.b16 %v973
      %v1042 = vunpack.c.l.b16 %v974
      %v1043 = vunpack.c.l.b16 %v975
      %v1044 = vunpack.c.l.b16 %v976
      %v1045 = vunpack.c.l.b16 %v977
      %v1046 = vunpack.c.l.b16 %v978
      %v1047 = vunpack.c.l.b16 %v979
      %v1048 = vunpack.c.l.b16 %v980
      %v1049 = vunpack.c.l.b16 %v981
      %v1050 = vunpack.c.l.b16 %v982
      %v1051 = vunpack.c.l.b16 %v983
      %v1052 = vunpack.c.l.b16 %v984
      %v1053 = vunpack.c.l.b16 %v985
      %v1054 = vunpack.c.l.b16 %v986
      %v1055 = vunpack.c.l.b16 %v987
      %v1056 = vpack.c.b16 %v1025, %v1024
      %v1057 = vpack.c.b16 %v1027, %v1026
      %v1058 = vpack.c.b16 %v1029, %v1028
      %v1059 = vpack.c.b16 %v1031, %v1030
      %v1060 = vpack.c.b16 %v1033, %v1032
      %v1061 = vpack.c.b16 %v1035, %v1034
      %v1062 = vpack.c.b16 %v1037, %v1036
      %v1063 = vpack.c.b16 %v1039, %v1038
      %v1064 = vpack.c.b16 %v1041, %v1040
      %v1065 = vpack.c.b16 %v1043, %v1042
      %v1066 = vpack.c.b16 %v1045, %v1044
      %v1067 = vpack.c.b16 %v1047, %v1046
      %v1068 = vpack.c.b16 %v1049, %v1048
      %v1069 = vpack.c.b16 %v1051, %v1050
      %v1070 = vpack.c.b16 %v1053, %v1052
      %v1071 = vpack.c.b16 %v1055, %v1054
      %v1075 = vunpack.c.l.b16 %v989
      %v1076 = vunpack.c.l.b16 %v990
      %v1077 = vunpack.c.l.b16 %v991
      %v1078 = vpack.c.b16 %v1076, %v1075
      %v1079 = vpack.c.b16 %v1077, %v1077
      %v1082 = vsel %vm339, %v1056, 0
      %v1085 = vsel %vm339, %v1057, 0
      %v1088 = vsel %vm339, %v1058, 0
      %v1091 = vsel %vm339, %v1059, 0
      %v1094 = vsel %vm339, %v1060, 0
      %v1097 = vsel %vm339, %v1061, 0
      %v1100 = vsel %vm339, %v1062, 0
      %v1103 = vsel %vm339, %v1063, 0
      %v1106 = vsel %vm339, %v1064, 0
      %v1109 = vsel %vm339, %v1065, 0
      %v1112 = vsel %vm339, %v1066, 0
      %v1115 = vsel %vm339, %v1067, 0
      %v1118 = vsel %vm339, %v1068, 0
      %v1121 = vsel %vm339, %v1069, 0
      %v1124 = vsel %vm339, %v1070, 0
      %v1127 = vsel %vm339, %v1071, 0
      %v1130 = vsel %vm388, %v1079, 0
      %1132 = vmatprep.subr.bf16.mxu0 0
      %1133 = vmatpush1.bf16.msra.mxu0 0
      %1134 = vmatprep.subr.bf16.mxu0 0
      %1135 = vmatpush1.bf16.msra.mxu0 0
      %1136 = vmatprep.subr.bf16.mxu0 0
      %1137 = vmatpush1.bf16.msra.mxu0 0
      %1138 = vmatprep.subr.bf16.mxu0 0
      %1139 = vmatpush1.bf16.msra.mxu0 0
      %1140 = vmatprep.subr.bf16.mxu0 0
      %1141 = vmatpush1.bf16.msra.mxu0 0
      %1142 = vmatprep.subr.bf16.mxu0 0
      %1143 = vmatpush1.bf16.msra.mxu0 0
      %1144 = vmatprep.subr.bf16.mxu0 0
      %1145 = vmatpush1.bf16.msra.mxu0 %v1130
      %1146 = vmatprep.subr.bf16.mxu0 0
      %1147 = vmatpush1.bf16.msra.mxu0 %v1078
      %1148 = vmatprep.subr.bf16.mxu0 0
      %1149 = vmatpush2.bf16.msra.mxu0 0
      %1150 = vmatprep.subr.bf16.mxu0 0
      %1151 = vmatpush2.bf16.msra.mxu0 0
      %1152 = vmatprep.subr.bf16.mxu0 0
      %1153 = vmatpush2.bf16.msra.mxu0 0
      %1154 = vmatprep.subr.bf16.mxu0 0
      %1155 = vmatpush2.bf16.msra.mxu0 0
      %1156 = vmatprep.subr.bf16.mxu0 0
      %1157 = vmatpush2.bf16.msra.mxu0 0
      %1158 = vmatprep.subr.bf16.mxu0 0
      %1159 = vmatpush2.bf16.msra.mxu0 0
      %1160 = vmatprep.subr.bf16.mxu0 0
      %1161 = vmatpush2.bf16.msra.mxu0 0
      %1162 = vmatprep.subr.bf16.mxu0 0
      %1163 = vmatpush2.bf16.msra.mxu0 0
      %1164 = vmatprep.mubr.bf16.mxu0 0
      %1165 = vmatmul.mubr.bf16.gmra.mxu0 %v1082
      %v1166 = vpop.f32.mrf.mxu0
      %v1167 = vadd.f32 0.0, %v1166
      %v1168 = vpop.f32.mrf.mxu0
      %v1169 = vpop.f32.mrf.mxu0
      %v1170 = vadd.f32 0.0, %v1169
      %v1171 = vpop.f32.mrf.mxu0
      %1172 = vmatprep.mubr.bf16.mxu0 0
      %1173 = vmatmul.mubr.bf16.gmra.mxu0 %v1085
      %v1174 = vpop.f32.mrf.mxu0
      %v1175 = vadd.f32 0.0, %v1174
      %v1176 = vpop.f32.mrf.mxu0
      %v1177 = vpop.f32.mrf.mxu0
      %v1178 = vadd.f32 0.0, %v1177
      %v1179 = vpop.f32.mrf.mxu0
      %1180 = vmatprep.mubr.bf16.mxu0 0
      %1181 = vmatmul.mubr.bf16.gmra.mxu0 %v1088
      %v1182 = vpop.f32.mrf.mxu0
      %v1183 = vadd.f32 0.0, %v1182
      %v1184 = vpop.f32.mrf.mxu0
      %v1185 = vpop.f32.mrf.mxu0
      %v1186 = vadd.f32 0.0, %v1185
      %v1187 = vpop.f32.mrf.mxu0
      %1188 = vmatprep.mubr.bf16.mxu0 0
      %1189 = vmatmul.mubr.bf16.gmra.mxu0 %v1091
      %v1190 = vpop.f32.mrf.mxu0
      %v1191 = vadd.f32 0.0, %v1190
      %v1192 = vpop.f32.mrf.mxu0
      %v1193 = vpop.f32.mrf.mxu0
      %v1194 = vadd.f32 0.0, %v1193
      %v1195 = vpop.f32.mrf.mxu0
      %1196 = vmatprep.mubr.bf16.mxu0 0
      %1197 = vmatmul.mubr.bf16.gmra.mxu0 %v1094
      %v1198 = vpop.f32.mrf.mxu0
      %v1199 = vadd.f32 0.0, %v1198
      %v1200 = vpop.f32.mrf.mxu0
      %v1201 = vpop.f32.mrf.mxu0
      %v1202 = vadd.f32 0.0, %v1201
      %v1203 = vpop.f32.mrf.mxu0
      %1204 = vmatprep.mubr.bf16.mxu0 0
      %1205 = vmatmul.mubr.bf16.gmra.mxu0 %v1097
      %v1206 = vpop.f32.mrf.mxu0
      %v1207 = vadd.f32 0.0, %v1206
      %v1208 = vpop.f32.mrf.mxu0
      %v1209 = vpop.f32.mrf.mxu0
      %v1210 = vadd.f32 0.0, %v1209
      %v1211 = vpop.f32.mrf.mxu0
      %1212 = vmatprep.mubr.bf16.mxu0 0
      %1213 = vmatmul.mubr.bf16.gmra.mxu0 %v1100
      %v1214 = vpop.f32.mrf.mxu0
      %v1215 = vadd.f32 0.0, %v1214
      %v1216 = vpop.f32.mrf.mxu0
      %v1217 = vpop.f32.mrf.mxu0
      %v1218 = vadd.f32 0.0, %v1217
      %v1219 = vpop.f32.mrf.mxu0
      %1220 = vmatprep.mubr.bf16.mxu0 0
      %1221 = vmatmul.mubr.bf16.gmra.mxu0 %v1103
      %v1222 = vpop.f32.mrf.mxu0
      %v1223 = vadd.f32 0.0, %v1222
      %v1224 = vpop.f32.mrf.mxu0
      %v1225 = vpop.f32.mrf.mxu0
      %v1226 = vadd.f32 0.0, %v1225
      %v1227 = vpop.f32.mrf.mxu0
      %1228 = vmatprep.mubr.bf16.mxu0 0
      %1229 = vmatmul.mubr.bf16.gmra.mxu0 %v1106
      %v1230 = vpop.f32.mrf.mxu0
      %v1231 = vadd.f32 0.0, %v1230
      %v1232 = vpop.f32.mrf.mxu0
      %v1233 = vpop.f32.mrf.mxu0
      %v1234 = vadd.f32 0.0, %v1233
      %v1235 = vpop.f32.mrf.mxu0
      %1236 = vmatprep.mubr.bf16.mxu0 0
      %1237 = vmatmul.mubr.bf16.gmra.mxu0 %v1109
      %v1238 = vpop.f32.mrf.mxu0
      %v1239 = vadd.f32 0.0, %v1238
      %v1240 = vpop.f32.mrf.mxu0
      %v1241 = vpop.f32.mrf.mxu0
      %v1242 = vadd.f32 0.0, %v1241
      %v1243 = vpop.f32.mrf.mxu0
      %1244 = vmatprep.mubr.bf16.mxu0 0
      %1245 = vmatmul.mubr.bf16.gmra.mxu0 %v1112
      %v1246 = vpop.f32.mrf.mxu0
      %v1247 = vadd.f32 0.0, %v1246
      %v1248 = vpop.f32.mrf.mxu0
      %v1249 = vpop.f32.mrf.mxu0
      %v1250 = vadd.f32 0.0, %v1249
      %v1251 = vpop.f32.mrf.mxu0
      %1252 = vmatprep.mubr.bf16.mxu0 0
      %1253 = vmatmul.mubr.bf16.gmra.mxu0 %v1115
      %v1254 = vpop.f32.mrf.mxu0
      %v1255 = vadd.f32 0.0, %v1254
      %v1256 = vpop.f32.mrf.mxu0
      %v1257 = vpop.f32.mrf.mxu0
      %v1258 = vadd.f32 0.0, %v1257
      %v1259 = vpop.f32.mrf.mxu0
      %1260 = vmatprep.mubr.bf16.mxu0 0
      %1261 = vmatmul.mubr.bf16.gmra.mxu0 %v1118
      %v1262 = vpop.f32.mrf.mxu0
      %v1263 = vadd.f32 0.0, %v1262
      %v1264 = vpop.f32.mrf.mxu0
      %v1265 = vpop.f32.mrf.mxu0
      %v1266 = vadd.f32 0.0, %v1265
      %v1267 = vpop.f32.mrf.mxu0
      %1268 = vmatprep.mubr.bf16.mxu0 0
      %1269 = vmatmul.mubr.bf16.gmra.mxu0 %v1121
      %v1270 = vpop.f32.mrf.mxu0
      %v1271 = vadd.f32 0.0, %v1270
      %v1272 = vpop.f32.mrf.mxu0
      %v1273 = vpop.f32.mrf.mxu0
      %v1274 = vadd.f32 0.0, %v1273
      %v1275 = vpop.f32.mrf.mxu0
      %1276 = vmatprep.mubr.bf16.mxu0 0
      %1277 = vmatmul.mubr.bf16.gmra.mxu0 %v1124
      %v1278 = vpop.f32.mrf.mxu0
      %v1279 = vadd.f32 0.0, %v1278
      %v1280 = vpop.f32.mrf.mxu0
      %v1281 = vpop.f32.mrf.mxu0
      %v1282 = vadd.f32 0.0, %v1281
      %v1283 = vpop.f32.mrf.mxu0
      %1284 = vmatprep.mubr.bf16.mxu0 0
      %1285 = vmatmul.mubr.bf16.gmra.mxu0 %v1127
      %v1286 = vpop.f32.mrf.mxu0
      %v1287 = vadd.f32 0.0, %v1286
      %v1288 = vpop.f32.mrf.mxu0
      %v1289 = vpop.f32.mrf.mxu0
      %v1290 = vadd.f32 0.0, %v1289
      %v1291 = vpop.f32.mrf.mxu0
      %1292 = vdwg.mxu0
      %v1293 = vadd.f32 %v923, %v1167
      %v1294 = vadd.f32 %v924, %v1170
      %v1295 = vadd.f32 %v925, %v1175
      %v1296 = vadd.f32 %v926, %v1178
      %v1297 = vadd.f32 %v927, %v1183
      %v1298 = vadd.f32 %v928, %v1186
      %v1299 = vadd.f32 %v929, %v1191
      %v1300 = vadd.f32 %v930, %v1194
      %v1301 = vadd.f32 %v931, %v1199
      %v1302 = vadd.f32 %v932, %v1202
      %v1303 = vadd.f32 %v933, %v1207
      %v1304 = vadd.f32 %v934, %v1210
      %v1305 = vadd.f32 %v935, %v1215
      %v1306 = vadd.f32 %v936, %v1218
      %v1307 = vadd.f32 %v937, %v1223
      %v1308 = vadd.f32 %v938, %v1226
      %v1309 = vadd.f32 %v939, %v1231
      %v1310 = vadd.f32 %v940, %v1234
      %v1311 = vadd.f32 %v941, %v1239
      %v1312 = vadd.f32 %v942, %v1242
      %v1313 = vadd.f32 %v943, %v1247
      %v1314 = vadd.f32 %v944, %v1250
      %v1315 = vadd.f32 %v945, %v1255
      %v1316 = vadd.f32 %v946, %v1258
      %v1317 = vadd.f32 %v947, %v1263
      %v1318 = vadd.f32 %v948, %v1266
      %v1319 = vadd.f32 %v949, %v1271
      %v1320 = vadd.f32 %v950, %v1274
      %v1321 = vadd.f32 %v951, %v1279
      %v1322 = vadd.f32 %v952, %v1282
      %v1323 = vadd.f32 %v953, %v1287
      %v1324 = vadd.f32 %v954, %v1290
      %v1325 = vmax.f32 %v1293, 0.0
      %v1326 = vmax.f32 %v1294, 0.0
      %v1327 = vmax.f32 %v1295, 0.0
      %v1328 = vmax.f32 %v1296, 0.0
      %v1329 = vmax.f32 %v1297, 0.0
      %v1330 = vmax.f32 %v1298, 0.0
      %v1331 = vmax.f32 %v1299, 0.0
      %v1332 = vmax.f32 %v1300, 0.0
      %v1333 = vmax.f32 %v1301, 0.0
      %v1334 = vmax.f32 %v1302, 0.0
      %v1335 = vmax.f32 %v1303, 0.0
      %v1336 = vmax.f32 %v1304, 0.0
      %v1337 = vmax.f32 %v1305, 0.0
      %v1338 = vmax.f32 %v1306, 0.0
      %v1339 = vmax.f32 %v1307, 0.0
      %v1340 = vmax.f32 %v1308, 0.0
      %v1341 = vmax.f32 %v1309, 0.0
      %v1342 = vmax.f32 %v1310, 0.0
      %v1343 = vmax.f32 %v1311, 0.0
      %v1344 = vmax.f32 %v1312, 0.0
      %v1345 = vmax.f32 %v1313, 0.0
      %v1346 = vmax.f32 %v1314, 0.0
      %v1347 = vmax.f32 %v1315, 0.0
      %v1348 = vmax.f32 %v1316, 0.0
      %v1349 = vmax.f32 %v1317, 0.0
      %v1350 = vmax.f32 %v1318, 0.0
      %v1351 = vmax.f32 %v1319, 0.0
      %v1352 = vmax.f32 %v1320, 0.0
      %v1353 = vmax.f32 %v1321, 0.0
      %v1354 = vmax.f32 %v1322, 0.0
      %v1355 = vmax.f32 %v1323, 0.0
      %v1356 = vmax.f32 %v1324, 0.0
      %vm1357 = vcmask 130048
      %1358 = vst.msk [vmem:[%s206] sm:$0xff] %vm1357, %v1325
      %1359 = vst.msk [vmem:[%s206 + $0x8] sm:$0xff] %vm1357, %v1326
      %1360 = vst.msk [vmem:[%s206 + $0x10] sm:$0xff] %vm1357, %v1327
      %1361 = vst.msk [vmem:[%s206 + $0x18] sm:$0xff] %vm1357, %v1328
      %1362 = vst.msk [vmem:[%s206 + $0x20] sm:$0xff] %vm1357, %v1329
      %1363 = vst.msk [vmem:[%s206 + $0x28] sm:$0xff] %vm1357, %v1330
      %1364 = vst.msk [vmem:[%s206 + $0x30] sm:$0xff] %vm1357, %v1331
      %1365 = vst.msk [vmem:[%s206 + $0x38] sm:$0xff] %vm1357, %v1332
      %1366 = vst.msk [vmem:[%s206 + $0x40] sm:$0xff] %vm1357, %v1333
      %1367 = vst.msk [vmem:[%s206 + $0x48] sm:$0xff] %vm1357, %v1334
      %1368 = vst.msk [vmem:[%s206 + $0x50] sm:$0xff] %vm1357, %v1335
      %1369 = vst.msk [vmem:[%s206 + $0x58] sm:$0xff] %vm1357, %v1336
      %1370 = vst.msk [vmem:[%s206 + $0x60] sm:$0xff] %vm1357, %v1337
      %1371 = vst.msk [vmem:[%s206 + $0x68] sm:$0xff] %vm1357, %v1338
      %1372 = vst.msk [vmem:[%s206 + $0x70] sm:$0xff] %vm1357, %v1339
      %1373 = vst.msk [vmem:[%s206 + $0x78] sm:$0xff] %vm1357, %v1340
      %1374 = vst.msk [vmem:[%s206 + $0x80] sm:$0xff] %vm1357, %v1341
      %1375 = vst.msk [vmem:[%s206 + $0x88] sm:$0xff] %vm1357, %v1342
      %1376 = vst.msk [vmem:[%s206 + $0x90] sm:$0xff] %vm1357, %v1343
      %1377 = vst.msk [vmem:[%s206 + $0x98] sm:$0xff] %vm1357, %v1344
      %1378 = vst.msk [vmem:[%s206 + $0xa0] sm:$0xff] %vm1357, %v1345
      %1379 = vst.msk [vmem:[%s206 + $0xa8] sm:$0xff] %vm1357, %v1346
      %1380 = vst.msk [vmem:[%s206 + $0xb0] sm:$0xff] %vm1357, %v1347
      %1381 = vst.msk [vmem:[%s206 + $0xb8] sm:$0xff] %vm1357, %v1348
      %1382 = vst.msk [vmem:[%s206 + $0xc0] sm:$0xff] %vm1357, %v1349
      %1383 = vst.msk [vmem:[%s206 + $0xc8] sm:$0xff] %vm1357, %v1350
      %1384 = vst.msk [vmem:[%s206 + $0xd0] sm:$0xff] %vm1357, %v1351
      %1385 = vst.msk [vmem:[%s206 + $0xd8] sm:$0xff] %vm1357, %v1352
      %1386 = vst.msk [vmem:[%s206 + $0xe0] sm:$0xff] %vm1357, %v1353
      %1387 = vst.msk [vmem:[%s206 + $0xe8] sm:$0xff] %vm1357, %v1354
      %1388 = vst.msk [vmem:[%s206 + $0xf0] sm:$0xff] %vm1357, %v1355
      %1389 = vst.msk [vmem:[%s206 + $0xf8] sm:$0xff] %vm1357, %v1356
      %p1390 = scmp.lt.s32.totalorder %s18, 1
      %s1391 = scalar_select %p1390, %s18, 1
      %p1392 = scmp.lt.s32.totalorder %s19, 0
      %s1393 = scalar_select %p1392, %s19, 0
      %s1394 = smul.addr %s1393, 32
      %s1395 = smul.addr %s1391, 32
      %s1396 = sadd.s32 %s1394, %s1395
      %s1397 = smul.addr %s1396, 8
      %s1398 = scalar_lea.vmem %s3, %s1397
      // Predicated region
      $region33: #{_lambda_.5} parent=31 // pred_check
        %p1399 = pneg %p116
      $region34: #{_lambda_.5} parent=31 // pred_check_branch
        %1401 = sbr.rel (%p1399) target = $region36
      $region35: #{_lambda_.5} parent=31 // pred_region
        _
      $region36: #{_lambda_.5} parent=31 // pred_fallthru
        _
    $region32: #{_lambda_.5} parent=5 // pred_fallthru
      _
    %p1402 = scmp.le.s32.totalorder 2, %s9
    // Predicated region
    $region37: #{_lambda_.5} parent=5 // pred_check
      %p1403 = pneg %p1402
    $region38: #{_lambda_.5} parent=5 // pred_check_branch
      %1405 = sbr.rel (%p1403) target = $region40
    $region39: #{_lambda_.5} parent=5 // pred_region
      %s1406 = ssub.s32 %s9, 2
      // Predicated region
      $region41: #{_lambda_.5} parent=39 // pred_check
        %p1407 = pneg %p122
      $region42: #{_lambda_.5} parent=39 // pred_check_branch
        %1409 = sbr.rel (%p1407) target = $region44
      $region43: #{_lambda_.5} parent=39 // pred_region
        %p1410 = scmp.lt.s32.totalorder %s20, 1
        %s1411 = scalar_select %p1410, %s20, 1
        %p1412 = scmp.lt.s32.totalorder %s21, 0
        %s1413 = scalar_select %p1412, %s21, 0
        %s1414 = smul.addr %s1413, 32
        %s1415 = smul.addr %s1411, 32
        %s1416 = sadd.s32 %s1414, %s1415
        %s1417 = smul.addr %s1416, 8
        %s1418 = scalar_lea.vmem %s3, %s1417
      $region44: #{_lambda_.5} parent=39 // pred_fallthru
        _
    $region40: #{_lambda_.5} parent=5 // pred_fallthru
      _
  $region6: #{_lambda_.5} parent=0 // loop_footer
    %s13 = sadd.s32 1, %s9
  $region7: #{_lambda_.5} parent=0 // loop_footer_branch
    %8 = sbr.rel target = $region3
  $region8: #{_lambda_.5} parent=0 // loop_exit
    _

// kernel: _lambda_.6
$region0: #{_lambda_.6}
  #allocation0 [shape = 'u32[]', space=smem, size = 0x4, offset = 0x4, fixed_abs, tag = 'smem constant byte address 0x4 - core index']
  #allocation1 [shape = 'u32[144,128]{1,0:T(1,128)}', space=vmem, size = 0x12000, scoped, tag = 'internal scratch']
  %s0 = inlined_call_operand.vmem [shape: f32[16,2,8,32], index: 0, kind: input, shape index: {}]
  %s1 = inlined_call_operand.vmem [shape: f32[16,8,16], index: 1, kind: output, shape index: {}]
  %s2 = sld [smem:[#allocation0]]
  $region14: #{_lambda_.6} parent=0
    _
  %s4 = ssub.s32 1, %s2
  %s5 = scalar_select 0, %s4, %s2
  // Predicated region
  $region2: #{_lambda_.6} parent=0 // pred_check
    _
  $region3: #{_lambda_.6} parent=0 // pred_check_branch
    %7 = sbr.rel (0) target = $region5
  $region4: #{_lambda_.6} parent=0 // pred_region
    _
  $region5: #{_lambda_.6} parent=0 // pred_fallthru
    _
  %v8 = vld [vmem:[%s0] sm:$0xff]
  %v9 = vld [vmem:[%s0 + $0x8] sm:$0xff]
  %v10 = vld [vmem:[%s0 + $0x10] sm:$0xff]
  %v11 = vld [vmem:[%s0 + $0x18] sm:$0xff]
  %v12 = vld [vmem:[%s0 + $0x20] sm:$0xff]
  %v13 = vld [vmem:[%s0 + $0x28] sm:$0xff]
  %v14 = vld [vmem:[%s0 + $0x30] sm:$0xff]
  %v15 = vld [vmem:[%s0 + $0x38] sm:$0xff]
  %v16 = vld [vmem:[%s0 + $0x40] sm:$0xff]
  %v17 = vld [vmem:[%s0 + $0x48] sm:$0xff]
  %v18 = vld [vmem:[%s0 + $0x50] sm:$0xff]
  %v19 = vld [vmem:[%s0 + $0x58] sm:$0xff]
  %v20 = vld [vmem:[%s0 + $0x60] sm:$0xff]
  %v21 = vld [vmem:[%s0 + $0x68] sm:$0xff]
  %v22 = vld [vmem:[%s0 + $0x70] sm:$0xff]
  %v23 = vld [vmem:[%s0 + $0x78] sm:$0xff]
  %v24 = vld [vmem:[%s0 + $0x80] sm:$0xff]
  %v25 = vld [vmem:[%s0 + $0x88] sm:$0xff]
  %v26 = vld [vmem:[%s0 + $0x90] sm:$0xff]
  %v27 = vld [vmem:[%s0 + $0x98] sm:$0xff]
  %v28 = vld [vmem:[%s0 + $0xa0] sm:$0xff]
  %v29 = vld [vmem:[%s0 + $0xa8] sm:$0xff]
  %v30 = vld [vmem:[%s0 + $0xb0] sm:$0xff]
  %v31 = vld [vmem:[%s0 + $0xb8] sm:$0xff]
  %v32 = vld [vmem:[%s0 + $0xc0] sm:$0xff]
  %v33 = vld [vmem:[%s0 + $0xc8] sm:$0xff]
  %v34 = vld [vmem:[%s0 + $0xd0] sm:$0xff]
  %v35 = vld [vmem:[%s0 + $0xd8] sm:$0xff]
  %v36 = vld [vmem:[%s0 + $0xe0] sm:$0xff]
  %v37 = vld [vmem:[%s0 + $0xe8] sm:$0xff]
  %v38 = vld [vmem:[%s0 + $0xf0] sm:$0xff]
  %v39 = vld [vmem:[%s0 + $0xf8] sm:$0xff]
  %v40 = vmax.f32 %v8, %v9
  %v41 = vmax.f32 %v10, %v11
  %v42 = vmax.f32 %v12, %v13
  %v43 = vmax.f32 %v14, %v15
  %v44 = vmax.f32 %v16, %v17
  %v45 = vmax.f32 %v18, %v19
  %v46 = vmax.f32 %v20, %v21
  %v47 = vmax.f32 %v22, %v23
  %v48 = vmax.f32 %v24, %v25
  %v49 = vmax.f32 %v26, %v27
  %v50 = vmax.f32 %v28, %v29
  %v51 = vmax.f32 %v30, %v31
  %v52 = vmax.f32 %v32, %v33
  %v53 = vmax.f32 %v34, %v35
  %v54 = vmax.f32 %v36, %v37
  %v55 = vmax.f32 %v38, %v39
  %72 = vrot.lane.b32.xlu0 %v40, 112
  %v73 = vpop.permute.xlu0 %72
  %74 = vrot.lane.b32.xlu0 %v41, 112
  %v75 = vpop.permute.xlu0 %74
  %76 = vrot.lane.b32.xlu0 %v42, 112
  %v77 = vpop.permute.xlu0 %76
  %78 = vrot.lane.b32.xlu0 %v43, 112
  %v79 = vpop.permute.xlu0 %78
  %80 = vrot.lane.b32.xlu0 %v44, 112
  %v81 = vpop.permute.xlu0 %80
  %82 = vrot.lane.b32.xlu0 %v45, 112
  %v83 = vpop.permute.xlu0 %82
  %84 = vrot.lane.b32.xlu0 %v46, 112
  %v85 = vpop.permute.xlu0 %84
  %86 = vrot.lane.b32.xlu0 %v47, 112
  %v87 = vpop.permute.xlu0 %86
  %88 = vrot.lane.b32.xlu0 %v48, 112
  %v89 = vpop.permute.xlu0 %88
  %90 = vrot.lane.b32.xlu0 %v49, 112
  %v91 = vpop.permute.xlu0 %90
  %92 = vrot.lane.b32.xlu0 %v50, 112
  %v93 = vpop.permute.xlu0 %92
  %94 = vrot.lane.b32.xlu0 %v51, 112
  %v95 = vpop.permute.xlu0 %94
  %96 = vrot.lane.b32.xlu0 %v52, 112
  %v97 = vpop.permute.xlu0 %96
  %98 = vrot.lane.b32.xlu0 %v53, 112
  %v99 = vpop.permute.xlu0 %98
  %100 = vrot.lane.b32.xlu0 %v54, 112
  %v101 = vpop.permute.xlu0 %100
  %102 = vrot.lane.b32.xlu0 %v55, 112
  %v103 = vpop.permute.xlu0 %102
  %v120 = vmax.f32 %v40, %v73
  %v121 = vmax.f32 %v41, %v75
  %v122 = vmax.f32 %v42, %v77
  %v123 = vmax.f32 %v43, %v79
  %v124 = vmax.f32 %v44, %v81
  %v125 = vmax.f32 %v45, %v83
  %v126 = vmax.f32 %v46, %v85
  %v127 = vmax.f32 %v47, %v87
  %v128 = vmax.f32 %v48, %v89
  %v129 = vmax.f32 %v49, %v91
  %v130 = vmax.f32 %v50, %v93
  %v131 = vmax.f32 %v51, %v95
  %v132 = vmax.f32 %v52, %v97
  %v133 = vmax.f32 %v53, %v99
  %v134 = vmax.f32 %v54, %v101
  %v135 = vmax.f32 %v55, %v103
  %vm136 = vcmask 130048
  %137 = vst.msk [vmem:[%s1] sm:$0xff] %vm136, %v120
  %138 = vst.msk [vmem:[%s1 + $0x8] sm:$0xff] %vm136, %v121
  %139 = vst.msk [vmem:[%s1 + $0x10] sm:$0xff] %vm136, %v122
  %140 = vst.msk [vmem:[%s1 + $0x18] sm:$0xff] %vm136, %v123
  %141 = vst.msk [vmem:[%s1 + $0x20] sm:$0xff] %vm136, %v124
  %142 = vst.msk [vmem:[%s1 + $0x28] sm:$0xff] %vm136, %v125
  %143 = vst.msk [vmem:[%s1 + $0x30] sm:$0xff] %vm136, %v126
  %144 = vst.msk [vmem:[%s1 + $0x38] sm:$0xff] %vm136, %v127
  %145 = vst.msk [vmem:[%s1 + $0x40] sm:$0xff] %vm136, %v128
  %146 = vst.msk [vmem:[%s1 + $0x48] sm:$0xff] %vm136, %v129
  %147 = vst.msk [vmem:[%s1 + $0x50] sm:$0xff] %vm136, %v130
  %148 = vst.msk [vmem:[%s1 + $0x58] sm:$0xff] %vm136, %v131
  %149 = vst.msk [vmem:[%s1 + $0x60] sm:$0xff] %vm136, %v132
  %150 = vst.msk [vmem:[%s1 + $0x68] sm:$0xff] %vm136, %v133
  %151 = vst.msk [vmem:[%s1 + $0x70] sm:$0xff] %vm136, %v134
  %152 = vst.msk [vmem:[%s1 + $0x78] sm:$0xff] %vm136, %v135
  // Predicated region
  $region6: #{_lambda_.6} parent=0 // pred_check
    _
  $region7: #{_lambda_.6} parent=0 // pred_check_branch
    %154 = sbr.rel (0) target = $region9
  $region8: #{_lambda_.6} parent=0 // pred_region
    _
  $region9: #{_lambda_.6} parent=0 // pred_fallthru
    _
  // Predicated region
  $region10: #{_lambda_.6} parent=0 // pred_check
    _
  $region11: #{_lambda_.6} parent=0 // pred_check_branch
    %156 = sbr.rel (0) target = $region13
  $region12: #{_lambda_.6} parent=0 // pred_region
    _
  $region13: #{_lambda_.6} parent=0 // pred_fallthru
    _

// kernel: _lambda_.7
$region0: #{_lambda_.7}
  #allocation0 [shape = 'u32[]', space=smem, size = 0x4, offset = 0x4, fixed_abs, tag = 'smem constant byte address 0x4 - core index']
  #allocation1 [shape = 'u32[144,128]{1,0:T(1,128)}', space=vmem, size = 0x12000, scoped, tag = 'internal scratch']
  %s0 = inlined_call_operand.vmem [shape: bf16[2,1,10,8,48], index: 0, kind: input, shape index: {}]
  %s1 = inlined_call_operand.vmem [shape: bf16[3,48,16], index: 1, kind: input, shape index: {}]
  %s2 = inlined_call_operand.vmem [shape: f32[1,16], index: 2, kind: input, shape index: {}]
  %s3 = inlined_call_operand.vmem [shape: f32[2,1,64,16], index: 3, kind: output, shape index: {}]
  %s4 = sld [smem:[#allocation0]]
  $region45: #{_lambda_.7} parent=0
    _
  %s6 = ssub.s32 1, %s4
  %s7 = scalar_select 0, %s6, %s4
  loop: start=0, step=1, limit=4
  $region2: #{_lambda_.7} parent=0 // loop_pre_header
    _
  $region3: #{_lambda_.7} parent=0 // loop_header
    %s9 = sphi 0, %s13
    %p10 = scmp.ge.s32.totalorder %s9, 4
    %s16 = sphi 0, %s28
    %s17 = sphi 0, %s24
    %s18 = sphi 0, %s16
    %s19 = sphi 0, %s17
    %s20 = sphi 0, %s18
    %s21 = sphi 0, %s19
    %s33 = sphi 0, %s35
    %s36 = sphi 0, %s33
    %s37 = sphi 0, %s36
    %s53 = sphi 0, %s37
    %s57 = sphi 0, %s57
    %s59 = sphi 0, %s57
    %s60 = sphi 0, %s59
    %s74 = sphi 0, %s60
    %s78 = sphi 0, %s78
    %s80 = sphi 0, %s78
    %s81 = sphi 0, %s80
    %s95 = sphi 0, %s81
    %s103 = sphi 0, %s105
    %s106 = sphi 0, %s103
    %s107 = sphi 0, %s106
    %s123 = sphi 0, %s107
  $region4: #{_lambda_.7} parent=0 // loop_header_branch
    %12 = sbr.rel (%p10) target = $region8
  $region5: #{_lambda_.7} parent=0 // loop_body
    %s14 = ssub.s32 %s9, 1
    %s15 = ssub.s32 %s9, 2
    %s22 = sadd.s32 1, %s17
    %p23 = scmp.ge.s32.totalorder %s22, 1
    %s24 = scalar_select %p23, 0, %s22
    %s25 = sadd.s32 1, %s16
    %s26 = scalar_select %p23, %s25, %s16
    %p27 = scmp.ge.s32.totalorder %s26, 2
    %s28 = scalar_select %p27, 0, %s26
    %s29 = ssub.s32 %s16, %s28
    %s30 = ssub.s32 %s17, %s24
    %s31 = sor.u32 %s29, %s30
    %p32 = scmp.eq.s32.totalorder %s31, 0
    %s34 = sadd.s32 %s33, 1
    %s35 = scalar_select %p32, %s33, %s34
    %p38 = pneg %p32
    %p39 = scmp.eq.s32.totalorder %s9, 1
    %p40 = por %p38, %p39
    %p41 = scmp.ne.s32.totalorder %s33, %s36
    %p42 = scmp.eq.s32.totalorder %s9, 0
    %p43 = por %p41, %p42
    %p44 = scmp.ne.s32.totalorder %s33, %s36
    %p45 = scmp.eq.s32.totalorder %s14, 1
    %p46 = por %p44, %p45
    %p47 = scmp.ne.s32.totalorder %s36, %s37
    %p48 = scmp.eq.s32.totalorder %s14, 0
    %p49 = por %p47, %p48
    %p50 = scmp.ne.s32.totalorder %s36, %s37
    %p51 = scmp.eq.s32.totalorder %s15, 1
    %p52 = por %p50, %p51
    %p54 = scmp.ne.s32.totalorder %s37, %s53
    %p55 = scmp.eq.s32.totalorder %s15, 0
    %p56 = por %p54, %p55
    %s58 = sadd.s32 %s57, 1
    %p61 = scmp.eq.s32.totalorder %s9, 1
    %p62 = scmp.ne.s32.totalorder %s57, %s59
    %p63 = scmp.eq.s32.totalorder %s9, 0
    %p64 = por %p62, %p63
    %p65 = scmp.ne.s32.totalorder %s57, %s59
    %p66 = scmp.eq.s32.totalorder %s14, 1
    %p67 = por %p65, %p66
    %p68 = scmp.ne.s32.totalorder %s59, %s60
    %p69 = scmp.eq.s32.totalorder %s14, 0
    %p70 = por %p68, %p69
    %p71 = scmp.ne.s32.totalorder %s59, %s60
    %p72 = scmp.eq.s32.totalorder %s15, 1
    %p73 = por %p71, %p72
    %p75 = scmp.ne.s32.totalorder %s60, %s74
    %p76 = scmp.eq.s32.totalorder %s15, 0
    %p77 = por %p75, %p76
    %s79 = sadd.s32 %s78, 1
    %p82 = scmp.eq.s32.totalorder %s9, 1
    %p83 = scmp.ne.s32.totalorder %s78, %s80
    %p84 = scmp.eq.s32.totalorder %s9, 0
    %p85 = por %p83, %p84
    %p86 = scmp.ne.s32.totalorder %s78, %s80
    %p87 = scmp.eq.s32.totalorder %s14, 1
    %p88 = por %p86, %p87
    %p89 = scmp.ne.s32.totalorder %s80, %s81
    %p90 = scmp.eq.s32.totalorder %s14, 0
    %p91 = por %p89, %p90
    %p92 = scmp.ne.s32.totalorder %s80, %s81
    %p93 = scmp.eq.s32.totalorder %s15, 1
    %p94 = por %p92, %p93
    %p96 = scmp.ne.s32.totalorder %s81, %s95
    %p97 = scmp.eq.s32.totalorder %s15, 0
    %p98 = por %p96, %p97
    %s99 = ssub.s32 %s16, %s28
    %s100 = ssub.s32 %s17, %s24
    %s101 = sor.u32 %s99, %s100
    %p102 = scmp.eq.s32.totalorder %s101, 0
    %s104 = sadd.s32 %s103, 1
    %s105 = scalar_select %p102, %s103, %s104
    %p108 = pneg %p102
    %p109 = scmp.eq.s32.totalorder %s9, 1
    %p110 = por %p108, %p109
    %p111 = scmp.ne.s32.totalorder %s103, %s106
    %p112 = scmp.eq.s32.totalorder %s9, 0
    %p113 = por %p111, %p112
    %p114 = scmp.ne.s32.totalorder %s103, %s106
    %p115 = scmp.eq.s32.totalorder %s14, 1
    %p116 = por %p114, %p115
    %p117 = scmp.ne.s32.totalorder %s106, %s107
    %p118 = scmp.eq.s32.totalorder %s14, 0
    %p119 = por %p117, %p118
    %p120 = scmp.ne.s32.totalorder %s106, %s107
    %p121 = scmp.eq.s32.totalorder %s15, 1
    %p122 = por %p120, %p121
    %p124 = scmp.ne.s32.totalorder %s107, %s123
    %p125 = scmp.eq.s32.totalorder %s15, 0
    %p126 = por %p124, %p125
    %p127 = scmp.le.s32.totalorder 1, %s9
    %p128 = scmp.lt.s32.totalorder %s9, 3
    %p129 = pnand %p127, %p128
    %p130 = pneg %p129
    // Predicated region
    $region9: #{_lambda_.7} parent=5 // pred_check
      _
    $region10: #{_lambda_.7} parent=5 // pred_check_branch
      %132 = sbr.rel (%p129) target = $region12
    $region11: #{_lambda_.7} parent=5 // pred_region
      %s133 = ssub.s32 %s9, 1
      // Predicated region
      $region13: #{_lambda_.7} parent=11 // pred_check
        %p134 = pneg %p70
      $region14: #{_lambda_.7} parent=11 // pred_check_branch
        %136 = sbr.rel (%p134) target = $region16
      $region15: #{_lambda_.7} parent=11 // pred_region
        _
      $region16: #{_lambda_.7} parent=11 // pred_fallthru
        _
      // Predicated region
      $region17: #{_lambda_.7} parent=11 // pred_check
        %p137 = pneg %p91
      $region18: #{_lambda_.7} parent=11 // pred_check_branch
        %139 = sbr.rel (%p137) target = $region20
      $region19: #{_lambda_.7} parent=11 // pred_region
        _
      $region20: #{_lambda_.7} parent=11 // pred_fallthru
        _
    $region12: #{_lambda_.7} parent=5 // pred_fallthru
      _
    %p140 = scmp.lt.s32.totalorder %s9, 2
    // Predicated region
    $region21: #{_lambda_.7} parent=5 // pred_check
      %p141 = pneg %p140
    $region22: #{_lambda_.7} parent=5 // pred_check_branch
      %143 = sbr.rel (%p141) target = $region24
    $region23: #{_lambda_.7} parent=5 // pred_region
      // Predicated region
      $region25: #{_lambda_.7} parent=23 // pred_check
        %p144 = pneg %p43
      $region26: #{_lambda_.7} parent=23 // pred_check_branch
        %146 = sbr.rel (%p144) target = $region28
      $region27: #{_lambda_.7} parent=23 // pred_region
        %p147 = scmp.lt.s32.totalorder %s16, 1
        %s148 = scalar_select %p147, %s16, 1
        %p149 = scmp.lt.s32.totalorder %s17, 0
        %s150 = scalar_select %p149, %s17, 0
        %s151 = smul.addr %s150, 10
        %s152 = smul.addr %s148, 10
        %s153 = sadd.s32 %s151, %s152
        %s154 = smul.addr %s153, 4
        %s155 = scalar_lea.vmem %s0, %s154
      $region28: #{_lambda_.7} parent=23 // pred_fallthru
        _
    $region24: #{_lambda_.7} parent=5 // pred_fallthru
      _
    %p156 = scmp.le.s32.totalorder 1, %s9
    %p157 = scmp.lt.s32.totalorder %s9, 3
    %p158 = pnand %p156, %p157
    %p159 = pneg %p158
    // Predicated region
    $region29: #{_lambda_.7} parent=5 // pred_check
      _
    $region30: #{_lambda_.7} parent=5 // pred_check_branch
      %161 = sbr.rel (%p158) target = $region32
    $region31: #{_lambda_.7} parent=5 // pred_region
      %s162 = ssub.s32 %s9, 1
      %p163 = scmp.lt.s32.totalorder %s18, 1
      %s164 = scalar_select %p163, %s18, 1
      %p165 = scmp.lt.s32.totalorder %s19, 0
      %s166 = scalar_select %p165, %s19, 0
      %s167 = smul.addr %s166, 10
      %s168 = smul.addr %s164, 10
      %s169 = sadd.s32 %s167, %s168
      %s170 = smul.addr %s169, 4
      %s171 = scalar_lea.vmem %s0, %s170
      %p172 = pneg %p49
      %p173 = pneg %p46
      %p174 = pneg %p70
      %p175 = pneg %p67
      %p176 = pneg %p91
      %p177 = pneg %p88
      %p178 = pneg %p119
      %p179 = pneg %p116
      %p180 = scmp.lt.s32.totalorder %s18, 1
      %s181 = scalar_select %p180, %s18, 1
      %p182 = scmp.lt.s32.totalorder %s19, 0
      %s183 = scalar_select %p182, %s19, 0
      %s184 = smul.addr %s183, 8
      %s185 = smul.addr %s181, 8
      %s186 = sadd.s32 %s184, %s185
      %s187 = smul.addr %s186, 8
      %s188 = scalar_lea.vmem %s3, %s187
      %p189 = scmp.lt.s32.totalorder %s18, 1
      %s190 = scalar_select %p189, %s18, 1
      %p191 = scmp.lt.s32.totalorder %s19, 0
      %s192 = scalar_select %p191, %s19, 0
      %s193 = smul.addr %s192, 10
      %s194 = smul.addr %s190, 10
      %s195 = sadd.s32 %s193, %s194
      %s196 = smul.addr %s195, 4
      %s197 = scalar_lea.vmem %s0, %s196
      %p198 = scmp.lt.s32.totalorder %s18, 1
      %s199 = scalar_select %p198, %s18, 1
      %p200 = scmp.lt.s32.totalorder %s19, 0
      %s201 = scalar_select %p200, %s19, 0
      %s202 = smul.addr %s201, 8
      %s203 = smul.addr %s199, 8
      %s204 = sadd.s32 %s202, %s203
      %s205 = smul.addr %s204, 8
      %s206 = scalar_lea.vmem %s3, %s205
      %v208 = vld [vmem:[%s2] sm:$0x1]
      %v210 = vlaneseq
      %v211 = vshrl.u32 %v210, 7
      %v212 = vsub.s32 0, %v211
      %v213 = vrot.slane %v208, %v212
      %v215 = vld [vmem:[%s197] sm:$0xf]
      %v216 = vld [vmem:[%s197 + $0x4] sm:$0xf]
      %v217 = vld [vmem:[%s197 + $0x8] sm:$0xf]
      %v218 = vld [vmem:[%s197 + $0xc] sm:$0xf]
      %v219 = vld [vmem:[%s197 + $0x10] sm:$0xf]
      %v220 = vld [vmem:[%s197 + $0x14] sm:$0xf]
      %v221 = vld [vmem:[%s197 + $0x18] sm:$0xf]
      %v222 = vld [vmem:[%s197 + $0x1c] sm:$0xf]
      %v223 = vld [vmem:[%s1] sm:$0xf]
      %v224 = vld [vmem:[%s1 + $0x4] sm:$0xf]
      %v225 = vld [vmem:[%s1 + $0x8] sm:$0xf]
      %v226 = vld [vmem:[%s1 + $0xc] sm:$0xf]
      %v227 = vld [vmem:[%s1 + $0x10] sm:$0xf]
      %v228 = vld [vmem:[%s1 + $0x14] sm:$0xf]
      %v237 = vunpack.c.l.b16 %v215
      %v238 = vunpack.c.l.b16 %v216
      %v239 = vunpack.c.l.b16 %v217
      %v240 = vunpack.c.l.b16 %v218
      %v241 = vunpack.c.l.b16 %v219
      %v242 = vunpack.c.l.b16 %v220
      %v243 = vunpack.c.l.b16 %v221
      %v244 = vunpack.c.l.b16 %v222
      %v245 = vpack.c.b16 %v238, %v237
      %v246 = vpack.c.b16 %v240, %v239
      %v247 = vpack.c.b16 %v242, %v241
      %v248 = vpack.c.b16 %v244, %v243
      %v255 = vunpack.c.l.b16 %v223
      %v256 = vunpack.c.l.b16 %v224
      %v257 = vunpack.c.l.b16 %v225
      %v258 = vunpack.c.l.b16 %v226
      %v259 = vunpack.c.l.b16 %v227
      %v260 = vunpack.c.l.b16 %v228
      %v261 = vpack.c.b16 %v256, %v255
      %v262 = vpack.c.b16 %v258, %v257
      %v263 = vpack.c.b16 %v260, %v259
      %vm267 = vcmask 392192
      %v269 = vsel %vm267, %v245, 0
      %v272 = vsel %vm267, %v246, 0
      %v275 = vsel %vm267, %v247, 0
      %v278 = vsel %vm267, %v248, 0
      %280 = vmatprep.subr.bf16.mxu0 0
      %281 = vmatpush1.bf16.msra.mxu0 0
      %282 = vmatprep.subr.bf16.mxu0 0
      %283 = vmatpush1.bf16.msra.mxu0 0
      %284 = vmatprep.subr.bf16.mxu0 0
      %285 = vmatpush1.bf16.msra.mxu0 0
      %286 = vmatprep.subr.bf16.mxu0 0
      %287 = vmatpush1.bf16.msra.mxu0 0
      %288 = vmatprep.subr.bf16.mxu0 0
      %289 = vmatpush1.bf16.msra.mxu0 0
      %290 = vmatprep.subr.bf16.mxu0 0
      %291 = vmatpush1.bf16.msra.mxu0 %v263
      %292 = vmatprep.subr.bf16.mxu0 0
      %293 = vmatpush1.bf16.msra.mxu0 %v262
      %294 = vmatprep.subr.bf16.mxu0 0
      %295 = vmatpush1.bf16.msra.mxu0 %v261
      %296 = vmatprep.subr.bf16.mxu0 0
      %297 = vmatpush2.bf16.msra.mxu0 0
      %298 = vmatprep.subr.bf16.mxu0 0
      %299 = vmatpush2.bf16.msra.mxu0 0
      %300 = vmatprep.subr.bf16.mxu0 0
      %301 = vmatpush2.bf16.msra.mxu0 0
      %302 = vmatprep.subr.bf16.mxu0 0
      %303 = vmatpush2.bf16.msra.mxu0 0
      %304 = vmatprep.subr.bf16.mxu0 0
      %305 = vmatpush2.bf16.msra.mxu0 0
      %306 = vmatprep.subr.bf16.mxu0 0
      %307 = vmatpush2.bf16.msra.mxu0 0
      %308 = vmatprep.subr.bf16.mxu0 0
      %309 = vmatpush2.bf16.msra.mxu0 0
      %310 = vmatprep.subr.bf16.mxu0 0
      %311 = vmatpush2.bf16.msra.mxu0 0
      %312 = vmatprep.mubr.bf16.mxu0 0
      %313 = vmatmul.mubr.bf16.gmra.mxu0 %v269
      %v314 = vpop.f32.mrf.mxu0
      %v315 = vadd.f32 0.0, %v314
      %v316 = vpop.f32.mrf.mxu0
      %v317 = vpop.f32.mrf.mxu0
      %v318 = vadd.f32 0.0, %v317
      %v319 = vpop.f32.mrf.mxu0
      %320 = vmatprep.mubr.bf16.mxu0 0
      %321 = vmatmul.mubr.bf16.gmra.mxu0 %v272
      %v322 = vpop.f32.mrf.mxu0
      %v323 = vadd.f32 0.0, %v322
      %v324 = vpop.f32.mrf.mxu0
      %v325 = vpop.f32.mrf.mxu0
      %v326 = vadd.f32 0.0, %v325
      %v327 = vpop.f32.mrf.mxu0
      %328 = vmatprep.mubr.bf16.mxu0 0
      %329 = vmatmul.mubr.bf16.gmra.mxu0 %v275
      %v330 = vpop.f32.mrf.mxu0
      %v331 = vadd.f32 0.0, %v330
      %v332 = vpop.f32.mrf.mxu0
      %v333 = vpop.f32.mrf.mxu0
      %v334 = vadd.f32 0.0, %v333
      %v335 = vpop.f32.mrf.mxu0
      %336 = vmatprep.mubr.bf16.mxu0 0
      %337 = vmatmul.mubr.bf16.gmra.mxu0 %v278
      %v338 = vpop.f32.mrf.mxu0
      %v339 = vadd.f32 0.0, %v338
      %v340 = vpop.f32.mrf.mxu0
      %v341 = vpop.f32.mrf.mxu0
      %v342 = vadd.f32 0.0, %v341
      %v343 = vpop.f32.mrf.mxu0
      %344 = vdwg.mxu0
      %v345 = vadd.f32 %v213, %v315
      %v346 = vadd.f32 %v213, %v318
      %v347 = vadd.f32 %v213, %v323
      %v348 = vadd.f32 %v213, %v326
      %v349 = vadd.f32 %v213, %v331
      %v350 = vadd.f32 %v213, %v334
      %v351 = vadd.f32 %v213, %v339
      %v352 = vadd.f32 %v213, %v342
      %s353 = scalar_lea.vmem %s197, 4
      %v354 = vld [vmem:[%s353] sm:$0xf]
      %v355 = vld [vmem:[%s353 + $0x4] sm:$0xf]
      %v356 = vld [vmem:[%s353 + $0x8] sm:$0xf]
      %v357 = vld [vmem:[%s353 + $0xc] sm:$0xf]
      %v358 = vld [vmem:[%s353 + $0x10] sm:$0xf]
      %v359 = vld [vmem:[%s353 + $0x14] sm:$0xf]
      %v360 = vld [vmem:[%s353 + $0x18] sm:$0xf]
      %v361 = vld [vmem:[%s353 + $0x1c] sm:$0xf]
      %s362 = scalar_lea.vmem %s1, 24
      %v363 = vld [vmem:[%s362] sm:$0xf]
      %v364 = vld [vmem:[%s362 + $0x4] sm:$0xf]
      %v365 = vld [vmem:[%s362 + $0x8] sm:$0xf]
      %v366 = vld [vmem:[%s362 + $0xc] sm:$0xf]
      %v367 = vld [vmem:[%s362 + $0x10] sm:$0xf]
      %v368 = vld [vmem:[%s362 + $0x14] sm:$0xf]
      %v377 = vunpack.c.l.b16 %v354
      %v378 = vunpack.c.l.b16 %v355
      %v379 = vunpack.c.l.b16 %v356
      %v380 = vunpack.c.l.b16 %v357
      %v381 = vunpack.c.l.b16 %v358
      %v382 = vunpack.c.l.b16 %v359
      %v383 = vunpack.c.l.b16 %v360
      %v384 = vunpack.c.l.b16 %v361
      %v385 = vpack.c.b16 %v378, %v377
      %v386 = vpack.c.b16 %v380, %v379
      %v387 = vpack.c.b16 %v382, %v381
      %v388 = vpack.c.b16 %v384, %v383
      %v395 = vunpack.c.l.b16 %v363
      %v396 = vunpack.c.l.b16 %v364
      %v397 = vunpack.c.l.b16 %v365
      %v398 = vunpack.c.l.b16 %v366
      %v399 = vunpack.c.l.b16 %v367
      %v400 = vunpack.c.l.b16 %v368
      %v401 = vpack.c.b16 %v396, %v395
      %v402 = vpack.c.b16 %v398, %v397
      %v403 = vpack.c.b16 %v400, %v399
      %v408 = vsel %vm267, %v385, 0
      %v411 = vsel %vm267, %v386, 0
      %v414 = vsel %vm267, %v387, 0
      %v417 = vsel %vm267, %v388, 0
      %419 = vmatprep.subr.bf16.mxu0 0
      %420 = vmatpush1.bf16.msra.mxu0 0
      %421 = vmatprep.subr.bf16.mxu0 0
      %422 = vmatpush1.bf16.msra.mxu0 0
      %423 = vmatprep.subr.bf16.mxu0 0
      %424 = vmatpush1.bf16.msra.mxu0 0
      %425 = vmatprep.subr.bf16.mxu0 0
      %426 = vmatpush1.bf16.msra.mxu0 0
      %427 = vmatprep.subr.bf16.mxu0 0
      %428 = vmatpush1.bf16.msra.mxu0 0
      %429 = vmatprep.subr.bf16.mxu0 0
      %430 = vmatpush1.bf16.msra.mxu0 %v403
      %431 = vmatprep.subr.bf16.mxu0 0
      %432 = vmatpush1.bf16.msra.mxu0 %v402
      %433 = vmatprep.subr.bf16.mxu0 0
      %434 = vmatpush1.bf16.msra.mxu0 %v401
      %435 = vmatprep.subr.bf16.mxu0 0
      %436 = vmatpush2.bf16.msra.mxu0 0
      %437 = vmatprep.subr.bf16.mxu0 0
      %438 = vmatpush2.bf16.msra.mxu0 0
      %439 = vmatprep.subr.bf16.mxu0 0
      %440 = vmatpush2.bf16.msra.mxu0 0
      %441 = vmatprep.subr.bf16.mxu0 0
      %442 = vmatpush2.bf16.msra.mxu0 0
      %443 = vmatprep.subr.bf16.mxu0 0
      %444 = vmatpush2.bf16.msra.mxu0 0
      %445 = vmatprep.subr.bf16.mxu0 0
      %446 = vmatpush2.bf16.msra.mxu0 0
      %447 = vmatprep.subr.bf16.mxu0 0
      %448 = vmatpush2.bf16.msra.mxu0 0
      %449 = vmatprep.subr.bf16.mxu0 0
      %450 = vmatpush2.bf16.msra.mxu0 0
      %451 = vmatprep.mubr.bf16.mxu0 0
      %452 = vmatmul.mubr.bf16.gmra.mxu0 %v408
      %v453 = vpop.f32.mrf.mxu0
      %v454 = vadd.f32 0.0, %v453
      %v455 = vpop.f32.mrf.mxu0
      %v456 = vpop.f32.mrf.mxu0
      %v457 = vadd.f32 0.0, %v456
      %v458 = vpop.f32.mrf.mxu0
      %459 = vmatprep.mubr.bf16.mxu0 0
      %460 = vmatmul.mubr.bf16.gmra.mxu0 %v411
      %v461 = vpop.f32.mrf.mxu0
      %v462 = vadd.f32 0.0, %v461
      %v463 = vpop.f32.mrf.mxu0
      %v464 = vpop.f32.mrf.mxu0
      %v465 = vadd.f32 0.0, %v464
      %v466 = vpop.f32.mrf.mxu0
      %467 = vmatprep.mubr.bf16.mxu0 0
      %468 = vmatmul.mubr.bf16.gmra.mxu0 %v414
      %v469 = vpop.f32.mrf.mxu0
      %v470 = vadd.f32 0.0, %v469
      %v471 = vpop.f32.mrf.mxu0
      %v472 = vpop.f32.mrf.mxu0
      %v473 = vadd.f32 0.0, %v472
      %v474 = vpop.f32.mrf.mxu0
      %475 = vmatprep.mubr.bf16.mxu0 0
      %476 = vmatmul.mubr.bf16.gmra.mxu0 %v417
      %v477 = vpop.f32.mrf.mxu0
      %v478 = vadd.f32 0.0, %v477
      %v479 = vpop.f32.mrf.mxu0
      %v480 = vpop.f32.mrf.mxu0
      %v481 = vadd.f32 0.0, %v480
      %v482 = vpop.f32.mrf.mxu0
      %483 = vdwg.mxu0
      %v484 = vadd.f32 %v345, %v454
      %v485 = vadd.f32 %v346, %v457
      %v486 = vadd.f32 %v347, %v462
      %v487 = vadd.f32 %v348, %v465
      %v488 = vadd.f32 %v349, %v470
      %v489 = vadd.f32 %v350, %v473
      %v490 = vadd.f32 %v351, %v478
      %v491 = vadd.f32 %v352, %v481
      %s492 = scalar_lea.vmem %s197, 8
      %v493 = vld [vmem:[%s492] sm:$0xf]
      %v494 = vld [vmem:[%s492 + $0x4] sm:$0xf]
      %v495 = vld [vmem:[%s492 + $0x8] sm:$0xf]
      %v496 = vld [vmem:[%s492 + $0xc] sm:$0xf]
      %v497 = vld [vmem:[%s492 + $0x10] sm:$0xf]
      %v498 = vld [vmem:[%s492 + $0x14] sm:$0xf]
      %v499 = vld [vmem:[%s492 + $0x18] sm:$0xf]
      %v500 = vld [vmem:[%s492 + $0x1c] sm:$0xf]
      %s501 = scalar_lea.vmem %s1, 48
      %v502 = vld [vmem:[%s501] sm:$0xf]
      %v503 = vld [vmem:[%s501 + $0x4] sm:$0xf]
      %v504 = vld [vmem:[%s501 + $0x8] sm:$0xf]
      %v505 = vld [vmem:[%s501 + $0xc] sm:$0xf]
      %v506 = vld [vmem:[%s501 + $0x10] sm:$0xf]
      %v507 = vld [vmem:[%s501 + $0x14] sm:$0xf]
      %v516 = vunpack.c.l.b16 %v493
      %v517 = vunpack.c.l.b16 %v494
      %v518 = vunpack.c.l.b16 %v495
      %v519 = vunpack.c.l.b16 %v496
      %v520 = vunpack.c.l.b16 %v497
      %v521 = vunpack.c.l.b16 %v498
      %v522 = vunpack.c.l.b16 %v499
      %v523 = vunpack.c.l.b16 %v500
      %v524 = vpack.c.b16 %v517, %v516
      %v525 = vpack.c.b16 %v519, %v518
      %v526 = vpack.c.b16 %v521, %v520
      %v527 = vpack.c.b16 %v523, %v522
      %v534 = vunpack.c.l.b16 %v502
      %v535 = vunpack.c.l.b16 %v503
      %v536 = vunpack.c.l.b16 %v504
      %v537 = vunpack.c.l.b16 %v505
      %v538 = vunpack.c.l.b16 %v506
      %v539 = vunpack.c.l.b16 %v507
      %v540 = vpack.c.b16 %v535, %v534
      %v541 = vpack.c.b16 %v537, %v536
      %v542 = vpack.c.b16 %v539, %v538
      %v547 = vsel %vm267, %v524, 0
      %v550 = vsel %vm267, %v525, 0
      %v553 = vsel %vm267, %v526, 0
      %v556 = vsel %vm267, %v527, 0
      %558 = vmatprep.subr.bf16.mxu0 0
      %559 = vmatpush1.bf16.msra.mxu0 0
      %560 = vmatprep.subr.bf16.mxu0 0
      %561 = vmatpush1.bf16.msra.mxu0 0
      %562 = vmatprep.subr.bf16.mxu0 0
      %563 = vmatpush1.bf16.msra.mxu0 0
      %564 = vmatprep.subr.bf16.mxu0 0
      %565 = vmatpush1.bf16.msra.mxu0 0
      %566 = vmatprep.subr.bf16.mxu0 0
      %567 = vmatpush1.bf16.msra.mxu0 0
      %568 = vmatprep.subr.bf16.mxu0 0
      %569 = vmatpush1.bf16.msra.mxu0 %v542
      %570 = vmatprep.subr.bf16.mxu0 0
      %571 = vmatpush1.bf16.msra.mxu0 %v541
      %572 = vmatprep.subr.bf16.mxu0 0
      %573 = vmatpush1.bf16.msra.mxu0 %v540
      %574 = vmatprep.subr.bf16.mxu0 0
      %575 = vmatpush2.bf16.msra.mxu0 0
      %576 = vmatprep.subr.bf16.mxu0 0
      %577 = vmatpush2.bf16.msra.mxu0 0
      %578 = vmatprep.subr.bf16.mxu0 0
      %579 = vmatpush2.bf16.msra.mxu0 0
      %580 = vmatprep.subr.bf16.mxu0 0
      %581 = vmatpush2.bf16.msra.mxu0 0
      %582 = vmatprep.subr.bf16.mxu0 0
      %583 = vmatpush2.bf16.msra.mxu0 0
      %584 = vmatprep.subr.bf16.mxu0 0
      %585 = vmatpush2.bf16.msra.mxu0 0
      %586 = vmatprep.subr.bf16.mxu0 0
      %587 = vmatpush2.bf16.msra.mxu0 0
      %588 = vmatprep.subr.bf16.mxu0 0
      %589 = vmatpush2.bf16.msra.mxu0 0
      %590 = vmatprep.mubr.bf16.mxu0 0
      %591 = vmatmul.mubr.bf16.gmra.mxu0 %v547
      %v592 = vpop.f32.mrf.mxu0
      %v593 = vadd.f32 0.0, %v592
      %v594 = vpop.f32.mrf.mxu0
      %v595 = vpop.f32.mrf.mxu0
      %v596 = vadd.f32 0.0, %v595
      %v597 = vpop.f32.mrf.mxu0
      %598 = vmatprep.mubr.bf16.mxu0 0
      %599 = vmatmul.mubr.bf16.gmra.mxu0 %v550
      %v600 = vpop.f32.mrf.mxu0
      %v601 = vadd.f32 0.0, %v600
      %v602 = vpop.f32.mrf.mxu0
      %v603 = vpop.f32.mrf.mxu0
      %v604 = vadd.f32 0.0, %v603
      %v605 = vpop.f32.mrf.mxu0
      %606 = vmatprep.mubr.bf16.mxu0 0
      %607 = vmatmul.mubr.bf16.gmra.mxu0 %v553
      %v608 = vpop.f32.mrf.mxu0
      %v609 = vadd.f32 0.0, %v608
      %v610 = vpop.f32.mrf.mxu0
      %v611 = vpop.f32.mrf.mxu0
      %v612 = vadd.f32 0.0, %v611
      %v613 = vpop.f32.mrf.mxu0
      %614 = vmatprep.mubr.bf16.mxu0 0
      %615 = vmatmul.mubr.bf16.gmra.mxu0 %v556
      %v616 = vpop.f32.mrf.mxu0
      %v617 = vadd.f32 0.0, %v616
      %v618 = vpop.f32.mrf.mxu0
      %v619 = vpop.f32.mrf.mxu0
      %v620 = vadd.f32 0.0, %v619
      %v621 = vpop.f32.mrf.mxu0
      %622 = vdwg.mxu0
      %v623 = vadd.f32 %v484, %v593
      %v624 = vadd.f32 %v485, %v596
      %v625 = vadd.f32 %v486, %v601
      %v626 = vadd.f32 %v487, %v604
      %v627 = vadd.f32 %v488, %v609
      %v628 = vadd.f32 %v489, %v612
      %v629 = vadd.f32 %v490, %v617
      %v630 = vadd.f32 %v491, %v620
      %v631 = vmax.f32 %v623, 0.0
      %v632 = vmax.f32 %v624, 0.0
      %v633 = vmax.f32 %v625, 0.0
      %v634 = vmax.f32 %v626, 0.0
      %v635 = vmax.f32 %v627, 0.0
      %v636 = vmax.f32 %v628, 0.0
      %v637 = vmax.f32 %v629, 0.0
      %v638 = vmax.f32 %v630, 0.0
      %vm639 = vcmask 130048
      %640 = vst.msk [vmem:[%s206] sm:$0xff] %vm639, %v631
      %641 = vst.msk [vmem:[%s206 + $0x8] sm:$0xff] %vm639, %v632
      %642 = vst.msk [vmem:[%s206 + $0x10] sm:$0xff] %vm639, %v633
      %643 = vst.msk [vmem:[%s206 + $0x18] sm:$0xff] %vm639, %v634
      %644 = vst.msk [vmem:[%s206 + $0x20] sm:$0xff] %vm639, %v635
      %645 = vst.msk [vmem:[%s206 + $0x28] sm:$0xff] %vm639, %v636
      %646 = vst.msk [vmem:[%s206 + $0x30] sm:$0xff] %vm639, %v637
      %647 = vst.msk [vmem:[%s206 + $0x38] sm:$0xff] %vm639, %v638
      %p648 = scmp.lt.s32.totalorder %s18, 1
      %s649 = scalar_select %p648, %s18, 1
      %p650 = scmp.lt.s32.totalorder %s19, 0
      %s651 = scalar_select %p650, %s19, 0
      %s652 = smul.addr %s651, 8
      %s653 = smul.addr %s649, 8
      %s654 = sadd.s32 %s652, %s653
      %s655 = smul.addr %s654, 8
      %s656 = scalar_lea.vmem %s3, %s655
      // Predicated region
      $region33: #{_lambda_.7} parent=31 // pred_check
        %p657 = pneg %p116
      $region34: #{_lambda_.7} parent=31 // pred_check_branch
        %659 = sbr.rel (%p657) target = $region36
      $region35: #{_lambda_.7} parent=31 // pred_region
        _
      $region36: #{_lambda_.7} parent=31 // pred_fallthru
        _
    $region32: #{_lambda_.7} parent=5 // pred_fallthru
      _
    %p660 = scmp.le.s32.totalorder 2, %s9
    // Predicated region
    $region37: #{_lambda_.7} parent=5 // pred_check
      %p661 = pneg %p660
    $region38: #{_lambda_.7} parent=5 // pred_check_branch
      %663 = sbr.rel (%p661) target = $region40
    $region39: #{_lambda_.7} parent=5 // pred_region
      %s664 = ssub.s32 %s9, 2
      // Predicated region
      $region41: #{_lambda_.7} parent=39 // pred_check
        %p665 = pneg %p122
      $region42: #{_lambda_.7} parent=39 // pred_check_branch
        %667 = sbr.rel (%p665) target = $region44
      $region43: #{_lambda_.7} parent=39 // pred_region
        %p668 = scmp.lt.s32.totalorder %s20, 1
        %s669 = scalar_select %p668, %s20, 1
        %p670 = scmp.lt.s32.totalorder %s21, 0
        %s671 = scalar_select %p670, %s21, 0
        %s672 = smul.addr %s671, 8
        %s673 = smul.addr %s669, 8
        %s674 = sadd.s32 %s672, %s673
        %s675 = smul.addr %s674, 8
        %s676 = scalar_lea.vmem %s3, %s675
      $region44: #{_lambda_.7} parent=39 // pred_fallthru
        _
    $region40: #{_lambda_.7} parent=5 // pred_fallthru
      _
  $region6: #{_lambda_.7} parent=0 // loop_footer
    %s13 = sadd.s32 1, %s9
  $region7: #{_lambda_.7} parent=0 // loop_footer_branch
    %8 = sbr.rel target = $region3
  $region8: #{_lambda_.7} parent=0 // loop_exit
    _

</llo_original>
